<compile_context>
chip_gen: v7x
topology: tpu7x:2x2x1
jax: 0.10.0
libtpu: 0.0.40
codegen_flags: <defaults>
</compile_context>

<pallas_src>
import numpy as np
import jax
import jax.numpy as jnp
from jax import lax
from jax.experimental import pallas as pl
from jax.experimental.pallas import tpu as pltpu

# ----- synthetic model dimensions (the PyTorch module only needs
#       decoder.dim_output, decoder.num_layers and an encoder/decoder pair) ---
S = 8            # source sequence length
E = 32           # embedding dim
H = 32           # hidden dim
GH = 3 * H       # fused gate width, columns laid out [r | z | n]
V = 128          # vocab size (decoder.dim_output); also padded lane width
NUM_LAYERS = 1
WIDTH = 2
W2 = WIDTH * WIDTH
MAX_LEN = 5

F32 = jnp.float32

# ---- packed-buffer row offsets (every component starts on a sublane x8) ----
ACT_XEMB = 0                   # (S, E)   encoder embeddings of src
ACT_EINIT = S                  # (2, E)   dec_emb[src[0]], dec_emb[0]
ACT_ROWS = 16

R_ENC_IH = 0                   # (E,   3H)
R_ENC_HH = R_ENC_IH + E        # (H,   3H)
R_ENC_B = 64                   # (1,   3H)
R_DEC_IN = 72                  # (E+H, 3H)  fused [emb ; ctx] input weights
R_DEC_HH = R_DEC_IN + E + H    # (H,   3H)
R_DEC_B = 168                  # (1,   3H)
WG_ROWS = 176

R_DEC_EMB = 0                  # (V, E) stored in lanes [0:E]
R_DEC_WOUT = V                 # (H, V)
R_DEC_BOUT = V + H             # (1, V)
WO_ROWS = 168


def _vmem():
    return pl.BlockSpec(memory_space=pltpu.MemorySpace.VMEM)


# --------------------------- fused beam-search kernel -------------------------
def beam_search_kernel(acts_ref, wg_ref, wo_ref, out_ref):
    # ------------- hoisted constants (JAX does not CSE broadcast_in_dim) -----
    lane_f = lax.broadcasted_iota(jnp.int32, (WIDTH, V), 1).astype(F32)  # (W,128)
    cand_iota = lane_f[0:1, 0:W2]          # (1, W^2) candidate (cnt) indices
    beam_iota = lane_f[0:1, 0:WIDTH]       # (1, W)   parent-beam indices

    # ------------- weights: loaded once from the packed slabs ----------------
    enc_w_ih = wg_ref[R_ENC_IH:R_ENC_IH + E, :]        # (E,   3H)
    enc_w_hh = wg_ref[R_ENC_HH:R_ENC_HH + H, :]        # (H,   3H)
    enc_b = wg_ref[R_ENC_B:R_ENC_B + 1, :]             # (1,   3H)
    dec_w_in = wg_ref[R_DEC_IN:R_DEC_IN + E + H, :]    # (E+H, 3H)
    dec_w_hh = wg_ref[R_DEC_HH:R_DEC_HH + H, :]        # (H,   3H)
    dec_b = wg_ref[R_DEC_B:R_DEC_B + 1, :]             # (1,   3H)
    dec_emb = wo_ref[R_DEC_EMB:R_DEC_EMB + V, 0:E]     # (V, E)
    dec_w_out = wo_ref[R_DEC_WOUT:R_DEC_WOUT + H, :]   # (H, V)
    dec_b_out = wo_ref[R_DEC_BOUT:R_DEC_BOUT + 1, :]   # (1, V)

    # ------------- encoder GRU: fused 3H-wide matmuls, vreg-resident ---------
    x = acts_ref[ACT_XEMB:ACT_XEMB + S, :]                               # (S, E)
    gi_enc = jnp.dot(x, enc_w_ih, preferred_element_type=F32) + enc_b    # (S, 3H)
    h = jnp.zeros((1, H), F32)
    h_rows = []
    for t in range(S):                                   # static unroll (S = 8)
        gh = jnp.dot(h, enc_w_hh, preferred_element_type=F32)            # (1, 3H)
        gi = gi_enc[t:t + 1, :]
        r = jax.nn.sigmoid(gi[:, 0:H] + gh[:, 0:H])
        z = jax.nn.sigmoid(gi[:, H:2 * H] + gh[:, H:2 * H])
        n = jnp.tanh(gi[:, 2 * H:3 * H] + r * gh[:, 2 * H:3 * H])
        h = (1.0 - z) * n + z * h
        h_rows.append(h)
    enc = jnp.concatenate(h_rows, axis=0)                # (S, H) stays in vregs
    h_enc = h                                            # (1, H)

    # ------------- decoder building blocks -----------------------------------
    def decoder_step(emb, hid):
        # dot-product attention; exact softmax divide (approx reciprocal could
        # flip near-tie top-k vs the reference).
        scores = lax.dot_general(hid, enc, (((1,), (1,)), ((), ())),
                                 preferred_element_type=F32)             # (B, S)
        smax = jnp.max(scores, axis=-1, keepdims=True)
        e = jnp.exp(scores - smax)
        attn = e / jnp.sum(e, axis=-1, keepdims=True)
        ctx = jnp.dot(attn, enc, preferred_element_type=F32)             # (B, H)

        # fused GRU cell: ONE (B,E+H)@(E+H,3H) and ONE (B,H)@(H,3H) matmul,
        # then static lane slices per gate.
        xin = jnp.concatenate([emb, ctx], axis=1)                        # (B, E+H)
        gi = jnp.dot(xin, dec_w_in, preferred_element_type=F32) + dec_b  # (B, 3H)
        gh = jnp.dot(hid, dec_w_hh, preferred_element_type=F32)          # (B, 3H)
        r = jax.nn.sigmoid(gi[:, 0:H] + gh[:, 0:H])
        z = jax.nn.sigmoid(gi[:, H:2 * H] + gh[:, H:2 * H])
        n = jnp.tanh(gi[:, 2 * H:3 * H] + r * gh[:, 2 * H:3 * H])
        h_new = (1.0 - z) * n + z * hid                                  # (B, H)

        logits = (jnp.dot(h_new, dec_w_out, preferred_element_type=F32)
                  + dec_b_out)                                           # (B, V)
        lmax = jnp.max(logits, axis=-1, keepdims=True)
        lse = jnp.log(jnp.sum(jnp.exp(logits - lmax), axis=-1, keepdims=True)) + lmax
        return logits - lse, h_new

    def topk_rows(logp, k):
        # per-row top-k (values + float indices), descending; ties -> lowest lane
        # TODO(synk): a packed value+index single-reduction top-k would halve the
        # XLU reductions but is not exactly value-preserving; kept as 2 reductions.
        vals, idxs = [], []
        cur = logp
        for _ in range(k):
            m = jnp.max(cur, axis=-1, keepdims=True)
            idx = jnp.min(jnp.where(cur == m, lane_f, float(V)),
                          axis=-1, keepdims=True)
            cur = jnp.where(lane_f == idx, -jnp.inf, cur)
            vals.append(m)
            idxs.append(idx)
        return vals, idxs

    def gather_dec_emb(tok):          # (B,1) float ids -> (B,E) one-hot matmul
        onehot = (lane_f == tok).astype(F32)                             # (B, V)
        return jnp.dot(onehot, dec_emb, preferred_element_type=F32)      # (B, E)

    # ------------- first decode: [src[0] ; prefix token 0] batched -----------
    emb_init = acts_ref[ACT_EINIT:ACT_EINIT + 2, :]                      # (2, E)
    hid0 = jnp.broadcast_to(h_enc, (WIDTH, H))       # broadcast, not concat
    logp0, h0_new = decoder_step(emb_init, hid0)                         # (2,V),(2,H)
    vals0, idxs0 = topk_rows(logp0, WIDTH)           # row 0 = real first decode
    tok1 = jnp.concatenate([idxs0[j][0:1, :] for j in range(WIDTH)], axis=0)  # (W,1)
    lp1 = jnp.concatenate([vals0[j][0:1, :] for j in range(WIDTH)], axis=0)   # (W,1)

    # beam state carried as stacked slabs (tokens kept 128-lane wide so every
    # store/selection is lane-dense; lanes >= MAX_LEN stay 0)
    beam_rows = jnp.where(lane_f == 1.0, tok1, 0.0)                      # (W, 128)
    prob_best = jnp.exp(lp1)                                             # (W, 1)
    hid_cache = jnp.broadcast_to(h0_new[1:2, :], (WIDTH, H))  # after token-0 prefix

    final_cands = jnp.zeros((WIDTH, V), F32)   # candidates cnt=0..W-1 of last step

    # ------------- beam expansion loop (static unroll) -----------------------
    for t in range(2, MAX_LEN):
        tok = beam_rows[:, t - 1:t]                       # (W, 1) newest token/beam
        emb = gather_dec_emb(tok)                         # (W, E)
        logp, h_new = decoder_step(emb, hid_cache)        # (W, V), (W, H)
        vals, idxs = topk_rows(logp, WIDTH)               # lists of (W, 1)

        vals_mat = jnp.concatenate(vals, axis=1)          # (W, W) [beam i, rank j]
        toks_mat = jnp.concatenate(idxs, axis=1)          # (W, W)
        cand_mat = jnp.exp(vals_mat) * prob_best          # (W, W) candidate probs
        # flatten in the reference's cnt order c = i*WIDTH + j
        cand_probs = jnp.concatenate(
            [cand_mat[i:i + 1, :] for i in range(WIDTH)], axis=1)        # (1, W^2)
        cand_toks = jnp.concatenate(
            [toks_mat[i:i + 1, :] for i in range(WIDTH)], axis=1)        # (1, W^2)

        if t == MAX_LEN - 1:
            # reference quirk: it returns beam_options[argmax(prob_best)] with
            # argmax in [0, WIDTH), so only candidates cnt=0..WIDTH-1 (children
            # of OLD beam 0) can ever be returned; snapshot them here.
            toks_i0 = jnp.concatenate(
                [idxs[j][0:1, :] for j in range(WIDTH)], axis=0)         # (W, 1)
            final_cands = jnp.where(lane_f == float(t), toks_i0, beam_rows[0:1, :])

        # top-WIDTH over the W^2 candidates, vectorized (lane iota + one-hots)
        cur = cand_probs
        parent_rows, sel_probs, sel_toks = [], [], []
        for _ in range(WIDTH):
            m = jnp.max(cur, axis=-1, keepdims=True)                     # (1, 1)
            cidx = jnp.min(jnp.where(cur == m, cand_iota, float(W2)),
                           axis=-1, keepdims=True)                       # (1, 1)
            oh = (cand_iota == cidx).astype(F32)                         # (1, W^2)
            pidx = jnp.floor(cidx * (1.0 / WIDTH))                       # c // WIDTH
            parent_rows.append((beam_iota == pidx).astype(F32))          # (1, W)
            sel_toks.append(jnp.sum(oh * cand_toks, axis=-1, keepdims=True))
            sel_probs.append(m)
            cur = jnp.where(oh > 0.0, -jnp.inf, cur)
        parent_m = jnp.concatenate(parent_rows, axis=0)                  # (W, W)
        prob_best = jnp.concatenate(sel_probs, axis=0)                   # (W, 1)
        toks_sel = jnp.concatenate(sel_toks, axis=0)                     # (W, 1)

        # one-hot mask-sum row/hidden selection (pure VPU, exact)
        base_rows = parent_m[:, 0:1] * beam_rows[0:1, :]
        new_hid = parent_m[:, 0:1] * h_new[0:1, :]
        for i in range(1, WIDTH):
            base_rows = base_rows + parent_m[:, i:i + 1] * beam_rows[i:i + 1, :]
            new_hid = new_hid + parent_m[:, i:i + 1] * h_new[i:i + 1, :]
        beam_rows = jnp.where(lane_f == float(t), toks_sel, base_rows)   # (W, 128)
        hid_cache = new_hid                                              # (W, H)

    # ------------- epilogue: in-kernel argmax + one lane-dense store ---------
    # best_index = argmax(prob_best) (first max), indexing the candidate table.
    best_val = prob_best[0:1, :]
    best_row = final_cands[0:1, :]
    for i in range(1, WIDTH):
        better = prob_best[i:i + 1, :] > best_val
        best_val = jnp.where(better, prob_best[i:i + 1, :], best_val)
        best_row = jnp.where(better, final_cands[i:i + 1, :], best_row)
    out_ref[...] = best_row                               # (1, 128), lane-dense


# ----------------------------- host-side packing ------------------------------
def pack_params(params):
    """Pack the 9 weight/bias tensors into two VMEM slabs (done once)."""
    wg = jnp.zeros((WG_ROWS, GH), F32)
    wg = wg.at[R_ENC_IH:R_ENC_IH + E, :].set(params["enc_w_ih"])
    wg = wg.at[R_ENC_HH:R_ENC_HH + H, :].set(params["enc_w_hh"])
    wg = wg.at[R_ENC_B:R_ENC_B + 1, :].set(params["enc_b"])
    dec_w_in = jnp.concatenate([params["dec_w_ie"], params["dec_w_ic"]], axis=0)
    wg = wg.at[R_DEC_IN:R_DEC_IN + E + H, :].set(dec_w_in)
    wg = wg.at[R_DEC_HH:R_DEC_HH + H, :].set(params["dec_w_hh"])
    wg = wg.at[R_DEC_B:R_DEC_B + 1, :].set(params["dec_b"])

    wo = jnp.zeros((WO_ROWS, V), F32)
    wo = wo.at[R_DEC_EMB:R_DEC_EMB + V, 0:E].set(params["dec_emb"])
    wo = wo.at[R_DEC_WOUT:R_DEC_WOUT + H, :].set(params["dec_w_out"])
    wo = wo.at[R_DEC_BOUT:R_DEC_BOUT + 1, :].set(params["dec_b_out"])
    return wg, wo


def beam_search_forward(src, src_len, width, max_len, params, packed=None):
    # src: (S, 1) int32 tokens (batch = 1, matching src[0, :] usage)
    del src_len
    assert width == WIDTH and max_len == MAX_LEN
    if packed is None:
        packed = pack_params(params)
    wg, wo = packed

    src_tok = src[:, 0]
    x_emb = params["enc_emb"][src_tok]                                    # (S, E)
    # row 0: embedding of the first decoded token (src[0]); row 1: token id 0
    # (the never-written beam_best[:,0] prefix token of the reference).
    emb_init = jnp.stack([params["dec_emb"][src_tok[0]],
                          params["dec_emb"][0]], axis=0)                  # (2, E)
    acts = jnp.zeros((ACT_ROWS, E), F32)
    acts = acts.at[ACT_XEMB:ACT_XEMB + S, :].set(x_emb)
    acts = acts.at[ACT_EINIT:ACT_EINIT + 2, :].set(emb_init)

    out = pl.pallas_call(
        beam_search_kernel,
        out_shape=jax.ShapeDtypeStruct((1, V), F32),
        in_specs=[_vmem(), _vmem(), _vmem()],
        out_specs=_vmem(),
    )(acts, wg, wo)

    # reference: return beam_options[best_index] (already selected in-kernel)
    return out[0, :MAX_LEN]


# -------------------------------- params --------------------------------------
def init_params(key):
    ks = jax.random.split(key, 10)
    scale = 0.1
    return {
        "enc_emb":   scale * jax.random.normal(ks[0], (V, E), F32),
        "enc_w_ih":  scale * jax.random.normal(ks[1], (E, GH), F32),
        "enc_w_hh":  scale * jax.random.normal(ks[2], (H, GH), F32),
        "enc_b":     jnp.zeros((1, GH), F32),
        "dec_emb":   scale * jax.random.normal(ks[3], (V, E), F32),
        "dec_w_ie":  scale * jax.random.normal(ks[4], (E, GH), F32),
        "dec_w_ic":  scale * jax.random.normal(ks[5], (H, GH), F32),
        "dec_w_hh":  scale * jax.random.normal(ks[6], (H, GH), F32),
        "dec_b":     jnp.zeros((1, GH), F32),
        "dec_w_out": scale * jax.random.normal(ks[7], (H, V), F32),
        "dec_b_out": jnp.zeros((1, V), F32),
    }


if __name__ == "__main__":
    key = jax.random.PRNGKey(0)
    pkey, skey = jax.random.split(key)
    params = init_params(pkey)
    packed = pack_params(params)          # one-time weight packing
    src = jax.random.randint(skey, (S, 1), 0, V, dtype=jnp.int32)
    src_len = jnp.array([S], jnp.int32)

    best_beam = beam_search_forward(src, src_len, WIDTH, MAX_LEN, params, packed)
    jax.block_until_ready(best_beam)
    _ = np.asarray(best_beam)             # .cpu().numpy() equivalent of the reference
    print("KERNEL_OK")
</pallas_src>

<mosaic_0001>
module attributes {stable_mosaic.version = 11 : i64} {
  func.func @beam_search_kernel(%arg0: memref<16x32xf32, #tpu.memory_space<vmem>>, %arg1: memref<176x96xf32, #tpu.memory_space<vmem>>, %arg2: memref<168x128xf32, #tpu.memory_space<vmem>>, %arg3: memref<1x128xf32, #tpu.memory_space<vmem>>) attributes {dimension_semantics = [], scalar_prefetch = 0 : i64, scratch_operands = 0 : i64, tpu.core_type = #tpu.core_type<tc>} {
    %0 = tpu.iota {dimensions = array<i32: 1>} : vector<2x128xi32>
    %1 = arith.sitofp %0 : vector<2x128xi32> to vector<2x128xf32>
    %2 = vector.extract_strided_slice %1 {offsets = [0, 0], sizes = [1, 4], strides = [1, 1]} : vector<2x128xf32> to vector<1x4xf32>
    %3 = vector.extract_strided_slice %1 {offsets = [0, 0], sizes = [1, 2], strides = [1, 1]} : vector<2x128xf32> to vector<1x2xf32>
    %c0 = arith.constant 0 : index
    %c0_0 = arith.constant 0 : index
    %4 = vector.load %arg1[%c0, %c0_0] : memref<176x96xf32, #tpu.memory_space<vmem>>, vector<32x96xf32>
    %c32 = arith.constant 32 : index
    %c0_1 = arith.constant 0 : index
    %5 = vector.load %arg1[%c32, %c0_1] : memref<176x96xf32, #tpu.memory_space<vmem>>, vector<32x96xf32>
    %c64 = arith.constant 64 : index
    %c0_2 = arith.constant 0 : index
    %6 = vector.load %arg1[%c64, %c0_2] : memref<176x96xf32, #tpu.memory_space<vmem>>, vector<1x96xf32>
    %c72 = arith.constant 72 : index
    %c0_3 = arith.constant 0 : index
    %7 = vector.load %arg1[%c72, %c0_3] : memref<176x96xf32, #tpu.memory_space<vmem>>, vector<64x96xf32>
    %c136 = arith.constant 136 : index
    %c0_4 = arith.constant 0 : index
    %8 = vector.load %arg1[%c136, %c0_4] : memref<176x96xf32, #tpu.memory_space<vmem>>, vector<32x96xf32>
    %c168 = arith.constant 168 : index
    %c0_5 = arith.constant 0 : index
    %9 = vector.load %arg1[%c168, %c0_5] : memref<176x96xf32, #tpu.memory_space<vmem>>, vector<1x96xf32>
    %c0_6 = arith.constant 0 : index
    %c0_7 = arith.constant 0 : index
    %10 = vector.load %arg2[%c0_6, %c0_7] : memref<168x128xf32, #tpu.memory_space<vmem>>, vector<128x32xf32>
    %c128 = arith.constant 128 : index
    %c0_8 = arith.constant 0 : index
    %11 = vector.load %arg2[%c128, %c0_8] : memref<168x128xf32, #tpu.memory_space<vmem>>, vector<32x128xf32>
    %c160 = arith.constant 160 : index
    %c0_9 = arith.constant 0 : index
    %12 = vector.load %arg2[%c160, %c0_9] : memref<168x128xf32, #tpu.memory_space<vmem>>, vector<1x128xf32>
    %c0_10 = arith.constant 0 : index
    %c0_11 = arith.constant 0 : index
    %13 = vector.load %arg0[%c0_10, %c0_11] : memref<16x32xf32, #tpu.memory_space<vmem>>, vector<8x32xf32>
    %cst = arith.constant dense<0.000000e+00> : vector<8x96xf32>
    %14 = tpu.matmul %13, %4, %cst {dimension_numbers = #tpu.dot_dimension_numbers<[1], [0], [0], [1], [0, 0, 1, 1], [], []>} : vector<8x32xf32>, vector<32x96xf32>, vector<8x96xf32> -> vector<8x96xf32>
    %15 = vector.broadcast %6 : vector<1x96xf32> to vector<8x96xf32>
    %16 = arith.addf %14, %15 : vector<8x96xf32>
    %cst_12 = arith.constant 0.000000e+00 : f32
    %17 = vector.broadcast %cst_12 : f32 to vector<1x32xf32>
    %cst_13 = arith.constant dense<0.000000e+00> : vector<1x96xf32>
    %18 = tpu.matmul %17, %5, %cst_13 {dimension_numbers = #tpu.dot_dimension_numbers<[1], [0], [0], [1], [0, 0, 1, 1], [], []>} : vector<1x32xf32>, vector<32x96xf32>, vector<1x96xf32> -> vector<1x96xf32>
    %19 = vector.extract_strided_slice %16 {offsets = [0, 0], sizes = [1, 96], strides = [1, 1]} : vector<8x96xf32> to vector<1x96xf32>
    %20 = vector.extract_strided_slice %19 {offsets = [0, 0], sizes = [1, 32], strides = [1, 1]} : vector<1x96xf32> to vector<1x32xf32>
    %21 = vector.extract_strided_slice %18 {offsets = [0, 0], sizes = [1, 32], strides = [1, 1]} : vector<1x96xf32> to vector<1x32xf32>
    %22 = arith.addf %20, %21 : vector<1x32xf32>
    %23 = arith.negf %22 : vector<1x32xf32>
    %24 = math.exp %23 : vector<1x32xf32>
    %cst_14 = arith.constant 1.000000e+00 : f32
    %25 = vector.broadcast %cst_14 : f32 to vector<1x32xf32>
    %26 = arith.addf %25, %24 : vector<1x32xf32>
    %27 = arith.divf %25, %26 : vector<1x32xf32>
    %28 = vector.extract_strided_slice %19 {offsets = [0, 32], sizes = [1, 32], strides = [1, 1]} : vector<1x96xf32> to vector<1x32xf32>
    %29 = vector.extract_strided_slice %18 {offsets = [0, 32], sizes = [1, 32], strides = [1, 1]} : vector<1x96xf32> to vector<1x32xf32>
    %30 = arith.addf %28, %29 : vector<1x32xf32>
    %31 = arith.negf %30 : vector<1x32xf32>
    %32 = math.exp %31 : vector<1x32xf32>
    %cst_15 = arith.constant 1.000000e+00 : f32
    %33 = vector.broadcast %cst_15 : f32 to vector<1x32xf32>
    %34 = arith.addf %33, %32 : vector<1x32xf32>
    %35 = arith.divf %33, %34 : vector<1x32xf32>
    %36 = vector.extract_strided_slice %19 {offsets = [0, 64], sizes = [1, 32], strides = [1, 1]} : vector<1x96xf32> to vector<1x32xf32>
    %37 = vector.extract_strided_slice %18 {offsets = [0, 64], sizes = [1, 32], strides = [1, 1]} : vector<1x96xf32> to vector<1x32xf32>
    %38 = arith.mulf %27, %37 : vector<1x32xf32>
    %39 = arith.addf %36, %38 : vector<1x32xf32>
    %40 = math.tanh %39 : vector<1x32xf32>
    %cst_16 = arith.constant 1.000000e+00 : f32
    %41 = vector.broadcast %cst_16 : f32 to vector<1x32xf32>
    %42 = arith.subf %41, %35 : vector<1x32xf32>
    %43 = arith.mulf %42, %40 : vector<1x32xf32>
    %44 = arith.mulf %35, %17 : vector<1x32xf32>
    %45 = arith.addf %43, %44 : vector<1x32xf32>
    %cst_17 = arith.constant dense<0.000000e+00> : vector<1x96xf32>
    %46 = tpu.matmul %45, %5, %cst_17 {dimension_numbers = #tpu.dot_dimension_numbers<[1], [0], [0], [1], [0, 0, 1, 1], [], []>} : vector<1x32xf32>, vector<32x96xf32>, vector<1x96xf32> -> vector<1x96xf32>
    %47 = vector.extract_strided_slice %16 {offsets = [1, 0], sizes = [1, 96], strides = [1, 1]} : vector<8x96xf32> to vector<1x96xf32>
    %48 = vector.extract_strided_slice %47 {offsets = [0, 0], sizes = [1, 32], strides = [1, 1]} : vector<1x96xf32> to vector<1x32xf32>
    %49 = vector.extract_strided_slice %46 {offsets = [0, 0], sizes = [1, 32], strides = [1, 1]} : vector<1x96xf32> to vector<1x32xf32>
    %50 = arith.addf %48, %49 : vector<1x32xf32>
    %51 = arith.negf %50 : vector<1x32xf32>
    %52 = math.exp %51 : vector<1x32xf32>
    %cst_18 = arith.constant 1.000000e+00 : f32
    %53 = vector.broadcast %cst_18 : f32 to vector<1x32xf32>
    %54 = arith.addf %53, %52 : vector<1x32xf32>
    %55 = arith.divf %53, %54 : vector<1x32xf32>
    %56 = vector.extract_strided_slice %47 {offsets = [0, 32], sizes = [1, 32], strides = [1, 1]} : vector<1x96xf32> to vector<1x32xf32>
    %57 = vector.extract_strided_slice %46 {offsets = [0, 32], sizes = [1, 32], strides = [1, 1]} : vector<1x96xf32> to vector<1x32xf32>
    %58 = arith.addf %56, %57 : vector<1x32xf32>
    %59 = arith.negf %58 : vector<1x32xf32>
    %60 = math.exp %59 : vector<1x32xf32>
    %cst_19 = arith.constant 1.000000e+00 : f32
    %61 = vector.broadcast %cst_19 : f32 to vector<1x32xf32>
    %62 = arith.addf %61, %60 : vector<1x32xf32>
    %63 = arith.divf %61, %62 : vector<1x32xf32>
    %64 = vector.extract_strided_slice %47 {offsets = [0, 64], sizes = [1, 32], strides = [1, 1]} : vector<1x96xf32> to vector<1x32xf32>
    %65 = vector.extract_strided_slice %46 {offsets = [0, 64], sizes = [1, 32], strides = [1, 1]} : vector<1x96xf32> to vector<1x32xf32>
    %66 = arith.mulf %55, %65 : vector<1x32xf32>
    %67 = arith.addf %64, %66 : vector<1x32xf32>
    %68 = math.tanh %67 : vector<1x32xf32>
    %cst_20 = arith.constant 1.000000e+00 : f32
    %69 = vector.broadcast %cst_20 : f32 to vector<1x32xf32>
    %70 = arith.subf %69, %63 : vector<1x32xf32>
    %71 = arith.mulf %70, %68 : vector<1x32xf32>
    %72 = arith.mulf %63, %45 : vector<1x32xf32>
    %73 = arith.addf %71, %72 : vector<1x32xf32>
    %cst_21 = arith.constant dense<0.000000e+00> : vector<1x96xf32>
    %74 = tpu.matmul %73, %5, %cst_21 {dimension_numbers = #tpu.dot_dimension_numbers<[1], [0], [0], [1], [0, 0, 1, 1], [], []>} : vector<1x32xf32>, vector<32x96xf32>, vector<1x96xf32> -> vector<1x96xf32>
    %75 = vector.extract_strided_slice %16 {offsets = [2, 0], sizes = [1, 96], strides = [1, 1]} : vector<8x96xf32> to vector<1x96xf32>
    %76 = vector.extract_strided_slice %75 {offsets = [0, 0], sizes = [1, 32], strides = [1, 1]} : vector<1x96xf32> to vector<1x32xf32>
    %77 = vector.extract_strided_slice %74 {offsets = [0, 0], sizes = [1, 32], strides = [1, 1]} : vector<1x96xf32> to vector<1x32xf32>
    %78 = arith.addf %76, %77 : vector<1x32xf32>
    %79 = arith.negf %78 : vector<1x32xf32>
    %80 = math.exp %79 : vector<1x32xf32>
    %cst_22 = arith.constant 1.000000e+00 : f32
    %81 = vector.broadcast %cst_22 : f32 to vector<1x32xf32>
    %82 = arith.addf %81, %80 : vector<1x32xf32>
    %83 = arith.divf %81, %82 : vector<1x32xf32>
    %84 = vector.extract_strided_slice %75 {offsets = [0, 32], sizes = [1, 32], strides = [1, 1]} : vector<1x96xf32> to vector<1x32xf32>
    %85 = vector.extract_strided_slice %74 {offsets = [0, 32], sizes = [1, 32], strides = [1, 1]} : vector<1x96xf32> to vector<1x32xf32>
    %86 = arith.addf %84, %85 : vector<1x32xf32>
    %87 = arith.negf %86 : vector<1x32xf32>
    %88 = math.exp %87 : vector<1x32xf32>
    %cst_23 = arith.constant 1.000000e+00 : f32
    %89 = vector.broadcast %cst_23 : f32 to vector<1x32xf32>
    %90 = arith.addf %89, %88 : vector<1x32xf32>
    %91 = arith.divf %89, %90 : vector<1x32xf32>
    %92 = vector.extract_strided_slice %75 {offsets = [0, 64], sizes = [1, 32], strides = [1, 1]} : vector<1x96xf32> to vector<1x32xf32>
    %93 = vector.extract_strided_slice %74 {offsets = [0, 64], sizes = [1, 32], strides = [1, 1]} : vector<1x96xf32> to vector<1x32xf32>
    %94 = arith.mulf %83, %93 : vector<1x32xf32>
    %95 = arith.addf %92, %94 : vector<1x32xf32>
    %96 = math.tanh %95 : vector<1x32xf32>
    %cst_24 = arith.constant 1.000000e+00 : f32
    %97 = vector.broadcast %cst_24 : f32 to vector<1x32xf32>
    %98 = arith.subf %97, %91 : vector<1x32xf32>
    %99 = arith.mulf %98, %96 : vector<1x32xf32>
    %100 = arith.mulf %91, %73 : vector<1x32xf32>
    %101 = arith.addf %99, %100 : vector<1x32xf32>
    %cst_25 = arith.constant dense<0.000000e+00> : vector<1x96xf32>
    %102 = tpu.matmul %101, %5, %cst_25 {dimension_numbers = #tpu.dot_dimension_numbers<[1], [0], [0], [1], [0, 0, 1, 1], [], []>} : vector<1x32xf32>, vector<32x96xf32>, vector<1x96xf32> -> vector<1x96xf32>
    %103 = vector.extract_strided_slice %16 {offsets = [3, 0], sizes = [1, 96], strides = [1, 1]} : vector<8x96xf32> to vector<1x96xf32>
    %104 = vector.extract_strided_slice %103 {offsets = [0, 0], sizes = [1, 32], strides = [1, 1]} : vector<1x96xf32> to vector<1x32xf32>
    %105 = vector.extract_strided_slice %102 {offsets = [0, 0], sizes = [1, 32], strides = [1, 1]} : vector<1x96xf32> to vector<1x32xf32>
    %106 = arith.addf %104, %105 : vector<1x32xf32>
    %107 = arith.negf %106 : vector<1x32xf32>
    %108 = math.exp %107 : vector<1x32xf32>
    %cst_26 = arith.constant 1.000000e+00 : f32
    %109 = vector.broadcast %cst_26 : f32 to vector<1x32xf32>
    %110 = arith.addf %109, %108 : vector<1x32xf32>
    %111 = arith.divf %109, %110 : vector<1x32xf32>
    %112 = vector.extract_strided_slice %103 {offsets = [0, 32], sizes = [1, 32], strides = [1, 1]} : vector<1x96xf32> to vector<1x32xf32>
    %113 = vector.extract_strided_slice %102 {offsets = [0, 32], sizes = [1, 32], strides = [1, 1]} : vector<1x96xf32> to vector<1x32xf32>
    %114 = arith.addf %112, %113 : vector<1x32xf32>
    %115 = arith.negf %114 : vector<1x32xf32>
    %116 = math.exp %115 : vector<1x32xf32>
    %cst_27 = arith.constant 1.000000e+00 : f32
    %117 = vector.broadcast %cst_27 : f32 to vector<1x32xf32>
    %118 = arith.addf %117, %116 : vector<1x32xf32>
    %119 = arith.divf %117, %118 : vector<1x32xf32>
    %120 = vector.extract_strided_slice %103 {offsets = [0, 64], sizes = [1, 32], strides = [1, 1]} : vector<1x96xf32> to vector<1x32xf32>
    %121 = vector.extract_strided_slice %102 {offsets = [0, 64], sizes = [1, 32], strides = [1, 1]} : vector<1x96xf32> to vector<1x32xf32>
    %122 = arith.mulf %111, %121 : vector<1x32xf32>
    %123 = arith.addf %120, %122 : vector<1x32xf32>
    %124 = math.tanh %123 : vector<1x32xf32>
    %cst_28 = arith.constant 1.000000e+00 : f32
    %125 = vector.broadcast %cst_28 : f32 to vector<1x32xf32>
    %126 = arith.subf %125, %119 : vector<1x32xf32>
    %127 = arith.mulf %126, %124 : vector<1x32xf32>
    %128 = arith.mulf %119, %101 : vector<1x32xf32>
    %129 = arith.addf %127, %128 : vector<1x32xf32>
    %cst_29 = arith.constant dense<0.000000e+00> : vector<1x96xf32>
    %130 = tpu.matmul %129, %5, %cst_29 {dimension_numbers = #tpu.dot_dimension_numbers<[1], [0], [0], [1], [0, 0, 1, 1], [], []>} : vector<1x32xf32>, vector<32x96xf32>, vector<1x96xf32> -> vector<1x96xf32>
    %131 = vector.extract_strided_slice %16 {offsets = [4, 0], sizes = [1, 96], strides = [1, 1]} : vector<8x96xf32> to vector<1x96xf32>
    %132 = vector.extract_strided_slice %131 {offsets = [0, 0], sizes = [1, 32], strides = [1, 1]} : vector<1x96xf32> to vector<1x32xf32>
    %133 = vector.extract_strided_slice %130 {offsets = [0, 0], sizes = [1, 32], strides = [1, 1]} : vector<1x96xf32> to vector<1x32xf32>
    %134 = arith.addf %132, %133 : vector<1x32xf32>
    %135 = arith.negf %134 : vector<1x32xf32>
    %136 = math.exp %135 : vector<1x32xf32>
    %cst_30 = arith.constant 1.000000e+00 : f32
    %137 = vector.broadcast %cst_30 : f32 to vector<1x32xf32>
    %138 = arith.addf %137, %136 : vector<1x32xf32>
    %139 = arith.divf %137, %138 : vector<1x32xf32>
    %140 = vector.extract_strided_slice %131 {offsets = [0, 32], sizes = [1, 32], strides = [1, 1]} : vector<1x96xf32> to vector<1x32xf32>
    %141 = vector.extract_strided_slice %130 {offsets = [0, 32], sizes = [1, 32], strides = [1, 1]} : vector<1x96xf32> to vector<1x32xf32>
    %142 = arith.addf %140, %141 : vector<1x32xf32>
    %143 = arith.negf %142 : vector<1x32xf32>
    %144 = math.exp %143 : vector<1x32xf32>
    %cst_31 = arith.constant 1.000000e+00 : f32
    %145 = vector.broadcast %cst_31 : f32 to vector<1x32xf32>
    %146 = arith.addf %145, %144 : vector<1x32xf32>
    %147 = arith.divf %145, %146 : vector<1x32xf32>
    %148 = vector.extract_strided_slice %131 {offsets = [0, 64], sizes = [1, 32], strides = [1, 1]} : vector<1x96xf32> to vector<1x32xf32>
    %149 = vector.extract_strided_slice %130 {offsets = [0, 64], sizes = [1, 32], strides = [1, 1]} : vector<1x96xf32> to vector<1x32xf32>
    %150 = arith.mulf %139, %149 : vector<1x32xf32>
    %151 = arith.addf %148, %150 : vector<1x32xf32>
    %152 = math.tanh %151 : vector<1x32xf32>
    %cst_32 = arith.constant 1.000000e+00 : f32
    %153 = vector.broadcast %cst_32 : f32 to vector<1x32xf32>
    %154 = arith.subf %153, %147 : vector<1x32xf32>
    %155 = arith.mulf %154, %152 : vector<1x32xf32>
    %156 = arith.mulf %147, %129 : vector<1x32xf32>
    %157 = arith.addf %155, %156 : vector<1x32xf32>
    %cst_33 = arith.constant dense<0.000000e+00> : vector<1x96xf32>
    %158 = tpu.matmul %157, %5, %cst_33 {dimension_numbers = #tpu.dot_dimension_numbers<[1], [0], [0], [1], [0, 0, 1, 1], [], []>} : vector<1x32xf32>, vector<32x96xf32>, vector<1x96xf32> -> vector<1x96xf32>
    %159 = vector.extract_strided_slice %16 {offsets = [5, 0], sizes = [1, 96], strides = [1, 1]} : vector<8x96xf32> to vector<1x96xf32>
    %160 = vector.extract_strided_slice %159 {offsets = [0, 0], sizes = [1, 32], strides = [1, 1]} : vector<1x96xf32> to vector<1x32xf32>
    %161 = vector.extract_strided_slice %158 {offsets = [0, 0], sizes = [1, 32], strides = [1, 1]} : vector<1x96xf32> to vector<1x32xf32>
    %162 = arith.addf %160, %161 : vector<1x32xf32>
    %163 = arith.negf %162 : vector<1x32xf32>
    %164 = math.exp %163 : vector<1x32xf32>
    %cst_34 = arith.constant 1.000000e+00 : f32
    %165 = vector.broadcast %cst_34 : f32 to vector<1x32xf32>
    %166 = arith.addf %165, %164 : vector<1x32xf32>
    %167 = arith.divf %165, %166 : vector<1x32xf32>
    %168 = vector.extract_strided_slice %159 {offsets = [0, 32], sizes = [1, 32], strides = [1, 1]} : vector<1x96xf32> to vector<1x32xf32>
    %169 = vector.extract_strided_slice %158 {offsets = [0, 32], sizes = [1, 32], strides = [1, 1]} : vector<1x96xf32> to vector<1x32xf32>
    %170 = arith.addf %168, %169 : vector<1x32xf32>
    %171 = arith.negf %170 : vector<1x32xf32>
    %172 = math.exp %171 : vector<1x32xf32>
    %cst_35 = arith.constant 1.000000e+00 : f32
    %173 = vector.broadcast %cst_35 : f32 to vector<1x32xf32>
    %174 = arith.addf %173, %172 : vector<1x32xf32>
    %175 = arith.divf %173, %174 : vector<1x32xf32>
    %176 = vector.extract_strided_slice %159 {offsets = [0, 64], sizes = [1, 32], strides = [1, 1]} : vector<1x96xf32> to vector<1x32xf32>
    %177 = vector.extract_strided_slice %158 {offsets = [0, 64], sizes = [1, 32], strides = [1, 1]} : vector<1x96xf32> to vector<1x32xf32>
    %178 = arith.mulf %167, %177 : vector<1x32xf32>
    %179 = arith.addf %176, %178 : vector<1x32xf32>
    %180 = math.tanh %179 : vector<1x32xf32>
    %cst_36 = arith.constant 1.000000e+00 : f32
    %181 = vector.broadcast %cst_36 : f32 to vector<1x32xf32>
    %182 = arith.subf %181, %175 : vector<1x32xf32>
    %183 = arith.mulf %182, %180 : vector<1x32xf32>
    %184 = arith.mulf %175, %157 : vector<1x32xf32>
    %185 = arith.addf %183, %184 : vector<1x32xf32>
    %cst_37 = arith.constant dense<0.000000e+00> : vector<1x96xf32>
    %186 = tpu.matmul %185, %5, %cst_37 {dimension_numbers = #tpu.dot_dimension_numbers<[1], [0], [0], [1], [0, 0, 1, 1], [], []>} : vector<1x32xf32>, vector<32x96xf32>, vector<1x96xf32> -> vector<1x96xf32>
    %187 = vector.extract_strided_slice %16 {offsets = [6, 0], sizes = [1, 96], strides = [1, 1]} : vector<8x96xf32> to vector<1x96xf32>
    %188 = vector.extract_strided_slice %187 {offsets = [0, 0], sizes = [1, 32], strides = [1, 1]} : vector<1x96xf32> to vector<1x32xf32>
    %189 = vector.extract_strided_slice %186 {offsets = [0, 0], sizes = [1, 32], strides = [1, 1]} : vector<1x96xf32> to vector<1x32xf32>
    %190 = arith.addf %188, %189 : vector<1x32xf32>
    %191 = arith.negf %190 : vector<1x32xf32>
    %192 = math.exp %191 : vector<1x32xf32>
    %cst_38 = arith.constant 1.000000e+00 : f32
    %193 = vector.broadcast %cst_38 : f32 to vector<1x32xf32>
    %194 = arith.addf %193, %192 : vector<1x32xf32>
    %195 = arith.divf %193, %194 : vector<1x32xf32>
    %196 = vector.extract_strided_slice %187 {offsets = [0, 32], sizes = [1, 32], strides = [1, 1]} : vector<1x96xf32> to vector<1x32xf32>
    %197 = vector.extract_strided_slice %186 {offsets = [0, 32], sizes = [1, 32], strides = [1, 1]} : vector<1x96xf32> to vector<1x32xf32>
    %198 = arith.addf %196, %197 : vector<1x32xf32>
    %199 = arith.negf %198 : vector<1x32xf32>
    %200 = math.exp %199 : vector<1x32xf32>
    %cst_39 = arith.constant 1.000000e+00 : f32
    %201 = vector.broadcast %cst_39 : f32 to vector<1x32xf32>
    %202 = arith.addf %201, %200 : vector<1x32xf32>
    %203 = arith.divf %201, %202 : vector<1x32xf32>
    %204 = vector.extract_strided_slice %187 {offsets = [0, 64], sizes = [1, 32], strides = [1, 1]} : vector<1x96xf32> to vector<1x32xf32>
    %205 = vector.extract_strided_slice %186 {offsets = [0, 64], sizes = [1, 32], strides = [1, 1]} : vector<1x96xf32> to vector<1x32xf32>
    %206 = arith.mulf %195, %205 : vector<1x32xf32>
    %207 = arith.addf %204, %206 : vector<1x32xf32>
    %208 = math.tanh %207 : vector<1x32xf32>
    %cst_40 = arith.constant 1.000000e+00 : f32
    %209 = vector.broadcast %cst_40 : f32 to vector<1x32xf32>
    %210 = arith.subf %209, %203 : vector<1x32xf32>
    %211 = arith.mulf %210, %208 : vector<1x32xf32>
    %212 = arith.mulf %203, %185 : vector<1x32xf32>
    %213 = arith.addf %211, %212 : vector<1x32xf32>
    %cst_41 = arith.constant dense<0.000000e+00> : vector<1x96xf32>
    %214 = tpu.matmul %213, %5, %cst_41 {dimension_numbers = #tpu.dot_dimension_numbers<[1], [0], [0], [1], [0, 0, 1, 1], [], []>} : vector<1x32xf32>, vector<32x96xf32>, vector<1x96xf32> -> vector<1x96xf32>
    %215 = vector.extract_strided_slice %16 {offsets = [7, 0], sizes = [1, 96], strides = [1, 1]} : vector<8x96xf32> to vector<1x96xf32>
    %216 = vector.extract_strided_slice %215 {offsets = [0, 0], sizes = [1, 32], strides = [1, 1]} : vector<1x96xf32> to vector<1x32xf32>
    %217 = vector.extract_strided_slice %214 {offsets = [0, 0], sizes = [1, 32], strides = [1, 1]} : vector<1x96xf32> to vector<1x32xf32>
    %218 = arith.addf %216, %217 : vector<1x32xf32>
    %219 = arith.negf %218 : vector<1x32xf32>
    %220 = math.exp %219 : vector<1x32xf32>
    %cst_42 = arith.constant 1.000000e+00 : f32
    %221 = vector.broadcast %cst_42 : f32 to vector<1x32xf32>
    %222 = arith.addf %221, %220 : vector<1x32xf32>
    %223 = arith.divf %221, %222 : vector<1x32xf32>
    %224 = vector.extract_strided_slice %215 {offsets = [0, 32], sizes = [1, 32], strides = [1, 1]} : vector<1x96xf32> to vector<1x32xf32>
    %225 = vector.extract_strided_slice %214 {offsets = [0, 32], sizes = [1, 32], strides = [1, 1]} : vector<1x96xf32> to vector<1x32xf32>
    %226 = arith.addf %224, %225 : vector<1x32xf32>
    %227 = arith.negf %226 : vector<1x32xf32>
    %228 = math.exp %227 : vector<1x32xf32>
    %cst_43 = arith.constant 1.000000e+00 : f32
    %229 = vector.broadcast %cst_43 : f32 to vector<1x32xf32>
    %230 = arith.addf %229, %228 : vector<1x32xf32>
    %231 = arith.divf %229, %230 : vector<1x32xf32>
    %232 = vector.extract_strided_slice %215 {offsets = [0, 64], sizes = [1, 32], strides = [1, 1]} : vector<1x96xf32> to vector<1x32xf32>
    %233 = vector.extract_strided_slice %214 {offsets = [0, 64], sizes = [1, 32], strides = [1, 1]} : vector<1x96xf32> to vector<1x32xf32>
    %234 = arith.mulf %223, %233 : vector<1x32xf32>
    %235 = arith.addf %232, %234 : vector<1x32xf32>
    %236 = math.tanh %235 : vector<1x32xf32>
    %cst_44 = arith.constant 1.000000e+00 : f32
    %237 = vector.broadcast %cst_44 : f32 to vector<1x32xf32>
    %238 = arith.subf %237, %231 : vector<1x32xf32>
    %239 = arith.mulf %238, %236 : vector<1x32xf32>
    %240 = arith.mulf %231, %213 : vector<1x32xf32>
    %241 = arith.addf %239, %240 : vector<1x32xf32>
    %242 = tpu.concatenate %45, %73, %101, %129, %157, %185, %213, %241 in 0 : vector<1x32xf32>, vector<1x32xf32>, vector<1x32xf32>, vector<1x32xf32>, vector<1x32xf32>, vector<1x32xf32>, vector<1x32xf32>, vector<1x32xf32> -> vector<8x32xf32>
    %c8 = arith.constant 8 : index
    %c0_45 = arith.constant 0 : index
    %243 = vector.load %arg0[%c8, %c0_45] : memref<16x32xf32, #tpu.memory_space<vmem>>, vector<2x32xf32>
    %244 = vector.shape_cast %241 : vector<1x32xf32> to vector<1x32xf32>
    %245 = vector.broadcast %244 : vector<1x32xf32> to vector<2x32xf32>
    %cst_46 = arith.constant dense<0.000000e+00> : vector<2x8xf32>
    %246 = tpu.matmul %245, %242, %cst_46 {dimension_numbers = #tpu.dot_dimension_numbers<[1], [1], [0], [0], [0, 0, 1, 0], [], []>} : vector<2x32xf32>, vector<8x32xf32>, vector<2x8xf32> -> vector<2x8xf32>
    %cst_47 = arith.constant dense<0xFF800000> : vector<2xf32>
    %247 = vector.multi_reduction <maximumf>, %246, %cst_47 [1] : vector<2x8xf32> to vector<2xf32>
    %248 = vector.shape_cast %247 : vector<2xf32> to vector<2x1xf32>
    %249 = vector.broadcast %248 : vector<2x1xf32> to vector<2x8xf32>
    %250 = arith.subf %246, %249 : vector<2x8xf32>
    %251 = math.exp %250 : vector<2x8xf32>
    %cst_48 = arith.constant dense<0.000000e+00> : vector<2xf32>
    %252 = vector.multi_reduction <add>, %251, %cst_48 [1] : vector<2x8xf32> to vector<2xf32>
    %253 = vector.shape_cast %252 : vector<2xf32> to vector<2x1xf32>
    %254 = vector.broadcast %253 : vector<2x1xf32> to vector<2x8xf32>
    %255 = arith.divf %251, %254 : vector<2x8xf32>
    %cst_49 = arith.constant dense<0.000000e+00> : vector<2x32xf32>
    %256 = tpu.matmul %255, %242, %cst_49 {dimension_numbers = #tpu.dot_dimension_numbers<[1], [0], [0], [1], [0, 0, 1, 1], [], []>} : vector<2x8xf32>, vector<8x32xf32>, vector<2x32xf32> -> vector<2x32xf32>
    %257 = tpu.concatenate %243, %256 in 1 : vector<2x32xf32>, vector<2x32xf32> -> vector<2x64xf32>
    %cst_50 = arith.constant dense<0.000000e+00> : vector<2x96xf32>
    %258 = tpu.matmul %257, %7, %cst_50 {dimension_numbers = #tpu.dot_dimension_numbers<[1], [0], [0], [1], [0, 0, 1, 1], [], []>} : vector<2x64xf32>, vector<64x96xf32>, vector<2x96xf32> -> vector<2x96xf32>
    %259 = vector.broadcast %9 : vector<1x96xf32> to vector<2x96xf32>
    %260 = arith.addf %258, %259 : vector<2x96xf32>
    %cst_51 = arith.constant dense<0.000000e+00> : vector<2x96xf32>
    %261 = tpu.matmul %245, %8, %cst_51 {dimension_numbers = #tpu.dot_dimension_numbers<[1], [0], [0], [1], [0, 0, 1, 1], [], []>} : vector<2x32xf32>, vector<32x96xf32>, vector<2x96xf32> -> vector<2x96xf32>
    %262 = vector.extract_strided_slice %260 {offsets = [0, 0], sizes = [2, 32], strides = [1, 1]} : vector<2x96xf32> to vector<2x32xf32>
    %263 = vector.extract_strided_slice %261 {offsets = [0, 0], sizes = [2, 32], strides = [1, 1]} : vector<2x96xf32> to vector<2x32xf32>
    %264 = arith.addf %262, %263 : vector<2x32xf32>
    %265 = arith.negf %264 : vector<2x32xf32>
    %266 = math.exp %265 : vector<2x32xf32>
    %cst_52 = arith.constant 1.000000e+00 : f32
    %267 = vector.broadcast %cst_52 : f32 to vector<2x32xf32>
    %268 = arith.addf %267, %266 : vector<2x32xf32>
    %269 = arith.divf %267, %268 : vector<2x32xf32>
    %270 = vector.extract_strided_slice %260 {offsets = [0, 32], sizes = [2, 32], strides = [1, 1]} : vector<2x96xf32> to vector<2x32xf32>
    %271 = vector.extract_strided_slice %261 {offsets = [0, 32], sizes = [2, 32], strides = [1, 1]} : vector<2x96xf32> to vector<2x32xf32>
    %272 = arith.addf %270, %271 : vector<2x32xf32>
    %273 = arith.negf %272 : vector<2x32xf32>
    %274 = math.exp %273 : vector<2x32xf32>
    %cst_53 = arith.constant 1.000000e+00 : f32
    %275 = vector.broadcast %cst_53 : f32 to vector<2x32xf32>
    %276 = arith.addf %275, %274 : vector<2x32xf32>
    %277 = arith.divf %275, %276 : vector<2x32xf32>
    %278 = vector.extract_strided_slice %260 {offsets = [0, 64], sizes = [2, 32], strides = [1, 1]} : vector<2x96xf32> to vector<2x32xf32>
    %279 = vector.extract_strided_slice %261 {offsets = [0, 64], sizes = [2, 32], strides = [1, 1]} : vector<2x96xf32> to vector<2x32xf32>
    %280 = arith.mulf %269, %279 : vector<2x32xf32>
    %281 = arith.addf %278, %280 : vector<2x32xf32>
    %282 = math.tanh %281 : vector<2x32xf32>
    %cst_54 = arith.constant 1.000000e+00 : f32
    %283 = vector.broadcast %cst_54 : f32 to vector<2x32xf32>
    %284 = arith.subf %283, %277 : vector<2x32xf32>
    %285 = arith.mulf %284, %282 : vector<2x32xf32>
    %286 = arith.mulf %277, %245 : vector<2x32xf32>
    %287 = arith.addf %285, %286 : vector<2x32xf32>
    %cst_55 = arith.constant dense<0.000000e+00> : vector<2x128xf32>
    %288 = tpu.matmul %287, %11, %cst_55 {dimension_numbers = #tpu.dot_dimension_numbers<[1], [0], [0], [1], [0, 0, 1, 1], [], []>} : vector<2x32xf32>, vector<32x128xf32>, vector<2x128xf32> -> vector<2x128xf32>
    %289 = vector.broadcast %12 : vector<1x128xf32> to vector<2x128xf32>
    %290 = arith.addf %288, %289 : vector<2x128xf32>
    %cst_56 = arith.constant dense<0xFF800000> : vector<2xf32>
    %291 = vector.multi_reduction <maximumf>, %290, %cst_56 [1] : vector<2x128xf32> to vector<2xf32>
    %292 = vector.shape_cast %291 : vector<2xf32> to vector<2x1xf32>
    %293 = vector.broadcast %292 : vector<2x1xf32> to vector<2x128xf32>
    %294 = arith.subf %290, %293 : vector<2x128xf32>
    %295 = math.exp %294 : vector<2x128xf32>
    %cst_57 = arith.constant dense<0.000000e+00> : vector<2xf32>
    %296 = vector.multi_reduction <add>, %295, %cst_57 [1] : vector<2x128xf32> to vector<2xf32>
    %297 = vector.shape_cast %296 : vector<2xf32> to vector<2x1xf32>
    %298 = math.log %297 : vector<2x1xf32>
    %299 = arith.addf %298, %292 : vector<2x1xf32>
    %300 = vector.broadcast %299 : vector<2x1xf32> to vector<2x128xf32>
    %301 = arith.subf %290, %300 : vector<2x128xf32>
    %cst_58 = arith.constant dense<0xFF800000> : vector<2xf32>
    %302 = vector.multi_reduction <maximumf>, %301, %cst_58 [1] : vector<2x128xf32> to vector<2xf32>
    %303 = vector.shape_cast %302 : vector<2xf32> to vector<2x1xf32>
    %304 = vector.broadcast %303 : vector<2x1xf32> to vector<2x128xf32>
    %305 = arith.cmpf oeq, %301, %304 : vector<2x128xf32>
    %cst_59 = arith.constant 1.280000e+02 : f32
    %306 = vector.broadcast %cst_59 : f32 to vector<2x128xf32>
    %307 = arith.select %305, %1, %306 : vector<2x128xi1>, vector<2x128xf32>
    %cst_60 = arith.constant dense<0x7F800000> : vector<2xf32>
    %308 = vector.multi_reduction <minimumf>, %307, %cst_60 [1] : vector<2x128xf32> to vector<2xf32>
    %309 = vector.shape_cast %308 : vector<2xf32> to vector<2x1xf32>
    %310 = vector.broadcast %309 : vector<2x1xf32> to vector<2x128xf32>
    %311 = arith.cmpf oeq, %1, %310 : vector<2x128xf32>
    %cst_61 = arith.constant 0xFF800000 : f32
    %312 = vector.broadcast %cst_61 : f32 to vector<2x128xf32>
    %313 = arith.select %311, %312, %301 : vector<2x128xi1>, vector<2x128xf32>
    %cst_62 = arith.constant dense<0xFF800000> : vector<2xf32>
    %314 = vector.multi_reduction <maximumf>, %313, %cst_62 [1] : vector<2x128xf32> to vector<2xf32>
    %315 = vector.shape_cast %314 : vector<2xf32> to vector<2x1xf32>
    %316 = vector.broadcast %315 : vector<2x1xf32> to vector<2x128xf32>
    %317 = arith.cmpf oeq, %313, %316 : vector<2x128xf32>
    %cst_63 = arith.constant 1.280000e+02 : f32
    %318 = vector.broadcast %cst_63 : f32 to vector<2x128xf32>
    %319 = arith.select %317, %1, %318 : vector<2x128xi1>, vector<2x128xf32>
    %cst_64 = arith.constant dense<0x7F800000> : vector<2xf32>
    %320 = vector.multi_reduction <minimumf>, %319, %cst_64 [1] : vector<2x128xf32> to vector<2xf32>
    %321 = vector.shape_cast %320 : vector<2xf32> to vector<2x1xf32>
    %322 = vector.extract_strided_slice %309 {offsets = [0, 0], sizes = [1, 1], strides = [1, 1]} : vector<2x1xf32> to vector<1x1xf32>
    %323 = vector.extract_strided_slice %321 {offsets = [0, 0], sizes = [1, 1], strides = [1, 1]} : vector<2x1xf32> to vector<1x1xf32>
    %324 = tpu.concatenate %322, %323 in 0 : vector<1x1xf32>, vector<1x1xf32> -> vector<2x1xf32>
    %325 = vector.extract_strided_slice %303 {offsets = [0, 0], sizes = [1, 1], strides = [1, 1]} : vector<2x1xf32> to vector<1x1xf32>
    %326 = vector.extract_strided_slice %315 {offsets = [0, 0], sizes = [1, 1], strides = [1, 1]} : vector<2x1xf32> to vector<1x1xf32>
    %327 = tpu.concatenate %325, %326 in 0 : vector<1x1xf32>, vector<1x1xf32> -> vector<2x1xf32>
    %cst_65 = arith.constant 1.000000e+00 : f32
    %328 = vector.broadcast %cst_65 : f32 to vector<2x128xf32>
    %329 = arith.cmpf oeq, %1, %328 : vector<2x128xf32>
    %cst_66 = arith.constant 0.000000e+00 : f32
    %330 = vector.shape_cast %324 : vector<2x1xf32> to vector<2x1xf32>
    %331 = vector.broadcast %330 : vector<2x1xf32> to vector<2x128xf32>
    %332 = vector.broadcast %cst_66 : f32 to vector<2x128xf32>
    %333 = arith.select %329, %331, %332 : vector<2x128xi1>, vector<2x128xf32>
    %334 = math.exp %327 : vector<2x1xf32>
    %335 = vector.extract_strided_slice %287 {offsets = [1, 0], sizes = [1, 32], strides = [1, 1]} : vector<2x32xf32> to vector<1x32xf32>
    %336 = vector.shape_cast %335 : vector<1x32xf32> to vector<1x32xf32>
    %337 = vector.broadcast %336 : vector<1x32xf32> to vector<2x32xf32>
    %338 = vector.extract_strided_slice %333 {offsets = [0, 1], sizes = [2, 1], strides = [1, 1]} : vector<2x128xf32> to vector<2x1xf32>
    %339 = vector.broadcast %338 : vector<2x1xf32> to vector<2x128xf32>
    %340 = arith.cmpf oeq, %1, %339 : vector<2x128xf32>
    %341 = arith.extui %340 : vector<2x128xi1> to vector<2x128xi32>
    %342 = arith.sitofp %341 : vector<2x128xi32> to vector<2x128xf32>
    %cst_67 = arith.constant dense<0.000000e+00> : vector<2x32xf32>
    %343 = tpu.matmul %342, %10, %cst_67 {dimension_numbers = #tpu.dot_dimension_numbers<[1], [0], [0], [1], [0, 0, 1, 1], [], []>} : vector<2x128xf32>, vector<128x32xf32>, vector<2x32xf32> -> vector<2x32xf32>
    %cst_68 = arith.constant dense<0.000000e+00> : vector<2x8xf32>
    %344 = tpu.matmul %337, %242, %cst_68 {dimension_numbers = #tpu.dot_dimension_numbers<[1], [1], [0], [0], [0, 0, 1, 0], [], []>} : vector<2x32xf32>, vector<8x32xf32>, vector<2x8xf32> -> vector<2x8xf32>
    %cst_69 = arith.constant dense<0xFF800000> : vector<2xf32>
    %345 = vector.multi_reduction <maximumf>, %344, %cst_69 [1] : vector<2x8xf32> to vector<2xf32>
    %346 = vector.shape_cast %345 : vector<2xf32> to vector<2x1xf32>
    %347 = vector.broadcast %346 : vector<2x1xf32> to vector<2x8xf32>
    %348 = arith.subf %344, %347 : vector<2x8xf32>
    %349 = math.exp %348 : vector<2x8xf32>
    %cst_70 = arith.constant dense<0.000000e+00> : vector<2xf32>
    %350 = vector.multi_reduction <add>, %349, %cst_70 [1] : vector<2x8xf32> to vector<2xf32>
    %351 = vector.shape_cast %350 : vector<2xf32> to vector<2x1xf32>
    %352 = vector.broadcast %351 : vector<2x1xf32> to vector<2x8xf32>
    %353 = arith.divf %349, %352 : vector<2x8xf32>
    %cst_71 = arith.constant dense<0.000000e+00> : vector<2x32xf32>
    %354 = tpu.matmul %353, %242, %cst_71 {dimension_numbers = #tpu.dot_dimension_numbers<[1], [0], [0], [1], [0, 0, 1, 1], [], []>} : vector<2x8xf32>, vector<8x32xf32>, vector<2x32xf32> -> vector<2x32xf32>
    %355 = tpu.concatenate %343, %354 in 1 : vector<2x32xf32>, vector<2x32xf32> -> vector<2x64xf32>
    %cst_72 = arith.constant dense<0.000000e+00> : vector<2x96xf32>
    %356 = tpu.matmul %355, %7, %cst_72 {dimension_numbers = #tpu.dot_dimension_numbers<[1], [0], [0], [1], [0, 0, 1, 1], [], []>} : vector<2x64xf32>, vector<64x96xf32>, vector<2x96xf32> -> vector<2x96xf32>
    %357 = vector.broadcast %9 : vector<1x96xf32> to vector<2x96xf32>
    %358 = arith.addf %356, %357 : vector<2x96xf32>
    %cst_73 = arith.constant dense<0.000000e+00> : vector<2x96xf32>
    %359 = tpu.matmul %337, %8, %cst_73 {dimension_numbers = #tpu.dot_dimension_numbers<[1], [0], [0], [1], [0, 0, 1, 1], [], []>} : vector<2x32xf32>, vector<32x96xf32>, vector<2x96xf32> -> vector<2x96xf32>
    %360 = vector.extract_strided_slice %358 {offsets = [0, 0], sizes = [2, 32], strides = [1, 1]} : vector<2x96xf32> to vector<2x32xf32>
    %361 = vector.extract_strided_slice %359 {offsets = [0, 0], sizes = [2, 32], strides = [1, 1]} : vector<2x96xf32> to vector<2x32xf32>
    %362 = arith.addf %360, %361 : vector<2x32xf32>
    %363 = arith.negf %362 : vector<2x32xf32>
    %364 = math.exp %363 : vector<2x32xf32>
    %cst_74 = arith.constant 1.000000e+00 : f32
    %365 = vector.broadcast %cst_74 : f32 to vector<2x32xf32>
    %366 = arith.addf %365, %364 : vector<2x32xf32>
    %367 = arith.divf %365, %366 : vector<2x32xf32>
    %368 = vector.extract_strided_slice %358 {offsets = [0, 32], sizes = [2, 32], strides = [1, 1]} : vector<2x96xf32> to vector<2x32xf32>
    %369 = vector.extract_strided_slice %359 {offsets = [0, 32], sizes = [2, 32], strides = [1, 1]} : vector<2x96xf32> to vector<2x32xf32>
    %370 = arith.addf %368, %369 : vector<2x32xf32>
    %371 = arith.negf %370 : vector<2x32xf32>
    %372 = math.exp %371 : vector<2x32xf32>
    %cst_75 = arith.constant 1.000000e+00 : f32
    %373 = vector.broadcast %cst_75 : f32 to vector<2x32xf32>
    %374 = arith.addf %373, %372 : vector<2x32xf32>
    %375 = arith.divf %373, %374 : vector<2x32xf32>
    %376 = vector.extract_strided_slice %358 {offsets = [0, 64], sizes = [2, 32], strides = [1, 1]} : vector<2x96xf32> to vector<2x32xf32>
    %377 = vector.extract_strided_slice %359 {offsets = [0, 64], sizes = [2, 32], strides = [1, 1]} : vector<2x96xf32> to vector<2x32xf32>
    %378 = arith.mulf %367, %377 : vector<2x32xf32>
    %379 = arith.addf %376, %378 : vector<2x32xf32>
    %380 = math.tanh %379 : vector<2x32xf32>
    %cst_76 = arith.constant 1.000000e+00 : f32
    %381 = vector.broadcast %cst_76 : f32 to vector<2x32xf32>
    %382 = arith.subf %381, %375 : vector<2x32xf32>
    %383 = arith.mulf %382, %380 : vector<2x32xf32>
    %384 = arith.mulf %375, %337 : vector<2x32xf32>
    %385 = arith.addf %383, %384 : vector<2x32xf32>
    %cst_77 = arith.constant dense<0.000000e+00> : vector<2x128xf32>
    %386 = tpu.matmul %385, %11, %cst_77 {dimension_numbers = #tpu.dot_dimension_numbers<[1], [0], [0], [1], [0, 0, 1, 1], [], []>} : vector<2x32xf32>, vector<32x128xf32>, vector<2x128xf32> -> vector<2x128xf32>
    %387 = vector.broadcast %12 : vector<1x128xf32> to vector<2x128xf32>
    %388 = arith.addf %386, %387 : vector<2x128xf32>
    %cst_78 = arith.constant dense<0xFF800000> : vector<2xf32>
    %389 = vector.multi_reduction <maximumf>, %388, %cst_78 [1] : vector<2x128xf32> to vector<2xf32>
    %390 = vector.shape_cast %389 : vector<2xf32> to vector<2x1xf32>
    %391 = vector.broadcast %390 : vector<2x1xf32> to vector<2x128xf32>
    %392 = arith.subf %388, %391 : vector<2x128xf32>
    %393 = math.exp %392 : vector<2x128xf32>
    %cst_79 = arith.constant dense<0.000000e+00> : vector<2xf32>
    %394 = vector.multi_reduction <add>, %393, %cst_79 [1] : vector<2x128xf32> to vector<2xf32>
    %395 = vector.shape_cast %394 : vector<2xf32> to vector<2x1xf32>
    %396 = math.log %395 : vector<2x1xf32>
    %397 = arith.addf %396, %390 : vector<2x1xf32>
    %398 = vector.broadcast %397 : vector<2x1xf32> to vector<2x128xf32>
    %399 = arith.subf %388, %398 : vector<2x128xf32>
    %cst_80 = arith.constant dense<0xFF800000> : vector<2xf32>
    %400 = vector.multi_reduction <maximumf>, %399, %cst_80 [1] : vector<2x128xf32> to vector<2xf32>
    %401 = vector.shape_cast %400 : vector<2xf32> to vector<2x1xf32>
    %402 = vector.broadcast %401 : vector<2x1xf32> to vector<2x128xf32>
    %403 = arith.cmpf oeq, %399, %402 : vector<2x128xf32>
    %cst_81 = arith.constant 1.280000e+02 : f32
    %404 = vector.broadcast %cst_81 : f32 to vector<2x128xf32>
    %405 = arith.select %403, %1, %404 : vector<2x128xi1>, vector<2x128xf32>
    %cst_82 = arith.constant dense<0x7F800000> : vector<2xf32>
    %406 = vector.multi_reduction <minimumf>, %405, %cst_82 [1] : vector<2x128xf32> to vector<2xf32>
    %407 = vector.shape_cast %406 : vector<2xf32> to vector<2x1xf32>
    %408 = vector.broadcast %407 : vector<2x1xf32> to vector<2x128xf32>
    %409 = arith.cmpf oeq, %1, %408 : vector<2x128xf32>
    %cst_83 = arith.constant 0xFF800000 : f32
    %410 = vector.broadcast %cst_83 : f32 to vector<2x128xf32>
    %411 = arith.select %409, %410, %399 : vector<2x128xi1>, vector<2x128xf32>
    %cst_84 = arith.constant dense<0xFF800000> : vector<2xf32>
    %412 = vector.multi_reduction <maximumf>, %411, %cst_84 [1] : vector<2x128xf32> to vector<2xf32>
    %413 = vector.shape_cast %412 : vector<2xf32> to vector<2x1xf32>
    %414 = vector.broadcast %413 : vector<2x1xf32> to vector<2x128xf32>
    %415 = arith.cmpf oeq, %411, %414 : vector<2x128xf32>
    %cst_85 = arith.constant 1.280000e+02 : f32
    %416 = vector.broadcast %cst_85 : f32 to vector<2x128xf32>
    %417 = arith.select %415, %1, %416 : vector<2x128xi1>, vector<2x128xf32>
    %cst_86 = arith.constant dense<0x7F800000> : vector<2xf32>
    %418 = vector.multi_reduction <minimumf>, %417, %cst_86 [1] : vector<2x128xf32> to vector<2xf32>
    %419 = vector.shape_cast %418 : vector<2xf32> to vector<2x1xf32>
    %420 = tpu.concatenate %401, %413 in 1 : vector<2x1xf32>, vector<2x1xf32> -> vector<2x2xf32>
    %421 = tpu.concatenate %407, %419 in 1 : vector<2x1xf32>, vector<2x1xf32> -> vector<2x2xf32>
    %422 = math.exp %420 : vector<2x2xf32>
    %423 = vector.broadcast %334 : vector<2x1xf32> to vector<2x2xf32>
    %424 = arith.mulf %422, %423 : vector<2x2xf32>
    %425 = vector.extract_strided_slice %424 {offsets = [0, 0], sizes = [1, 2], strides = [1, 1]} : vector<2x2xf32> to vector<1x2xf32>
    %426 = vector.extract_strided_slice %424 {offsets = [1, 0], sizes = [1, 2], strides = [1, 1]} : vector<2x2xf32> to vector<1x2xf32>
    %427 = tpu.concatenate %425, %426 in 1 : vector<1x2xf32>, vector<1x2xf32> -> vector<1x4xf32>
    %428 = vector.extract_strided_slice %421 {offsets = [0, 0], sizes = [1, 2], strides = [1, 1]} : vector<2x2xf32> to vector<1x2xf32>
    %429 = vector.extract_strided_slice %421 {offsets = [1, 0], sizes = [1, 2], strides = [1, 1]} : vector<2x2xf32> to vector<1x2xf32>
    %430 = tpu.concatenate %428, %429 in 1 : vector<1x2xf32>, vector<1x2xf32> -> vector<1x4xf32>
    %cst_87 = arith.constant dense<0xFF800000> : vector<1xf32>
    %431 = vector.multi_reduction <maximumf>, %427, %cst_87 [1] : vector<1x4xf32> to vector<1xf32>
    %432 = vector.shape_cast %431 : vector<1xf32> to vector<1x1xf32>
    %433 = vector.broadcast %432 : vector<1x1xf32> to vector<1x4xf32>
    %434 = arith.cmpf oeq, %427, %433 : vector<1x4xf32>
    %cst_88 = arith.constant 4.000000e+00 : f32
    %435 = vector.broadcast %cst_88 : f32 to vector<1x4xf32>
    %436 = arith.select %434, %2, %435 : vector<1x4xi1>, vector<1x4xf32>
    %cst_89 = arith.constant dense<0x7F800000> : vector<1xf32>
    %437 = vector.multi_reduction <minimumf>, %436, %cst_89 [1] : vector<1x4xf32> to vector<1xf32>
    %438 = vector.shape_cast %437 : vector<1xf32> to vector<1x1xf32>
    %439 = vector.broadcast %438 : vector<1x1xf32> to vector<1x4xf32>
    %440 = arith.cmpf oeq, %2, %439 : vector<1x4xf32>
    %441 = arith.extui %440 : vector<1x4xi1> to vector<1x4xi32>
    %442 = arith.sitofp %441 : vector<1x4xi32> to vector<1x4xf32>
    %cst_90 = arith.constant 5.000000e-01 : f32
    %443 = vector.broadcast %cst_90 : f32 to vector<1x1xf32>
    %444 = arith.mulf %438, %443 : vector<1x1xf32>
    %445 = math.floor %444 : vector<1x1xf32>
    %446 = vector.broadcast %445 : vector<1x1xf32> to vector<1x2xf32>
    %447 = arith.cmpf oeq, %3, %446 : vector<1x2xf32>
    %448 = arith.extui %447 : vector<1x2xi1> to vector<1x2xi32>
    %449 = arith.sitofp %448 : vector<1x2xi32> to vector<1x2xf32>
    %450 = arith.mulf %442, %430 : vector<1x4xf32>
    %cst_91 = arith.constant dense<0.000000e+00> : vector<1xf32>
    %451 = vector.multi_reduction <add>, %450, %cst_91 [1] : vector<1x4xf32> to vector<1xf32>
    %452 = vector.shape_cast %451 : vector<1xf32> to vector<1x1xf32>
    %cst_92 = arith.constant 0.000000e+00 : f32
    %453 = vector.broadcast %cst_92 : f32 to vector<1x4xf32>
    %454 = arith.cmpf ogt, %442, %453 : vector<1x4xf32>
    %cst_93 = arith.constant 0xFF800000 : f32
    %455 = vector.broadcast %cst_93 : f32 to vector<1x4xf32>
    %456 = arith.select %454, %455, %427 : vector<1x4xi1>, vector<1x4xf32>
    %cst_94 = arith.constant dense<0xFF800000> : vector<1xf32>
    %457 = vector.multi_reduction <maximumf>, %456, %cst_94 [1] : vector<1x4xf32> to vector<1xf32>
    %458 = vector.shape_cast %457 : vector<1xf32> to vector<1x1xf32>
    %459 = vector.broadcast %458 : vector<1x1xf32> to vector<1x4xf32>
    %460 = arith.cmpf oeq, %456, %459 : vector<1x4xf32>
    %cst_95 = arith.constant 4.000000e+00 : f32
    %461 = vector.broadcast %cst_95 : f32 to vector<1x4xf32>
    %462 = arith.select %460, %2, %461 : vector<1x4xi1>, vector<1x4xf32>
    %cst_96 = arith.constant dense<0x7F800000> : vector<1xf32>
    %463 = vector.multi_reduction <minimumf>, %462, %cst_96 [1] : vector<1x4xf32> to vector<1xf32>
    %464 = vector.shape_cast %463 : vector<1xf32> to vector<1x1xf32>
    %465 = vector.broadcast %464 : vector<1x1xf32> to vector<1x4xf32>
    %466 = arith.cmpf oeq, %2, %465 : vector<1x4xf32>
    %467 = arith.extui %466 : vector<1x4xi1> to vector<1x4xi32>
    %468 = arith.sitofp %467 : vector<1x4xi32> to vector<1x4xf32>
    %cst_97 = arith.constant 5.000000e-01 : f32
    %469 = vector.broadcast %cst_97 : f32 to vector<1x1xf32>
    %470 = arith.mulf %464, %469 : vector<1x1xf32>
    %471 = math.floor %470 : vector<1x1xf32>
    %472 = vector.broadcast %471 : vector<1x1xf32> to vector<1x2xf32>
    %473 = arith.cmpf oeq, %3, %472 : vector<1x2xf32>
    %474 = arith.extui %473 : vector<1x2xi1> to vector<1x2xi32>
    %475 = arith.sitofp %474 : vector<1x2xi32> to vector<1x2xf32>
    %476 = arith.mulf %468, %430 : vector<1x4xf32>
    %cst_98 = arith.constant dense<0.000000e+00> : vector<1xf32>
    %477 = vector.multi_reduction <add>, %476, %cst_98 [1] : vector<1x4xf32> to vector<1xf32>
    %478 = vector.shape_cast %477 : vector<1xf32> to vector<1x1xf32>
    %479 = tpu.concatenate %449, %475 in 0 : vector<1x2xf32>, vector<1x2xf32> -> vector<2x2xf32>
    %480 = tpu.concatenate %432, %458 in 0 : vector<1x1xf32>, vector<1x1xf32> -> vector<2x1xf32>
    %481 = tpu.concatenate %452, %478 in 0 : vector<1x1xf32>, vector<1x1xf32> -> vector<2x1xf32>
    %482 = vector.extract_strided_slice %479 {offsets = [0, 0], sizes = [2, 1], strides = [1, 1]} : vector<2x2xf32> to vector<2x1xf32>
    %483 = vector.extract_strided_slice %333 {offsets = [0, 0], sizes = [1, 128], strides = [1, 1]} : vector<2x128xf32> to vector<1x128xf32>
    %484 = vector.broadcast %482 : vector<2x1xf32> to vector<2x128xf32>
    %485 = vector.broadcast %483 : vector<1x128xf32> to vector<2x128xf32>
    %486 = arith.mulf %484, %485 : vector<2x128xf32>
    %487 = vector.extract_strided_slice %479 {offsets = [0, 0], sizes = [2, 1], strides = [1, 1]} : vector<2x2xf32> to vector<2x1xf32>
    %488 = vector.extract_strided_slice %385 {offsets = [0, 0], sizes = [1, 32], strides = [1, 1]} : vector<2x32xf32> to vector<1x32xf32>
    %489 = vector.broadcast %487 : vector<2x1xf32> to vector<2x32xf32>
    %490 = vector.broadcast %488 : vector<1x32xf32> to vector<2x32xf32>
    %491 = arith.mulf %489, %490 : vector<2x32xf32>
    %492 = vector.extract_strided_slice %479 {offsets = [0, 1], sizes = [2, 1], strides = [1, 1]} : vector<2x2xf32> to vector<2x1xf32>
    %493 = vector.extract_strided_slice %333 {offsets = [1, 0], sizes = [1, 128], strides = [1, 1]} : vector<2x128xf32> to vector<1x128xf32>
    %494 = vector.broadcast %492 : vector<2x1xf32> to vector<2x128xf32>
    %495 = vector.broadcast %493 : vector<1x128xf32> to vector<2x128xf32>
    %496 = arith.mulf %494, %495 : vector<2x128xf32>
    %497 = arith.addf %486, %496 : vector<2x128xf32>
    %498 = vector.extract_strided_slice %479 {offsets = [0, 1], sizes = [2, 1], strides = [1, 1]} : vector<2x2xf32> to vector<2x1xf32>
    %499 = vector.extract_strided_slice %385 {offsets = [1, 0], sizes = [1, 32], strides = [1, 1]} : vector<2x32xf32> to vector<1x32xf32>
    %500 = vector.broadcast %498 : vector<2x1xf32> to vector<2x32xf32>
    %501 = vector.broadcast %499 : vector<1x32xf32> to vector<2x32xf32>
    %502 = arith.mulf %500, %501 : vector<2x32xf32>
    %503 = arith.addf %491, %502 : vector<2x32xf32>
    %cst_99 = arith.constant 2.000000e+00 : f32
    %504 = vector.broadcast %cst_99 : f32 to vector<2x128xf32>
    %505 = arith.cmpf oeq, %1, %504 : vector<2x128xf32>
    %506 = vector.shape_cast %481 : vector<2x1xf32> to vector<2x1xf32>
    %507 = vector.broadcast %506 : vector<2x1xf32> to vector<2x128xf32>
    %508 = arith.select %505, %507, %497 : vector<2x128xi1>, vector<2x128xf32>
    %509 = vector.extract_strided_slice %508 {offsets = [0, 2], sizes = [2, 1], strides = [1, 1]} : vector<2x128xf32> to vector<2x1xf32>
    %510 = vector.broadcast %509 : vector<2x1xf32> to vector<2x128xf32>
    %511 = arith.cmpf oeq, %1, %510 : vector<2x128xf32>
    %512 = arith.extui %511 : vector<2x128xi1> to vector<2x128xi32>
    %513 = arith.sitofp %512 : vector<2x128xi32> to vector<2x128xf32>
    %cst_100 = arith.constant dense<0.000000e+00> : vector<2x32xf32>
    %514 = tpu.matmul %513, %10, %cst_100 {dimension_numbers = #tpu.dot_dimension_numbers<[1], [0], [0], [1], [0, 0, 1, 1], [], []>} : vector<2x128xf32>, vector<128x32xf32>, vector<2x32xf32> -> vector<2x32xf32>
    %cst_101 = arith.constant dense<0.000000e+00> : vector<2x8xf32>
    %515 = tpu.matmul %503, %242, %cst_101 {dimension_numbers = #tpu.dot_dimension_numbers<[1], [1], [0], [0], [0, 0, 1, 0], [], []>} : vector<2x32xf32>, vector<8x32xf32>, vector<2x8xf32> -> vector<2x8xf32>
    %cst_102 = arith.constant dense<0xFF800000> : vector<2xf32>
    %516 = vector.multi_reduction <maximumf>, %515, %cst_102 [1] : vector<2x8xf32> to vector<2xf32>
    %517 = vector.shape_cast %516 : vector<2xf32> to vector<2x1xf32>
    %518 = vector.broadcast %517 : vector<2x1xf32> to vector<2x8xf32>
    %519 = arith.subf %515, %518 : vector<2x8xf32>
    %520 = math.exp %519 : vector<2x8xf32>
    %cst_103 = arith.constant dense<0.000000e+00> : vector<2xf32>
    %521 = vector.multi_reduction <add>, %520, %cst_103 [1] : vector<2x8xf32> to vector<2xf32>
    %522 = vector.shape_cast %521 : vector<2xf32> to vector<2x1xf32>
    %523 = vector.broadcast %522 : vector<2x1xf32> to vector<2x8xf32>
    %524 = arith.divf %520, %523 : vector<2x8xf32>
    %cst_104 = arith.constant dense<0.000000e+00> : vector<2x32xf32>
    %525 = tpu.matmul %524, %242, %cst_104 {dimension_numbers = #tpu.dot_dimension_numbers<[1], [0], [0], [1], [0, 0, 1, 1], [], []>} : vector<2x8xf32>, vector<8x32xf32>, vector<2x32xf32> -> vector<2x32xf32>
    %526 = tpu.concatenate %514, %525 in 1 : vector<2x32xf32>, vector<2x32xf32> -> vector<2x64xf32>
    %cst_105 = arith.constant dense<0.000000e+00> : vector<2x96xf32>
    %527 = tpu.matmul %526, %7, %cst_105 {dimension_numbers = #tpu.dot_dimension_numbers<[1], [0], [0], [1], [0, 0, 1, 1], [], []>} : vector<2x64xf32>, vector<64x96xf32>, vector<2x96xf32> -> vector<2x96xf32>
    %528 = vector.broadcast %9 : vector<1x96xf32> to vector<2x96xf32>
    %529 = arith.addf %527, %528 : vector<2x96xf32>
    %cst_106 = arith.constant dense<0.000000e+00> : vector<2x96xf32>
    %530 = tpu.matmul %503, %8, %cst_106 {dimension_numbers = #tpu.dot_dimension_numbers<[1], [0], [0], [1], [0, 0, 1, 1], [], []>} : vector<2x32xf32>, vector<32x96xf32>, vector<2x96xf32> -> vector<2x96xf32>
    %531 = vector.extract_strided_slice %529 {offsets = [0, 0], sizes = [2, 32], strides = [1, 1]} : vector<2x96xf32> to vector<2x32xf32>
    %532 = vector.extract_strided_slice %530 {offsets = [0, 0], sizes = [2, 32], strides = [1, 1]} : vector<2x96xf32> to vector<2x32xf32>
    %533 = arith.addf %531, %532 : vector<2x32xf32>
    %534 = arith.negf %533 : vector<2x32xf32>
    %535 = math.exp %534 : vector<2x32xf32>
    %cst_107 = arith.constant 1.000000e+00 : f32
    %536 = vector.broadcast %cst_107 : f32 to vector<2x32xf32>
    %537 = arith.addf %536, %535 : vector<2x32xf32>
    %538 = arith.divf %536, %537 : vector<2x32xf32>
    %539 = vector.extract_strided_slice %529 {offsets = [0, 32], sizes = [2, 32], strides = [1, 1]} : vector<2x96xf32> to vector<2x32xf32>
    %540 = vector.extract_strided_slice %530 {offsets = [0, 32], sizes = [2, 32], strides = [1, 1]} : vector<2x96xf32> to vector<2x32xf32>
    %541 = arith.addf %539, %540 : vector<2x32xf32>
    %542 = arith.negf %541 : vector<2x32xf32>
    %543 = math.exp %542 : vector<2x32xf32>
    %cst_108 = arith.constant 1.000000e+00 : f32
    %544 = vector.broadcast %cst_108 : f32 to vector<2x32xf32>
    %545 = arith.addf %544, %543 : vector<2x32xf32>
    %546 = arith.divf %544, %545 : vector<2x32xf32>
    %547 = vector.extract_strided_slice %529 {offsets = [0, 64], sizes = [2, 32], strides = [1, 1]} : vector<2x96xf32> to vector<2x32xf32>
    %548 = vector.extract_strided_slice %530 {offsets = [0, 64], sizes = [2, 32], strides = [1, 1]} : vector<2x96xf32> to vector<2x32xf32>
    %549 = arith.mulf %538, %548 : vector<2x32xf32>
    %550 = arith.addf %547, %549 : vector<2x32xf32>
    %551 = math.tanh %550 : vector<2x32xf32>
    %cst_109 = arith.constant 1.000000e+00 : f32
    %552 = vector.broadcast %cst_109 : f32 to vector<2x32xf32>
    %553 = arith.subf %552, %546 : vector<2x32xf32>
    %554 = arith.mulf %553, %551 : vector<2x32xf32>
    %555 = arith.mulf %546, %503 : vector<2x32xf32>
    %556 = arith.addf %554, %555 : vector<2x32xf32>
    %cst_110 = arith.constant dense<0.000000e+00> : vector<2x128xf32>
    %557 = tpu.matmul %556, %11, %cst_110 {dimension_numbers = #tpu.dot_dimension_numbers<[1], [0], [0], [1], [0, 0, 1, 1], [], []>} : vector<2x32xf32>, vector<32x128xf32>, vector<2x128xf32> -> vector<2x128xf32>
    %558 = vector.broadcast %12 : vector<1x128xf32> to vector<2x128xf32>
    %559 = arith.addf %557, %558 : vector<2x128xf32>
    %cst_111 = arith.constant dense<0xFF800000> : vector<2xf32>
    %560 = vector.multi_reduction <maximumf>, %559, %cst_111 [1] : vector<2x128xf32> to vector<2xf32>
    %561 = vector.shape_cast %560 : vector<2xf32> to vector<2x1xf32>
    %562 = vector.broadcast %561 : vector<2x1xf32> to vector<2x128xf32>
    %563 = arith.subf %559, %562 : vector<2x128xf32>
    %564 = math.exp %563 : vector<2x128xf32>
    %cst_112 = arith.constant dense<0.000000e+00> : vector<2xf32>
    %565 = vector.multi_reduction <add>, %564, %cst_112 [1] : vector<2x128xf32> to vector<2xf32>
    %566 = vector.shape_cast %565 : vector<2xf32> to vector<2x1xf32>
    %567 = math.log %566 : vector<2x1xf32>
    %568 = arith.addf %567, %561 : vector<2x1xf32>
    %569 = vector.broadcast %568 : vector<2x1xf32> to vector<2x128xf32>
    %570 = arith.subf %559, %569 : vector<2x128xf32>
    %cst_113 = arith.constant dense<0xFF800000> : vector<2xf32>
    %571 = vector.multi_reduction <maximumf>, %570, %cst_113 [1] : vector<2x128xf32> to vector<2xf32>
    %572 = vector.shape_cast %571 : vector<2xf32> to vector<2x1xf32>
    %573 = vector.broadcast %572 : vector<2x1xf32> to vector<2x128xf32>
    %574 = arith.cmpf oeq, %570, %573 : vector<2x128xf32>
    %cst_114 = arith.constant 1.280000e+02 : f32
    %575 = vector.broadcast %cst_114 : f32 to vector<2x128xf32>
    %576 = arith.select %574, %1, %575 : vector<2x128xi1>, vector<2x128xf32>
    %cst_115 = arith.constant dense<0x7F800000> : vector<2xf32>
    %577 = vector.multi_reduction <minimumf>, %576, %cst_115 [1] : vector<2x128xf32> to vector<2xf32>
    %578 = vector.shape_cast %577 : vector<2xf32> to vector<2x1xf32>
    %579 = vector.broadcast %578 : vector<2x1xf32> to vector<2x128xf32>
    %580 = arith.cmpf oeq, %1, %579 : vector<2x128xf32>
    %cst_116 = arith.constant 0xFF800000 : f32
    %581 = vector.broadcast %cst_116 : f32 to vector<2x128xf32>
    %582 = arith.select %580, %581, %570 : vector<2x128xi1>, vector<2x128xf32>
    %cst_117 = arith.constant dense<0xFF800000> : vector<2xf32>
    %583 = vector.multi_reduction <maximumf>, %582, %cst_117 [1] : vector<2x128xf32> to vector<2xf32>
    %584 = vector.shape_cast %583 : vector<2xf32> to vector<2x1xf32>
    %585 = vector.broadcast %584 : vector<2x1xf32> to vector<2x128xf32>
    %586 = arith.cmpf oeq, %582, %585 : vector<2x128xf32>
    %cst_118 = arith.constant 1.280000e+02 : f32
    %587 = vector.broadcast %cst_118 : f32 to vector<2x128xf32>
    %588 = arith.select %586, %1, %587 : vector<2x128xi1>, vector<2x128xf32>
    %cst_119 = arith.constant dense<0x7F800000> : vector<2xf32>
    %589 = vector.multi_reduction <minimumf>, %588, %cst_119 [1] : vector<2x128xf32> to vector<2xf32>
    %590 = vector.shape_cast %589 : vector<2xf32> to vector<2x1xf32>
    %591 = tpu.concatenate %572, %584 in 1 : vector<2x1xf32>, vector<2x1xf32> -> vector<2x2xf32>
    %592 = tpu.concatenate %578, %590 in 1 : vector<2x1xf32>, vector<2x1xf32> -> vector<2x2xf32>
    %593 = math.exp %591 : vector<2x2xf32>
    %594 = vector.broadcast %480 : vector<2x1xf32> to vector<2x2xf32>
    %595 = arith.mulf %593, %594 : vector<2x2xf32>
    %596 = vector.extract_strided_slice %595 {offsets = [0, 0], sizes = [1, 2], strides = [1, 1]} : vector<2x2xf32> to vector<1x2xf32>
    %597 = vector.extract_strided_slice %595 {offsets = [1, 0], sizes = [1, 2], strides = [1, 1]} : vector<2x2xf32> to vector<1x2xf32>
    %598 = tpu.concatenate %596, %597 in 1 : vector<1x2xf32>, vector<1x2xf32> -> vector<1x4xf32>
    %599 = vector.extract_strided_slice %592 {offsets = [0, 0], sizes = [1, 2], strides = [1, 1]} : vector<2x2xf32> to vector<1x2xf32>
    %600 = vector.extract_strided_slice %592 {offsets = [1, 0], sizes = [1, 2], strides = [1, 1]} : vector<2x2xf32> to vector<1x2xf32>
    %601 = tpu.concatenate %599, %600 in 1 : vector<1x2xf32>, vector<1x2xf32> -> vector<1x4xf32>
    %cst_120 = arith.constant dense<0xFF800000> : vector<1xf32>
    %602 = vector.multi_reduction <maximumf>, %598, %cst_120 [1] : vector<1x4xf32> to vector<1xf32>
    %603 = vector.shape_cast %602 : vector<1xf32> to vector<1x1xf32>
    %604 = vector.broadcast %603 : vector<1x1xf32> to vector<1x4xf32>
    %605 = arith.cmpf oeq, %598, %604 : vector<1x4xf32>
    %cst_121 = arith.constant 4.000000e+00 : f32
    %606 = vector.broadcast %cst_121 : f32 to vector<1x4xf32>
    %607 = arith.select %605, %2, %606 : vector<1x4xi1>, vector<1x4xf32>
    %cst_122 = arith.constant dense<0x7F800000> : vector<1xf32>
    %608 = vector.multi_reduction <minimumf>, %607, %cst_122 [1] : vector<1x4xf32> to vector<1xf32>
    %609 = vector.shape_cast %608 : vector<1xf32> to vector<1x1xf32>
    %610 = vector.broadcast %609 : vector<1x1xf32> to vector<1x4xf32>
    %611 = arith.cmpf oeq, %2, %610 : vector<1x4xf32>
    %612 = arith.extui %611 : vector<1x4xi1> to vector<1x4xi32>
    %613 = arith.sitofp %612 : vector<1x4xi32> to vector<1x4xf32>
    %cst_123 = arith.constant 5.000000e-01 : f32
    %614 = vector.broadcast %cst_123 : f32 to vector<1x1xf32>
    %615 = arith.mulf %609, %614 : vector<1x1xf32>
    %616 = math.floor %615 : vector<1x1xf32>
    %617 = vector.broadcast %616 : vector<1x1xf32> to vector<1x2xf32>
    %618 = arith.cmpf oeq, %3, %617 : vector<1x2xf32>
    %619 = arith.extui %618 : vector<1x2xi1> to vector<1x2xi32>
    %620 = arith.sitofp %619 : vector<1x2xi32> to vector<1x2xf32>
    %621 = arith.mulf %613, %601 : vector<1x4xf32>
    %cst_124 = arith.constant dense<0.000000e+00> : vector<1xf32>
    %622 = vector.multi_reduction <add>, %621, %cst_124 [1] : vector<1x4xf32> to vector<1xf32>
    %623 = vector.shape_cast %622 : vector<1xf32> to vector<1x1xf32>
    %cst_125 = arith.constant 0.000000e+00 : f32
    %624 = vector.broadcast %cst_125 : f32 to vector<1x4xf32>
    %625 = arith.cmpf ogt, %613, %624 : vector<1x4xf32>
    %cst_126 = arith.constant 0xFF800000 : f32
    %626 = vector.broadcast %cst_126 : f32 to vector<1x4xf32>
    %627 = arith.select %625, %626, %598 : vector<1x4xi1>, vector<1x4xf32>
    %cst_127 = arith.constant dense<0xFF800000> : vector<1xf32>
    %628 = vector.multi_reduction <maximumf>, %627, %cst_127 [1] : vector<1x4xf32> to vector<1xf32>
    %629 = vector.shape_cast %628 : vector<1xf32> to vector<1x1xf32>
    %630 = vector.broadcast %629 : vector<1x1xf32> to vector<1x4xf32>
    %631 = arith.cmpf oeq, %627, %630 : vector<1x4xf32>
    %cst_128 = arith.constant 4.000000e+00 : f32
    %632 = vector.broadcast %cst_128 : f32 to vector<1x4xf32>
    %633 = arith.select %631, %2, %632 : vector<1x4xi1>, vector<1x4xf32>
    %cst_129 = arith.constant dense<0x7F800000> : vector<1xf32>
    %634 = vector.multi_reduction <minimumf>, %633, %cst_129 [1] : vector<1x4xf32> to vector<1xf32>
    %635 = vector.shape_cast %634 : vector<1xf32> to vector<1x1xf32>
    %636 = vector.broadcast %635 : vector<1x1xf32> to vector<1x4xf32>
    %637 = arith.cmpf oeq, %2, %636 : vector<1x4xf32>
    %638 = arith.extui %637 : vector<1x4xi1> to vector<1x4xi32>
    %639 = arith.sitofp %638 : vector<1x4xi32> to vector<1x4xf32>
    %cst_130 = arith.constant 5.000000e-01 : f32
    %640 = vector.broadcast %cst_130 : f32 to vector<1x1xf32>
    %641 = arith.mulf %635, %640 : vector<1x1xf32>
    %642 = math.floor %641 : vector<1x1xf32>
    %643 = vector.broadcast %642 : vector<1x1xf32> to vector<1x2xf32>
    %644 = arith.cmpf oeq, %3, %643 : vector<1x2xf32>
    %645 = arith.extui %644 : vector<1x2xi1> to vector<1x2xi32>
    %646 = arith.sitofp %645 : vector<1x2xi32> to vector<1x2xf32>
    %647 = arith.mulf %639, %601 : vector<1x4xf32>
    %cst_131 = arith.constant dense<0.000000e+00> : vector<1xf32>
    %648 = vector.multi_reduction <add>, %647, %cst_131 [1] : vector<1x4xf32> to vector<1xf32>
    %649 = vector.shape_cast %648 : vector<1xf32> to vector<1x1xf32>
    %650 = tpu.concatenate %620, %646 in 0 : vector<1x2xf32>, vector<1x2xf32> -> vector<2x2xf32>
    %651 = tpu.concatenate %603, %629 in 0 : vector<1x1xf32>, vector<1x1xf32> -> vector<2x1xf32>
    %652 = tpu.concatenate %623, %649 in 0 : vector<1x1xf32>, vector<1x1xf32> -> vector<2x1xf32>
    %653 = vector.extract_strided_slice %650 {offsets = [0, 0], sizes = [2, 1], strides = [1, 1]} : vector<2x2xf32> to vector<2x1xf32>
    %654 = vector.extract_strided_slice %508 {offsets = [0, 0], sizes = [1, 128], strides = [1, 1]} : vector<2x128xf32> to vector<1x128xf32>
    %655 = vector.broadcast %653 : vector<2x1xf32> to vector<2x128xf32>
    %656 = vector.broadcast %654 : vector<1x128xf32> to vector<2x128xf32>
    %657 = arith.mulf %655, %656 : vector<2x128xf32>
    %658 = vector.extract_strided_slice %650 {offsets = [0, 0], sizes = [2, 1], strides = [1, 1]} : vector<2x2xf32> to vector<2x1xf32>
    %659 = vector.extract_strided_slice %556 {offsets = [0, 0], sizes = [1, 32], strides = [1, 1]} : vector<2x32xf32> to vector<1x32xf32>
    %660 = vector.broadcast %658 : vector<2x1xf32> to vector<2x32xf32>
    %661 = vector.broadcast %659 : vector<1x32xf32> to vector<2x32xf32>
    %662 = arith.mulf %660, %661 : vector<2x32xf32>
    %663 = vector.extract_strided_slice %650 {offsets = [0, 1], sizes = [2, 1], strides = [1, 1]} : vector<2x2xf32> to vector<2x1xf32>
    %664 = vector.extract_strided_slice %508 {offsets = [1, 0], sizes = [1, 128], strides = [1, 1]} : vector<2x128xf32> to vector<1x128xf32>
    %665 = vector.broadcast %663 : vector<2x1xf32> to vector<2x128xf32>
    %666 = vector.broadcast %664 : vector<1x128xf32> to vector<2x128xf32>
    %667 = arith.mulf %665, %666 : vector<2x128xf32>
    %668 = arith.addf %657, %667 : vector<2x128xf32>
    %669 = vector.extract_strided_slice %650 {offsets = [0, 1], sizes = [2, 1], strides = [1, 1]} : vector<2x2xf32> to vector<2x1xf32>
    %670 = vector.extract_strided_slice %556 {offsets = [1, 0], sizes = [1, 32], strides = [1, 1]} : vector<2x32xf32> to vector<1x32xf32>
    %671 = vector.broadcast %669 : vector<2x1xf32> to vector<2x32xf32>
    %672 = vector.broadcast %670 : vector<1x32xf32> to vector<2x32xf32>
    %673 = arith.mulf %671, %672 : vector<2x32xf32>
    %674 = arith.addf %662, %673 : vector<2x32xf32>
    %cst_132 = arith.constant 3.000000e+00 : f32
    %675 = vector.broadcast %cst_132 : f32 to vector<2x128xf32>
    %676 = arith.cmpf oeq, %1, %675 : vector<2x128xf32>
    %677 = vector.shape_cast %652 : vector<2x1xf32> to vector<2x1xf32>
    %678 = vector.broadcast %677 : vector<2x1xf32> to vector<2x128xf32>
    %679 = arith.select %676, %678, %668 : vector<2x128xi1>, vector<2x128xf32>
    %680 = vector.extract_strided_slice %679 {offsets = [0, 3], sizes = [2, 1], strides = [1, 1]} : vector<2x128xf32> to vector<2x1xf32>
    %681 = vector.broadcast %680 : vector<2x1xf32> to vector<2x128xf32>
    %682 = arith.cmpf oeq, %1, %681 : vector<2x128xf32>
    %683 = arith.extui %682 : vector<2x128xi1> to vector<2x128xi32>
    %684 = arith.sitofp %683 : vector<2x128xi32> to vector<2x128xf32>
    %cst_133 = arith.constant dense<0.000000e+00> : vector<2x32xf32>
    %685 = tpu.matmul %684, %10, %cst_133 {dimension_numbers = #tpu.dot_dimension_numbers<[1], [0], [0], [1], [0, 0, 1, 1], [], []>} : vector<2x128xf32>, vector<128x32xf32>, vector<2x32xf32> -> vector<2x32xf32>
    %cst_134 = arith.constant dense<0.000000e+00> : vector<2x8xf32>
    %686 = tpu.matmul %674, %242, %cst_134 {dimension_numbers = #tpu.dot_dimension_numbers<[1], [1], [0], [0], [0, 0, 1, 0], [], []>} : vector<2x32xf32>, vector<8x32xf32>, vector<2x8xf32> -> vector<2x8xf32>
    %cst_135 = arith.constant dense<0xFF800000> : vector<2xf32>
    %687 = vector.multi_reduction <maximumf>, %686, %cst_135 [1] : vector<2x8xf32> to vector<2xf32>
    %688 = vector.shape_cast %687 : vector<2xf32> to vector<2x1xf32>
    %689 = vector.broadcast %688 : vector<2x1xf32> to vector<2x8xf32>
    %690 = arith.subf %686, %689 : vector<2x8xf32>
    %691 = math.exp %690 : vector<2x8xf32>
    %cst_136 = arith.constant dense<0.000000e+00> : vector<2xf32>
    %692 = vector.multi_reduction <add>, %691, %cst_136 [1] : vector<2x8xf32> to vector<2xf32>
    %693 = vector.shape_cast %692 : vector<2xf32> to vector<2x1xf32>
    %694 = vector.broadcast %693 : vector<2x1xf32> to vector<2x8xf32>
    %695 = arith.divf %691, %694 : vector<2x8xf32>
    %cst_137 = arith.constant dense<0.000000e+00> : vector<2x32xf32>
    %696 = tpu.matmul %695, %242, %cst_137 {dimension_numbers = #tpu.dot_dimension_numbers<[1], [0], [0], [1], [0, 0, 1, 1], [], []>} : vector<2x8xf32>, vector<8x32xf32>, vector<2x32xf32> -> vector<2x32xf32>
    %697 = tpu.concatenate %685, %696 in 1 : vector<2x32xf32>, vector<2x32xf32> -> vector<2x64xf32>
    %cst_138 = arith.constant dense<0.000000e+00> : vector<2x96xf32>
    %698 = tpu.matmul %697, %7, %cst_138 {dimension_numbers = #tpu.dot_dimension_numbers<[1], [0], [0], [1], [0, 0, 1, 1], [], []>} : vector<2x64xf32>, vector<64x96xf32>, vector<2x96xf32> -> vector<2x96xf32>
    %699 = vector.broadcast %9 : vector<1x96xf32> to vector<2x96xf32>
    %700 = arith.addf %698, %699 : vector<2x96xf32>
    %cst_139 = arith.constant dense<0.000000e+00> : vector<2x96xf32>
    %701 = tpu.matmul %674, %8, %cst_139 {dimension_numbers = #tpu.dot_dimension_numbers<[1], [0], [0], [1], [0, 0, 1, 1], [], []>} : vector<2x32xf32>, vector<32x96xf32>, vector<2x96xf32> -> vector<2x96xf32>
    %702 = vector.extract_strided_slice %700 {offsets = [0, 0], sizes = [2, 32], strides = [1, 1]} : vector<2x96xf32> to vector<2x32xf32>
    %703 = vector.extract_strided_slice %701 {offsets = [0, 0], sizes = [2, 32], strides = [1, 1]} : vector<2x96xf32> to vector<2x32xf32>
    %704 = arith.addf %702, %703 : vector<2x32xf32>
    %705 = arith.negf %704 : vector<2x32xf32>
    %706 = math.exp %705 : vector<2x32xf32>
    %cst_140 = arith.constant 1.000000e+00 : f32
    %707 = vector.broadcast %cst_140 : f32 to vector<2x32xf32>
    %708 = arith.addf %707, %706 : vector<2x32xf32>
    %709 = arith.divf %707, %708 : vector<2x32xf32>
    %710 = vector.extract_strided_slice %700 {offsets = [0, 32], sizes = [2, 32], strides = [1, 1]} : vector<2x96xf32> to vector<2x32xf32>
    %711 = vector.extract_strided_slice %701 {offsets = [0, 32], sizes = [2, 32], strides = [1, 1]} : vector<2x96xf32> to vector<2x32xf32>
    %712 = arith.addf %710, %711 : vector<2x32xf32>
    %713 = arith.negf %712 : vector<2x32xf32>
    %714 = math.exp %713 : vector<2x32xf32>
    %cst_141 = arith.constant 1.000000e+00 : f32
    %715 = vector.broadcast %cst_141 : f32 to vector<2x32xf32>
    %716 = arith.addf %715, %714 : vector<2x32xf32>
    %717 = arith.divf %715, %716 : vector<2x32xf32>
    %718 = vector.extract_strided_slice %700 {offsets = [0, 64], sizes = [2, 32], strides = [1, 1]} : vector<2x96xf32> to vector<2x32xf32>
    %719 = vector.extract_strided_slice %701 {offsets = [0, 64], sizes = [2, 32], strides = [1, 1]} : vector<2x96xf32> to vector<2x32xf32>
    %720 = arith.mulf %709, %719 : vector<2x32xf32>
    %721 = arith.addf %718, %720 : vector<2x32xf32>
    %722 = math.tanh %721 : vector<2x32xf32>
    %cst_142 = arith.constant 1.000000e+00 : f32
    %723 = vector.broadcast %cst_142 : f32 to vector<2x32xf32>
    %724 = arith.subf %723, %717 : vector<2x32xf32>
    %725 = arith.mulf %724, %722 : vector<2x32xf32>
    %726 = arith.mulf %717, %674 : vector<2x32xf32>
    %727 = arith.addf %725, %726 : vector<2x32xf32>
    %cst_143 = arith.constant dense<0.000000e+00> : vector<2x128xf32>
    %728 = tpu.matmul %727, %11, %cst_143 {dimension_numbers = #tpu.dot_dimension_numbers<[1], [0], [0], [1], [0, 0, 1, 1], [], []>} : vector<2x32xf32>, vector<32x128xf32>, vector<2x128xf32> -> vector<2x128xf32>
    %729 = vector.broadcast %12 : vector<1x128xf32> to vector<2x128xf32>
    %730 = arith.addf %728, %729 : vector<2x128xf32>
    %cst_144 = arith.constant dense<0xFF800000> : vector<2xf32>
    %731 = vector.multi_reduction <maximumf>, %730, %cst_144 [1] : vector<2x128xf32> to vector<2xf32>
    %732 = vector.shape_cast %731 : vector<2xf32> to vector<2x1xf32>
    %733 = vector.broadcast %732 : vector<2x1xf32> to vector<2x128xf32>
    %734 = arith.subf %730, %733 : vector<2x128xf32>
    %735 = math.exp %734 : vector<2x128xf32>
    %cst_145 = arith.constant dense<0.000000e+00> : vector<2xf32>
    %736 = vector.multi_reduction <add>, %735, %cst_145 [1] : vector<2x128xf32> to vector<2xf32>
    %737 = vector.shape_cast %736 : vector<2xf32> to vector<2x1xf32>
    %738 = math.log %737 : vector<2x1xf32>
    %739 = arith.addf %738, %732 : vector<2x1xf32>
    %740 = vector.broadcast %739 : vector<2x1xf32> to vector<2x128xf32>
    %741 = arith.subf %730, %740 : vector<2x128xf32>
    %cst_146 = arith.constant dense<0xFF800000> : vector<2xf32>
    %742 = vector.multi_reduction <maximumf>, %741, %cst_146 [1] : vector<2x128xf32> to vector<2xf32>
    %743 = vector.shape_cast %742 : vector<2xf32> to vector<2x1xf32>
    %744 = vector.broadcast %743 : vector<2x1xf32> to vector<2x128xf32>
    %745 = arith.cmpf oeq, %741, %744 : vector<2x128xf32>
    %cst_147 = arith.constant 1.280000e+02 : f32
    %746 = vector.broadcast %cst_147 : f32 to vector<2x128xf32>
    %747 = arith.select %745, %1, %746 : vector<2x128xi1>, vector<2x128xf32>
    %cst_148 = arith.constant dense<0x7F800000> : vector<2xf32>
    %748 = vector.multi_reduction <minimumf>, %747, %cst_148 [1] : vector<2x128xf32> to vector<2xf32>
    %749 = vector.shape_cast %748 : vector<2xf32> to vector<2x1xf32>
    %750 = vector.broadcast %749 : vector<2x1xf32> to vector<2x128xf32>
    %751 = arith.cmpf oeq, %1, %750 : vector<2x128xf32>
    %cst_149 = arith.constant 0xFF800000 : f32
    %752 = vector.broadcast %cst_149 : f32 to vector<2x128xf32>
    %753 = arith.select %751, %752, %741 : vector<2x128xi1>, vector<2x128xf32>
    %cst_150 = arith.constant dense<0xFF800000> : vector<2xf32>
    %754 = vector.multi_reduction <maximumf>, %753, %cst_150 [1] : vector<2x128xf32> to vector<2xf32>
    %755 = vector.shape_cast %754 : vector<2xf32> to vector<2x1xf32>
    %756 = vector.broadcast %755 : vector<2x1xf32> to vector<2x128xf32>
    %757 = arith.cmpf oeq, %753, %756 : vector<2x128xf32>
    %cst_151 = arith.constant 1.280000e+02 : f32
    %758 = vector.broadcast %cst_151 : f32 to vector<2x128xf32>
    %759 = arith.select %757, %1, %758 : vector<2x128xi1>, vector<2x128xf32>
    %cst_152 = arith.constant dense<0x7F800000> : vector<2xf32>
    %760 = vector.multi_reduction <minimumf>, %759, %cst_152 [1] : vector<2x128xf32> to vector<2xf32>
    %761 = vector.shape_cast %760 : vector<2xf32> to vector<2x1xf32>
    %762 = tpu.concatenate %743, %755 in 1 : vector<2x1xf32>, vector<2x1xf32> -> vector<2x2xf32>
    %763 = math.exp %762 : vector<2x2xf32>
    %764 = vector.broadcast %651 : vector<2x1xf32> to vector<2x2xf32>
    %765 = arith.mulf %763, %764 : vector<2x2xf32>
    %766 = vector.extract_strided_slice %765 {offsets = [0, 0], sizes = [1, 2], strides = [1, 1]} : vector<2x2xf32> to vector<1x2xf32>
    %767 = vector.extract_strided_slice %765 {offsets = [1, 0], sizes = [1, 2], strides = [1, 1]} : vector<2x2xf32> to vector<1x2xf32>
    %768 = tpu.concatenate %766, %767 in 1 : vector<1x2xf32>, vector<1x2xf32> -> vector<1x4xf32>
    %769 = vector.extract_strided_slice %749 {offsets = [0, 0], sizes = [1, 1], strides = [1, 1]} : vector<2x1xf32> to vector<1x1xf32>
    %770 = vector.extract_strided_slice %761 {offsets = [0, 0], sizes = [1, 1], strides = [1, 1]} : vector<2x1xf32> to vector<1x1xf32>
    %771 = tpu.concatenate %769, %770 in 0 : vector<1x1xf32>, vector<1x1xf32> -> vector<2x1xf32>
    %cst_153 = arith.constant 4.000000e+00 : f32
    %772 = vector.broadcast %cst_153 : f32 to vector<2x128xf32>
    %773 = arith.cmpf oeq, %1, %772 : vector<2x128xf32>
    %774 = vector.extract_strided_slice %679 {offsets = [0, 0], sizes = [1, 128], strides = [1, 1]} : vector<2x128xf32> to vector<1x128xf32>
    %775 = vector.shape_cast %771 : vector<2x1xf32> to vector<2x1xf32>
    %776 = vector.broadcast %775 : vector<2x1xf32> to vector<2x128xf32>
    %777 = vector.shape_cast %774 : vector<1x128xf32> to vector<1x128xf32>
    %778 = vector.broadcast %777 : vector<1x128xf32> to vector<2x128xf32>
    %779 = arith.select %773, %776, %778 : vector<2x128xi1>, vector<2x128xf32>
    %cst_154 = arith.constant dense<0xFF800000> : vector<1xf32>
    %780 = vector.multi_reduction <maximumf>, %768, %cst_154 [1] : vector<1x4xf32> to vector<1xf32>
    %781 = vector.shape_cast %780 : vector<1xf32> to vector<1x1xf32>
    %782 = vector.broadcast %781 : vector<1x1xf32> to vector<1x4xf32>
    %783 = arith.cmpf oeq, %768, %782 : vector<1x4xf32>
    %cst_155 = arith.constant 4.000000e+00 : f32
    %784 = vector.broadcast %cst_155 : f32 to vector<1x4xf32>
    %785 = arith.select %783, %2, %784 : vector<1x4xi1>, vector<1x4xf32>
    %cst_156 = arith.constant dense<0x7F800000> : vector<1xf32>
    %786 = vector.multi_reduction <minimumf>, %785, %cst_156 [1] : vector<1x4xf32> to vector<1xf32>
    %787 = vector.shape_cast %786 : vector<1xf32> to vector<1x1xf32>
    %788 = vector.broadcast %787 : vector<1x1xf32> to vector<1x4xf32>
    %789 = arith.cmpf oeq, %2, %788 : vector<1x4xf32>
    %790 = arith.extui %789 : vector<1x4xi1> to vector<1x4xi32>
    %791 = arith.sitofp %790 : vector<1x4xi32> to vector<1x4xf32>
    %cst_157 = arith.constant 0.000000e+00 : f32
    %792 = vector.broadcast %cst_157 : f32 to vector<1x4xf32>
    %793 = arith.cmpf ogt, %791, %792 : vector<1x4xf32>
    %cst_158 = arith.constant 0xFF800000 : f32
    %794 = vector.broadcast %cst_158 : f32 to vector<1x4xf32>
    %795 = arith.select %793, %794, %768 : vector<1x4xi1>, vector<1x4xf32>
    %cst_159 = arith.constant dense<0xFF800000> : vector<1xf32>
    %796 = vector.multi_reduction <maximumf>, %795, %cst_159 [1] : vector<1x4xf32> to vector<1xf32>
    %797 = vector.shape_cast %796 : vector<1xf32> to vector<1x1xf32>
    %798 = tpu.concatenate %781, %797 in 0 : vector<1x1xf32>, vector<1x1xf32> -> vector<2x1xf32>
    %799 = vector.extract_strided_slice %798 {offsets = [0, 0], sizes = [1, 1], strides = [1, 1]} : vector<2x1xf32> to vector<1x1xf32>
    %800 = vector.extract_strided_slice %779 {offsets = [0, 0], sizes = [1, 128], strides = [1, 1]} : vector<2x128xf32> to vector<1x128xf32>
    %801 = vector.extract_strided_slice %798 {offsets = [1, 0], sizes = [1, 1], strides = [1, 1]} : vector<2x1xf32> to vector<1x1xf32>
    %802 = arith.cmpf ogt, %801, %799 : vector<1x1xf32>
    %803 = vector.extract_strided_slice %779 {offsets = [1, 0], sizes = [1, 128], strides = [1, 1]} : vector<2x128xf32> to vector<1x128xf32>
    %804 = vector.shape_cast %802 : vector<1x1xi1> to vector<1x1xi1>
    %805 = vector.broadcast %804 : vector<1x1xi1> to vector<1x128xi1>
    %806 = arith.select %805, %803, %800 : vector<1x128xi1>, vector<1x128xf32>
    %c0_160 = arith.constant 0 : index
    %c0_161 = arith.constant 0 : index
    %807 = vector.load %arg3[%c0_160, %c0_161] : memref<1x128xf32, #tpu.memory_space<vmem>>, vector<1x128xf32>
    tpu.vector_store %arg3[%c0_160, %c0_161], %806 {strides = array<i32>} : memref<1x128xf32, #tpu.memory_space<vmem>>, vector<1x128xf32>,
    return
  }
}

</mosaic_0001>

<llo_original>
// kernel: tpu_custom_call.1
$region0: #{tpu_custom_call.1}
  #allocation0 [shape = 'u32[]', space=smem, size = 0x4, offset = 0x4, fixed_abs, tag = 'smem constant byte address 0x4 - core index']
  #allocation1 [shape = 'u32[144,128]{1,0:T(1,128)}', space=vmem, size = 0x12000, scoped, tag = 'internal scratch']
  %s0 = inlined_call_operand.hbm [shape: f32[16,32], index: 0, kind: input, shape index: {}]
  %s1 = inlined_call_operand.hbm [shape: f32[176,96], index: 1, kind: input, shape index: {}]
  %s2 = inlined_call_operand.hbm [shape: f32[168,128], index: 2, kind: input, shape index: {}]
  %s3 = inlined_call_operand.hbm [shape: f32[1,128], index: 3, kind: output, shape index: {}]
  %s4 = sld [smem:[#allocation0]]
  $region34: #{tpu_custom_call.1} parent=0
    _
  %s6 = ssub.s32 1, %s4
  %s7 = scalar_select 0, %s6, %s4
  $region1: #{tpu_custom_call.1} parent=0
    #allocation2 [shape = 'u8[8192]{0}', space=vmem, size = 0x2000, scoped, tag = 'input window, operand 0, single buffered']
    #allocation3 [shape = 's32[1]{0}', space=sflag, size = 0x4, scoped, tag = 'scoped memory for tpu_custom_call.1']
    #allocation4 [shape = 's32[1]{0}', space=sflag, size = 0x4, scoped, tag = 'scoped memory for tpu_custom_call.1']
    #allocation5 [shape = 'u8[90112]{0}', space=vmem, size = 0x16000, scoped, tag = 'input window, operand 1, single buffered']
    #allocation6 [shape = 's32[1]{0}', space=sflag, size = 0x4, scoped, tag = 'scoped memory for tpu_custom_call.1']
    #allocation7 [shape = 'u8[86016]{0}', space=vmem, size = 0x15000, scoped, tag = 'input window, operand 2, single buffered']
    #allocation8 [shape = 'u8[512]{0}', space=vmem, size = 0x400, scoped, tag = 'output window, operand 0, single buffered']
    %8 = vsyncpa [#allocation3], 0
    %9 = vsyncpa [#allocation6], 0
    %10 = vsyncpa [#allocation4], 0
    // Predicated region
    $region2: #{tpu_custom_call.1} parent=1 // pred_check
      _
    $region3: #{tpu_custom_call.1} parent=1 // pred_check_branch
      %12 = sbr.rel (0) target = $region5
    $region4: #{tpu_custom_call.1} parent=1 // pred_region
      %s14 = ssub.s32 256, 256
      %15 = vsyncadd [#allocation3], %s14
      %s16 = sshll.u32 [#allocation2], 4
      %s17 = int_to_ptr.vmem [resolvable:$true] %s16
      %22 = dma.hbm_to_vmem [thread:$0]  %s0, 256, %s17, [#allocation3], 128, 128, 8
    $region5: #{tpu_custom_call.1} parent=1 // pred_fallthru
      _
    // Predicated region
    $region6: #{tpu_custom_call.1} parent=1 // pred_check
      _
    $region7: #{tpu_custom_call.1} parent=1 // pred_check_branch
      %24 = sbr.rel (0) target = $region9
    $region8: #{tpu_custom_call.1} parent=1 // pred_region
      %s26 = ssub.s32 2816, 2816
      %27 = vsyncadd [#allocation6], %s26
      %s28 = sshll.u32 [#allocation5], 4
      %s29 = int_to_ptr.vmem [resolvable:$true] %s28
      %34 = dma.hbm_to_vmem [thread:$0]  %s1, 2816, %s29, [#allocation6], 128, 128, 8
    $region9: #{tpu_custom_call.1} parent=1 // pred_fallthru
      _
    // Predicated region
    $region10: #{tpu_custom_call.1} parent=1 // pred_check
      _
    $region11: #{tpu_custom_call.1} parent=1 // pred_check_branch
      %36 = sbr.rel (0) target = $region13
    $region12: #{tpu_custom_call.1} parent=1 // pred_region
      %s38 = ssub.s32 2688, 2688
      %39 = vsyncadd [#allocation6], %s38
      %s40 = sshll.u32 [#allocation7], 4
      %s41 = int_to_ptr.vmem [resolvable:$true] %s40
      %46 = dma.hbm_to_vmem [thread:$0]  %s2, 2688, %s41, [#allocation6], 128, 128, 8
    $region13: #{tpu_custom_call.1} parent=1 // pred_fallthru
      _
    // Predicated region
    $region14: #{tpu_custom_call.1} parent=1 // pred_check
      _
    $region15: #{tpu_custom_call.1} parent=1 // pred_check_branch
      %48 = sbr.rel (0) target = $region17
    $region16: #{tpu_custom_call.1} parent=1 // pred_region
      %49 = dma.done [#allocation3], 256
    $region17: #{tpu_custom_call.1} parent=1 // pred_fallthru
      _
    // Predicated region
    $region18: #{tpu_custom_call.1} parent=1 // pred_check
      _
    $region19: #{tpu_custom_call.1} parent=1 // pred_check_branch
      %51 = sbr.rel (0) target = $region21
    $region20: #{tpu_custom_call.1} parent=1 // pred_region
      %52 = dma.done [#allocation6], 2816
    $region21: #{tpu_custom_call.1} parent=1 // pred_fallthru
      _
    // Predicated region
    $region22: #{tpu_custom_call.1} parent=1 // pred_check
      _
    $region23: #{tpu_custom_call.1} parent=1 // pred_check_branch
      %54 = sbr.rel (0) target = $region25
    $region24: #{tpu_custom_call.1} parent=1 // pred_region
      %55 = dma.done [#allocation6], 2688
    $region25: #{tpu_custom_call.1} parent=1 // pred_fallthru
      _
    %v56 = vlaneseq
    %v57 = vand.u32 %v56, 127
    %v58 = vcvt.s32.f32 %v57
    %v59 = vld [vmem:[#allocation5] sm:$0xff]
    %v60 = vld [vmem:[#allocation5 + $0x8] sm:$0xff]
    %v61 = vld [vmem:[#allocation5 + $0x10] sm:$0xff]
    %v62 = vld [vmem:[#allocation5 + $0x18] sm:$0xff]
    %v63 = vld [vmem:[#allocation5 + $0x20] sm:$0xff]
    %v64 = vld [vmem:[#allocation5 + $0x28] sm:$0xff]
    %v65 = vld [vmem:[#allocation5 + $0x30] sm:$0xff]
    %v66 = vld [vmem:[#allocation5 + $0x38] sm:$0xff]
    %v67 = vld [vmem:[#allocation5 + $0x40] sm:$0x1]
    %v68 = vld [vmem:[#allocation5 + $0x48] sm:$0xff]
    %v69 = vld [vmem:[#allocation5 + $0x50] sm:$0xff]
    %v70 = vld [vmem:[#allocation5 + $0x58] sm:$0xff]
    %v71 = vld [vmem:[#allocation5 + $0x60] sm:$0xff]
    %v72 = vld [vmem:[#allocation5 + $0x68] sm:$0xff]
    %v73 = vld [vmem:[#allocation5 + $0x70] sm:$0xff]
    %v74 = vld [vmem:[#allocation5 + $0x78] sm:$0xff]
    %v75 = vld [vmem:[#allocation5 + $0x80] sm:$0xff]
    %v76 = vld [vmem:[#allocation5 + $0x88] sm:$0xff]
    %v77 = vld [vmem:[#allocation5 + $0x90] sm:$0xff]
    %v78 = vld [vmem:[#allocation5 + $0x98] sm:$0xff]
    %v79 = vld [vmem:[#allocation5 + $0xa0] sm:$0xff]
    %v80 = vld [vmem:[#allocation5 + $0xa8] sm:$0x1]
    %v81 = vld [vmem:[#allocation7] sm:$0xff]
    %v82 = vld [vmem:[#allocation7 + $0x8] sm:$0xff]
    %v83 = vld [vmem:[#allocation7 + $0x10] sm:$0xff]
    %v84 = vld [vmem:[#allocation7 + $0x18] sm:$0xff]
    %v85 = vld [vmem:[#allocation7 + $0x20] sm:$0xff]
    %v86 = vld [vmem:[#allocation7 + $0x28] sm:$0xff]
    %v87 = vld [vmem:[#allocation7 + $0x30] sm:$0xff]
    %v88 = vld [vmem:[#allocation7 + $0x38] sm:$0xff]
    %v89 = vld [vmem:[#allocation7 + $0x40] sm:$0xff]
    %v90 = vld [vmem:[#allocation7 + $0x48] sm:$0xff]
    %v91 = vld [vmem:[#allocation7 + $0x50] sm:$0xff]
    %v92 = vld [vmem:[#allocation7 + $0x58] sm:$0xff]
    %v93 = vld [vmem:[#allocation7 + $0x60] sm:$0xff]
    %v94 = vld [vmem:[#allocation7 + $0x68] sm:$0xff]
    %v95 = vld [vmem:[#allocation7 + $0x70] sm:$0xff]
    %v96 = vld [vmem:[#allocation7 + $0x78] sm:$0xff]
    %v97 = vld [vmem:[#allocation7 + $0x80] sm:$0xff]
    %v98 = vld [vmem:[#allocation7 + $0x88] sm:$0xff]
    %v99 = vld [vmem:[#allocation7 + $0x90] sm:$0xff]
    %v100 = vld [vmem:[#allocation7 + $0x98] sm:$0xff]
    %v101 = vld [vmem:[#allocation7 + $0xa0] sm:$0x1]
    %v102 = vld [vmem:[#allocation2] sm:$0xff]
    %v103 = vlaneseq
    %v104 = vshrl.u32 %v103, 7
    %v105 = vsub.s32 0, %v104
    %v106 = vrot.slane %v67, %v105
    %vm107 = vcmask 261120
    %v109 = vsel %vm107, %v102, 0
    %111 = vmatprep.subr.mxu0 0.0
    %112 = vmatpush1.msra.mxu0 %v59
    %113 = vmatprep.subr.mxu0 0.0
    %114 = vmatpush1.msra.mxu0 %v60
    %115 = vmatprep.subr.mxu0 0.0
    %116 = vmatpush1.msra.mxu0 %v61
    %117 = vmatprep.subr.mxu0 0.0
    %118 = vmatpush1.msra.mxu0 %v62
    %119 = vmatprep.subr.mxu0 0.0
    %120 = vmatpush1.msra.mxu0 0.0
    %121 = vmatprep.subr.mxu0 0.0
    %122 = vmatpush1.msra.mxu0 0.0
    %123 = vmatprep.subr.mxu0 0.0
    %124 = vmatpush1.msra.mxu0 0.0
    %125 = vmatprep.subr.mxu0 0.0
    %126 = vmatpush1.msra.mxu0 0.0
    %127 = vmatprep.subr.mxu0 0.0
    %128 = vmatpush1.msra.mxu0 0.0
    %129 = vmatprep.subr.mxu0 0.0
    %130 = vmatpush1.msra.mxu0 0.0
    %131 = vmatprep.subr.mxu0 0.0
    %132 = vmatpush1.msra.mxu0 0.0
    %133 = vmatprep.subr.mxu0 0.0
    %134 = vmatpush1.msra.mxu0 0.0
    %135 = vmatprep.subr.mxu0 0.0
    %136 = vmatpush1.msra.mxu0 0.0
    %137 = vmatprep.subr.mxu0 0.0
    %138 = vmatpush1.msra.mxu0 0.0
    %139 = vmatprep.subr.mxu0 0.0
    %140 = vmatpush1.msra.mxu0 0.0
    %141 = vmatprep.subr.mxu0 0.0
    %142 = vmatpush1.msra.mxu0 0.0
    %143 = vmatprep.subr.mxu0 0.0
    %144 = vmatpush1.msra.mxu0 0.0
    %145 = vmatprep.subr.mxu0 0.0
    %146 = vmatpush1.msra.mxu0 0.0
    %147 = vmatprep.subr.mxu0 0.0
    %148 = vmatpush1.msra.mxu0 0.0
    %149 = vmatprep.subr.mxu0 0.0
    %150 = vmatpush1.msra.mxu0 0.0
    %151 = vmatprep.subr.mxu0 0.0
    %152 = vmatpush1.msra.mxu0 0.0
    %153 = vmatprep.subr.mxu0 0.0
    %154 = vmatpush1.msra.mxu0 0.0
    %155 = vmatprep.subr.mxu0 0.0
    %156 = vmatpush1.msra.mxu0 0.0
    %157 = vmatprep.subr.mxu0 0.0
    %158 = vmatpush1.msra.mxu0 0.0
    %159 = vmatprep.subr.mxu0 0.0
    %160 = vmatpush1.msra.mxu0 0.0
    %161 = vmatprep.subr.mxu0 0.0
    %162 = vmatpush1.msra.mxu0 0.0
    %163 = vmatprep.subr.mxu0 0.0
    %164 = vmatpush1.msra.mxu0 0.0
    %165 = vmatprep.subr.mxu0 0.0
    %166 = vmatpush1.msra.mxu0 0.0
    %167 = vmatprep.subr.mxu0 0.0
    %168 = vmatpush1.msra.mxu0 0.0
    %169 = vmatprep.subr.mxu0 0.0
    %170 = vmatpush1.msra.mxu0 0.0
    %171 = vmatprep.subr.mxu0 0.0
    %172 = vmatpush1.msra.mxu0 0.0
    %173 = vmatprep.subr.mxu0 0.0
    %174 = vmatpush1.msra.mxu0 0.0
    %175 = vmatprep.mubr.f32.mxu0 0.0
    %176 = vmatmul.mubr.f32.gmra.mrb[0].mxu0 %v109
    %v177 = vpop.f32.mrb[0].mxu0
    %v178 = vadd.f32 %v106, %v177
    %v179 = vpop.f32.mrb[0].mxu0
    %180 = vdwg.mxu0
    %v182 = vsel %vm107, 0.0, 0
    %184 = vmatprep.subr.mxu0 0.0
    %185 = vmatpush1.msra.mxu0 %v63
    %186 = vmatprep.subr.mxu0 0.0
    %187 = vmatpush1.msra.mxu0 %v64
    %188 = vmatprep.subr.mxu0 0.0
    %189 = vmatpush1.msra.mxu0 %v65
    %190 = vmatprep.subr.mxu0 0.0
    %191 = vmatpush1.msra.mxu0 %v66
    %192 = vmatprep.subr.mxu0 0.0
    %193 = vmatpush1.msra.mxu0 0.0
    %194 = vmatprep.subr.mxu0 0.0
    %195 = vmatpush1.msra.mxu0 0.0
    %196 = vmatprep.subr.mxu0 0.0
    %197 = vmatpush1.msra.mxu0 0.0
    %198 = vmatprep.subr.mxu0 0.0
    %199 = vmatpush1.msra.mxu0 0.0
    %200 = vmatprep.subr.mxu0 0.0
    %201 = vmatpush1.msra.mxu0 0.0
    %202 = vmatprep.subr.mxu0 0.0
    %203 = vmatpush1.msra.mxu0 0.0
    %204 = vmatprep.subr.mxu0 0.0
    %205 = vmatpush1.msra.mxu0 0.0
    %206 = vmatprep.subr.mxu0 0.0
    %207 = vmatpush1.msra.mxu0 0.0
    %208 = vmatprep.subr.mxu0 0.0
    %209 = vmatpush1.msra.mxu0 0.0
    %210 = vmatprep.subr.mxu0 0.0
    %211 = vmatpush1.msra.mxu0 0.0
    %212 = vmatprep.subr.mxu0 0.0
    %213 = vmatpush1.msra.mxu0 0.0
    %214 = vmatprep.subr.mxu0 0.0
    %215 = vmatpush1.msra.mxu0 0.0
    %216 = vmatprep.subr.mxu0 0.0
    %217 = vmatpush1.msra.mxu0 0.0
    %218 = vmatprep.subr.mxu0 0.0
    %219 = vmatpush1.msra.mxu0 0.0
    %220 = vmatprep.subr.mxu0 0.0
    %221 = vmatpush1.msra.mxu0 0.0
    %222 = vmatprep.subr.mxu0 0.0
    %223 = vmatpush1.msra.mxu0 0.0
    %224 = vmatprep.subr.mxu0 0.0
    %225 = vmatpush1.msra.mxu0 0.0
    %226 = vmatprep.subr.mxu0 0.0
    %227 = vmatpush1.msra.mxu0 0.0
    %228 = vmatprep.subr.mxu0 0.0
    %229 = vmatpush1.msra.mxu0 0.0
    %230 = vmatprep.subr.mxu0 0.0
    %231 = vmatpush1.msra.mxu0 0.0
    %232 = vmatprep.subr.mxu0 0.0
    %233 = vmatpush1.msra.mxu0 0.0
    %234 = vmatprep.subr.mxu0 0.0
    %235 = vmatpush1.msra.mxu0 0.0
    %236 = vmatprep.subr.mxu0 0.0
    %237 = vmatpush1.msra.mxu0 0.0
    %238 = vmatprep.subr.mxu0 0.0
    %239 = vmatpush1.msra.mxu0 0.0
    %240 = vmatprep.subr.mxu0 0.0
    %241 = vmatpush1.msra.mxu0 0.0
    %242 = vmatprep.subr.mxu0 0.0
    %243 = vmatpush1.msra.mxu0 0.0
    %244 = vmatprep.subr.mxu0 0.0
    %245 = vmatpush1.msra.mxu0 0.0
    %246 = vmatprep.subr.mxu0 0.0
    %247 = vmatpush1.msra.mxu0 0.0
    %248 = vmatprep.mubr.f32.mxu0 0.0
    %249 = vmatmul.mubr.f32.gmra.mrb[0].mxu0 %v182
    %v250 = vpop.f32.mrb[0].mxu0
    %v251 = vadd.f32 0.0, %v250
    %v252 = vpop.f32.mrb[0].mxu0
    %253 = vdwg.mxu0
    %v254 = vadd.f32 %v178, %v251
    %v255 = vxor.u32 %v254, 2147483648
    %v256 = vmul.f32 %v255, 1.442695
    %v257 = vpow.pop %v256
    %v258 = vadd.f32 %v257, 1.0
    %v259 = vrcp.pop %v258
    %v260 = vmul.f32 1.0, %v259
    %262 = vrot.lane.b32.xlu0 %v251, 64
    %v263 = vpop.permute.xlu0 %262
    %v265 = vmul.f32 %v260, %v263
    %267 = vrot.lane.b32.xlu0 %v265, 64
    %v268 = vpop.permute.xlu0 %267
    %v270 = vadd.f32 %v178, %v268
    %v271 = vtanh.pop %v270
    %v272 = vsub.f32 1.0, %v260
    %274 = vrot.lane.b32.xlu0 %v271, 96
    %v275 = vpop.permute.xlu0 %274
    %v277 = vmul.f32 %v272, %v275
    %v278 = vmul.f32 %v260, 0.0
    %v279 = vadd.f32 %v277, %v278
    %281 = vrot.lane.b32.xlu0 %v279, 96
    %v282 = vpop.permute.xlu0 %281
    %v283 = vsel %vm107, %v282, 0
    %285 = vmatprep.subr.mxu0 0.0
    %286 = vmatpush1.msra.mxu0 %v63
    %287 = vmatprep.subr.mxu0 0.0
    %288 = vmatpush1.msra.mxu0 %v64
    %289 = vmatprep.subr.mxu0 0.0
    %290 = vmatpush1.msra.mxu0 %v65
    %291 = vmatprep.subr.mxu0 0.0
    %292 = vmatpush1.msra.mxu0 %v66
    %293 = vmatprep.subr.mxu0 0.0
    %294 = vmatpush1.msra.mxu0 0.0
    %295 = vmatprep.subr.mxu0 0.0
    %296 = vmatpush1.msra.mxu0 0.0
    %297 = vmatprep.subr.mxu0 0.0
    %298 = vmatpush1.msra.mxu0 0.0
    %299 = vmatprep.subr.mxu0 0.0
    %300 = vmatpush1.msra.mxu0 0.0
    %301 = vmatprep.subr.mxu0 0.0
    %302 = vmatpush1.msra.mxu0 0.0
    %303 = vmatprep.subr.mxu0 0.0
    %304 = vmatpush1.msra.mxu0 0.0
    %305 = vmatprep.subr.mxu0 0.0
    %306 = vmatpush1.msra.mxu0 0.0
    %307 = vmatprep.subr.mxu0 0.0
    %308 = vmatpush1.msra.mxu0 0.0
    %309 = vmatprep.subr.mxu0 0.0
    %310 = vmatpush1.msra.mxu0 0.0
    %311 = vmatprep.subr.mxu0 0.0
    %312 = vmatpush1.msra.mxu0 0.0
    %313 = vmatprep.subr.mxu0 0.0
    %314 = vmatpush1.msra.mxu0 0.0
    %315 = vmatprep.subr.mxu0 0.0
    %316 = vmatpush1.msra.mxu0 0.0
    %317 = vmatprep.subr.mxu0 0.0
    %318 = vmatpush1.msra.mxu0 0.0
    %319 = vmatprep.subr.mxu0 0.0
    %320 = vmatpush1.msra.mxu0 0.0
    %321 = vmatprep.subr.mxu0 0.0
    %322 = vmatpush1.msra.mxu0 0.0
    %323 = vmatprep.subr.mxu0 0.0
    %324 = vmatpush1.msra.mxu0 0.0
    %325 = vmatprep.subr.mxu0 0.0
    %326 = vmatpush1.msra.mxu0 0.0
    %327 = vmatprep.subr.mxu0 0.0
    %328 = vmatpush1.msra.mxu0 0.0
    %329 = vmatprep.subr.mxu0 0.0
    %330 = vmatpush1.msra.mxu0 0.0
    %331 = vmatprep.subr.mxu0 0.0
    %332 = vmatpush1.msra.mxu0 0.0
    %333 = vmatprep.subr.mxu0 0.0
    %334 = vmatpush1.msra.mxu0 0.0
    %335 = vmatprep.subr.mxu0 0.0
    %336 = vmatpush1.msra.mxu0 0.0
    %337 = vmatprep.subr.mxu0 0.0
    %338 = vmatpush1.msra.mxu0 0.0
    %339 = vmatprep.subr.mxu0 0.0
    %340 = vmatpush1.msra.mxu0 0.0
    %341 = vmatprep.subr.mxu0 0.0
    %342 = vmatpush1.msra.mxu0 0.0
    %343 = vmatprep.subr.mxu0 0.0
    %344 = vmatpush1.msra.mxu0 0.0
    %345 = vmatprep.subr.mxu0 0.0
    %346 = vmatpush1.msra.mxu0 0.0
    %347 = vmatprep.subr.mxu0 0.0
    %348 = vmatpush1.msra.mxu0 0.0
    %349 = vmatprep.mubr.f32.mxu0 0.0
    %350 = vmatmul.mubr.f32.gmra.mrb[0].mxu0 %v283
    %v351 = vpop.f32.mrb[0].mxu0
    %v352 = vadd.f32 0.0, %v351
    %v353 = vpop.f32.mrb[0].mxu0
    %354 = vdwg.mxu0
    %v356 = vrot.slane %v352, 7
    %v358 = vadd.f32 %v178, %v356
    %v359 = vxor.u32 %v358, 2147483648
    %v360 = vmul.f32 %v359, 1.442695
    %v361 = vpow.pop %v360
    %v362 = vadd.f32 %v361, 1.0
    %v363 = vrcp.pop %v362
    %v364 = vmul.f32 1.0, %v363
    %365 = vrot.lane.b32.xlu0 %v356, 64
    %v366 = vpop.permute.xlu0 %365
    %v368 = vmul.f32 %v364, %v366
    %370 = vrot.lane.b32.xlu0 %v368, 64
    %v371 = vpop.permute.xlu0 %370
    %v373 = vadd.f32 %v178, %v371
    %v374 = vtanh.pop %v373
    %v375 = vsub.f32 1.0, %v364
    %377 = vrot.lane.b32.xlu0 %v374, 96
    %v378 = vpop.permute.xlu0 %377
    %v380 = vmul.f32 %v375, %v378
    %v381 = vrot.slane %v279, 7
    %v383 = vmul.f32 %v364, %v381
    %v384 = vadd.f32 %v380, %v383
    %v386 = vrot.slane %v384, 1
    %387 = vrot.lane.b32.xlu0 %v386, 96
    %v388 = vpop.permute.xlu0 %387
    %v389 = vsel %vm107, %v388, 0
    %391 = vmatprep.subr.mxu0 0.0
    %392 = vmatpush1.msra.mxu0 %v63
    %393 = vmatprep.subr.mxu0 0.0
    %394 = vmatpush1.msra.mxu0 %v64
    %395 = vmatprep.subr.mxu0 0.0
    %396 = vmatpush1.msra.mxu0 %v65
    %397 = vmatprep.subr.mxu0 0.0
    %398 = vmatpush1.msra.mxu0 %v66
    %399 = vmatprep.subr.mxu0 0.0
    %400 = vmatpush1.msra.mxu0 0.0
    %401 = vmatprep.subr.mxu0 0.0
    %402 = vmatpush1.msra.mxu0 0.0
    %403 = vmatprep.subr.mxu0 0.0
    %404 = vmatpush1.msra.mxu0 0.0
    %405 = vmatprep.subr.mxu0 0.0
    %406 = vmatpush1.msra.mxu0 0.0
    %407 = vmatprep.subr.mxu0 0.0
    %408 = vmatpush1.msra.mxu0 0.0
    %409 = vmatprep.subr.mxu0 0.0
    %410 = vmatpush1.msra.mxu0 0.0
    %411 = vmatprep.subr.mxu0 0.0
    %412 = vmatpush1.msra.mxu0 0.0
    %413 = vmatprep.subr.mxu0 0.0
    %414 = vmatpush1.msra.mxu0 0.0
    %415 = vmatprep.subr.mxu0 0.0
    %416 = vmatpush1.msra.mxu0 0.0
    %417 = vmatprep.subr.mxu0 0.0
    %418 = vmatpush1.msra.mxu0 0.0
    %419 = vmatprep.subr.mxu0 0.0
    %420 = vmatpush1.msra.mxu0 0.0
    %421 = vmatprep.subr.mxu0 0.0
    %422 = vmatpush1.msra.mxu0 0.0
    %423 = vmatprep.subr.mxu0 0.0
    %424 = vmatpush1.msra.mxu0 0.0
    %425 = vmatprep.subr.mxu0 0.0
    %426 = vmatpush1.msra.mxu0 0.0
    %427 = vmatprep.subr.mxu0 0.0
    %428 = vmatpush1.msra.mxu0 0.0
    %429 = vmatprep.subr.mxu0 0.0
    %430 = vmatpush1.msra.mxu0 0.0
    %431 = vmatprep.subr.mxu0 0.0
    %432 = vmatpush1.msra.mxu0 0.0
    %433 = vmatprep.subr.mxu0 0.0
    %434 = vmatpush1.msra.mxu0 0.0
    %435 = vmatprep.subr.mxu0 0.0
    %436 = vmatpush1.msra.mxu0 0.0
    %437 = vmatprep.subr.mxu0 0.0
    %438 = vmatpush1.msra.mxu0 0.0
    %439 = vmatprep.subr.mxu0 0.0
    %440 = vmatpush1.msra.mxu0 0.0
    %441 = vmatprep.subr.mxu0 0.0
    %442 = vmatpush1.msra.mxu0 0.0
    %443 = vmatprep.subr.mxu0 0.0
    %444 = vmatpush1.msra.mxu0 0.0
    %445 = vmatprep.subr.mxu0 0.0
    %446 = vmatpush1.msra.mxu0 0.0
    %447 = vmatprep.subr.mxu0 0.0
    %448 = vmatpush1.msra.mxu0 0.0
    %449 = vmatprep.subr.mxu0 0.0
    %450 = vmatpush1.msra.mxu0 0.0
    %451 = vmatprep.subr.mxu0 0.0
    %452 = vmatpush1.msra.mxu0 0.0
    %453 = vmatprep.subr.mxu0 0.0
    %454 = vmatpush1.msra.mxu0 0.0
    %455 = vmatprep.mubr.f32.mxu0 0.0
    %456 = vmatmul.mubr.f32.gmra.mrb[0].mxu0 %v389
    %v457 = vpop.f32.mrb[0].mxu0
    %v458 = vadd.f32 0.0, %v457
    %v459 = vpop.f32.mrb[0].mxu0
    %460 = vdwg.mxu0
    %v462 = vrot.slane %v458, 6
    %v464 = vadd.f32 %v178, %v462
    %v465 = vxor.u32 %v464, 2147483648
    %v466 = vmul.f32 %v465, 1.442695
    %v467 = vpow.pop %v466
    %v468 = vadd.f32 %v467, 1.0
    %v469 = vrcp.pop %v468
    %v470 = vmul.f32 1.0, %v469
    %471 = vrot.lane.b32.xlu0 %v462, 64
    %v472 = vpop.permute.xlu0 %471
    %v474 = vmul.f32 %v470, %v472
    %476 = vrot.lane.b32.xlu0 %v474, 64
    %v477 = vpop.permute.xlu0 %476
    %v479 = vadd.f32 %v178, %v477
    %v480 = vtanh.pop %v479
    %v481 = vsub.f32 1.0, %v470
    %483 = vrot.lane.b32.xlu0 %v480, 96
    %v484 = vpop.permute.xlu0 %483
    %v486 = vmul.f32 %v481, %v484
    %v487 = vrot.slane %v384, 7
    %v489 = vmul.f32 %v470, %v487
    %v490 = vadd.f32 %v486, %v489
    %v492 = vrot.slane %v490, 2
    %493 = vrot.lane.b32.xlu0 %v492, 96
    %v494 = vpop.permute.xlu0 %493
    %v495 = vsel %vm107, %v494, 0
    %497 = vmatprep.subr.mxu0 0.0
    %498 = vmatpush1.msra.mxu0 %v63
    %499 = vmatprep.subr.mxu0 0.0
    %500 = vmatpush1.msra.mxu0 %v64
    %501 = vmatprep.subr.mxu0 0.0
    %502 = vmatpush1.msra.mxu0 %v65
    %503 = vmatprep.subr.mxu0 0.0
    %504 = vmatpush1.msra.mxu0 %v66
    %505 = vmatprep.subr.mxu0 0.0
    %506 = vmatpush1.msra.mxu0 0.0
    %507 = vmatprep.subr.mxu0 0.0
    %508 = vmatpush1.msra.mxu0 0.0
    %509 = vmatprep.subr.mxu0 0.0
    %510 = vmatpush1.msra.mxu0 0.0
    %511 = vmatprep.subr.mxu0 0.0
    %512 = vmatpush1.msra.mxu0 0.0
    %513 = vmatprep.subr.mxu0 0.0
    %514 = vmatpush1.msra.mxu0 0.0
    %515 = vmatprep.subr.mxu0 0.0
    %516 = vmatpush1.msra.mxu0 0.0
    %517 = vmatprep.subr.mxu0 0.0
    %518 = vmatpush1.msra.mxu0 0.0
    %519 = vmatprep.subr.mxu0 0.0
    %520 = vmatpush1.msra.mxu0 0.0
    %521 = vmatprep.subr.mxu0 0.0
    %522 = vmatpush1.msra.mxu0 0.0
    %523 = vmatprep.subr.mxu0 0.0
    %524 = vmatpush1.msra.mxu0 0.0
    %525 = vmatprep.subr.mxu0 0.0
    %526 = vmatpush1.msra.mxu0 0.0
    %527 = vmatprep.subr.mxu0 0.0
    %528 = vmatpush1.msra.mxu0 0.0
    %529 = vmatprep.subr.mxu0 0.0
    %530 = vmatpush1.msra.mxu0 0.0
    %531 = vmatprep.subr.mxu0 0.0
    %532 = vmatpush1.msra.mxu0 0.0
    %533 = vmatprep.subr.mxu0 0.0
    %534 = vmatpush1.msra.mxu0 0.0
    %535 = vmatprep.subr.mxu0 0.0
    %536 = vmatpush1.msra.mxu0 0.0
    %537 = vmatprep.subr.mxu0 0.0
    %538 = vmatpush1.msra.mxu0 0.0
    %539 = vmatprep.subr.mxu0 0.0
    %540 = vmatpush1.msra.mxu0 0.0
    %541 = vmatprep.subr.mxu0 0.0
    %542 = vmatpush1.msra.mxu0 0.0
    %543 = vmatprep.subr.mxu0 0.0
    %544 = vmatpush1.msra.mxu0 0.0
    %545 = vmatprep.subr.mxu0 0.0
    %546 = vmatpush1.msra.mxu0 0.0
    %547 = vmatprep.subr.mxu0 0.0
    %548 = vmatpush1.msra.mxu0 0.0
    %549 = vmatprep.subr.mxu0 0.0
    %550 = vmatpush1.msra.mxu0 0.0
    %551 = vmatprep.subr.mxu0 0.0
    %552 = vmatpush1.msra.mxu0 0.0
    %553 = vmatprep.subr.mxu0 0.0
    %554 = vmatpush1.msra.mxu0 0.0
    %555 = vmatprep.subr.mxu0 0.0
    %556 = vmatpush1.msra.mxu0 0.0
    %557 = vmatprep.subr.mxu0 0.0
    %558 = vmatpush1.msra.mxu0 0.0
    %559 = vmatprep.subr.mxu0 0.0
    %560 = vmatpush1.msra.mxu0 0.0
    %561 = vmatprep.mubr.f32.mxu0 0.0
    %562 = vmatmul.mubr.f32.gmra.mrb[0].mxu0 %v495
    %v563 = vpop.f32.mrb[0].mxu0
    %v564 = vadd.f32 0.0, %v563
    %v565 = vpop.f32.mrb[0].mxu0
    %566 = vdwg.mxu0
    %v568 = vrot.slane %v564, 5
    %v570 = vadd.f32 %v178, %v568
    %v571 = vxor.u32 %v570, 2147483648
    %v572 = vmul.f32 %v571, 1.442695
    %v573 = vpow.pop %v572
    %v574 = vadd.f32 %v573, 1.0
    %v575 = vrcp.pop %v574
    %v576 = vmul.f32 1.0, %v575
    %577 = vrot.lane.b32.xlu0 %v568, 64
    %v578 = vpop.permute.xlu0 %577
    %v580 = vmul.f32 %v576, %v578
    %582 = vrot.lane.b32.xlu0 %v580, 64
    %v583 = vpop.permute.xlu0 %582
    %v585 = vadd.f32 %v178, %v583
    %v586 = vtanh.pop %v585
    %v587 = vsub.f32 1.0, %v576
    %589 = vrot.lane.b32.xlu0 %v586, 96
    %v590 = vpop.permute.xlu0 %589
    %v592 = vmul.f32 %v587, %v590
    %v593 = vrot.slane %v490, 7
    %v595 = vmul.f32 %v576, %v593
    %v596 = vadd.f32 %v592, %v595
    %v598 = vrot.slane %v596, 3
    %599 = vrot.lane.b32.xlu0 %v598, 96
    %v600 = vpop.permute.xlu0 %599
    %v601 = vsel %vm107, %v600, 0
    %603 = vmatprep.subr.mxu0 0.0
    %604 = vmatpush1.msra.mxu0 %v63
    %605 = vmatprep.subr.mxu0 0.0
    %606 = vmatpush1.msra.mxu0 %v64
    %607 = vmatprep.subr.mxu0 0.0
    %608 = vmatpush1.msra.mxu0 %v65
    %609 = vmatprep.subr.mxu0 0.0
    %610 = vmatpush1.msra.mxu0 %v66
    %611 = vmatprep.subr.mxu0 0.0
    %612 = vmatpush1.msra.mxu0 0.0
    %613 = vmatprep.subr.mxu0 0.0
    %614 = vmatpush1.msra.mxu0 0.0
    %615 = vmatprep.subr.mxu0 0.0
    %616 = vmatpush1.msra.mxu0 0.0
    %617 = vmatprep.subr.mxu0 0.0
    %618 = vmatpush1.msra.mxu0 0.0
    %619 = vmatprep.subr.mxu0 0.0
    %620 = vmatpush1.msra.mxu0 0.0
    %621 = vmatprep.subr.mxu0 0.0
    %622 = vmatpush1.msra.mxu0 0.0
    %623 = vmatprep.subr.mxu0 0.0
    %624 = vmatpush1.msra.mxu0 0.0
    %625 = vmatprep.subr.mxu0 0.0
    %626 = vmatpush1.msra.mxu0 0.0
    %627 = vmatprep.subr.mxu0 0.0
    %628 = vmatpush1.msra.mxu0 0.0
    %629 = vmatprep.subr.mxu0 0.0
    %630 = vmatpush1.msra.mxu0 0.0
    %631 = vmatprep.subr.mxu0 0.0
    %632 = vmatpush1.msra.mxu0 0.0
    %633 = vmatprep.subr.mxu0 0.0
    %634 = vmatpush1.msra.mxu0 0.0
    %635 = vmatprep.subr.mxu0 0.0
    %636 = vmatpush1.msra.mxu0 0.0
    %637 = vmatprep.subr.mxu0 0.0
    %638 = vmatpush1.msra.mxu0 0.0
    %639 = vmatprep.subr.mxu0 0.0
    %640 = vmatpush1.msra.mxu0 0.0
    %641 = vmatprep.subr.mxu0 0.0
    %642 = vmatpush1.msra.mxu0 0.0
    %643 = vmatprep.subr.mxu0 0.0
    %644 = vmatpush1.msra.mxu0 0.0
    %645 = vmatprep.subr.mxu0 0.0
    %646 = vmatpush1.msra.mxu0 0.0
    %647 = vmatprep.subr.mxu0 0.0
    %648 = vmatpush1.msra.mxu0 0.0
    %649 = vmatprep.subr.mxu0 0.0
    %650 = vmatpush1.msra.mxu0 0.0
    %651 = vmatprep.subr.mxu0 0.0
    %652 = vmatpush1.msra.mxu0 0.0
    %653 = vmatprep.subr.mxu0 0.0
    %654 = vmatpush1.msra.mxu0 0.0
    %655 = vmatprep.subr.mxu0 0.0
    %656 = vmatpush1.msra.mxu0 0.0
    %657 = vmatprep.subr.mxu0 0.0
    %658 = vmatpush1.msra.mxu0 0.0
    %659 = vmatprep.subr.mxu0 0.0
    %660 = vmatpush1.msra.mxu0 0.0
    %661 = vmatprep.subr.mxu0 0.0
    %662 = vmatpush1.msra.mxu0 0.0
    %663 = vmatprep.subr.mxu0 0.0
    %664 = vmatpush1.msra.mxu0 0.0
    %665 = vmatprep.subr.mxu0 0.0
    %666 = vmatpush1.msra.mxu0 0.0
    %667 = vmatprep.mubr.f32.mxu0 0.0
    %668 = vmatmul.mubr.f32.gmra.mrb[0].mxu0 %v601
    %v669 = vpop.f32.mrb[0].mxu0
    %v670 = vadd.f32 0.0, %v669
    %v671 = vpop.f32.mrb[0].mxu0
    %672 = vdwg.mxu0
    %v674 = vrot.slane %v670, 4
    %v676 = vadd.f32 %v178, %v674
    %v677 = vxor.u32 %v676, 2147483648
    %v678 = vmul.f32 %v677, 1.442695
    %v679 = vpow.pop %v678
    %v680 = vadd.f32 %v679, 1.0
    %v681 = vrcp.pop %v680
    %v682 = vmul.f32 1.0, %v681
    %683 = vrot.lane.b32.xlu0 %v674, 64
    %v684 = vpop.permute.xlu0 %683
    %v686 = vmul.f32 %v682, %v684
    %688 = vrot.lane.b32.xlu0 %v686, 64
    %v689 = vpop.permute.xlu0 %688
    %v691 = vadd.f32 %v178, %v689
    %v692 = vtanh.pop %v691
    %v693 = vsub.f32 1.0, %v682
    %695 = vrot.lane.b32.xlu0 %v692, 96
    %v696 = vpop.permute.xlu0 %695
    %v698 = vmul.f32 %v693, %v696
    %v699 = vrot.slane %v596, 7
    %v701 = vmul.f32 %v682, %v699
    %v702 = vadd.f32 %v698, %v701
    %v704 = vrot.slane %v702, 4
    %705 = vrot.lane.b32.xlu0 %v704, 96
    %v706 = vpop.permute.xlu0 %705
    %v707 = vsel %vm107, %v706, 0
    %709 = vmatprep.subr.mxu0 0.0
    %710 = vmatpush1.msra.mxu0 %v63
    %711 = vmatprep.subr.mxu0 0.0
    %712 = vmatpush1.msra.mxu0 %v64
    %713 = vmatprep.subr.mxu0 0.0
    %714 = vmatpush1.msra.mxu0 %v65
    %715 = vmatprep.subr.mxu0 0.0
    %716 = vmatpush1.msra.mxu0 %v66
    %717 = vmatprep.subr.mxu0 0.0
    %718 = vmatpush1.msra.mxu0 0.0
    %719 = vmatprep.subr.mxu0 0.0
    %720 = vmatpush1.msra.mxu0 0.0
    %721 = vmatprep.subr.mxu0 0.0
    %722 = vmatpush1.msra.mxu0 0.0
    %723 = vmatprep.subr.mxu0 0.0
    %724 = vmatpush1.msra.mxu0 0.0
    %725 = vmatprep.subr.mxu0 0.0
    %726 = vmatpush1.msra.mxu0 0.0
    %727 = vmatprep.subr.mxu0 0.0
    %728 = vmatpush1.msra.mxu0 0.0
    %729 = vmatprep.subr.mxu0 0.0
    %730 = vmatpush1.msra.mxu0 0.0
    %731 = vmatprep.subr.mxu0 0.0
    %732 = vmatpush1.msra.mxu0 0.0
    %733 = vmatprep.subr.mxu0 0.0
    %734 = vmatpush1.msra.mxu0 0.0
    %735 = vmatprep.subr.mxu0 0.0
    %736 = vmatpush1.msra.mxu0 0.0
    %737 = vmatprep.subr.mxu0 0.0
    %738 = vmatpush1.msra.mxu0 0.0
    %739 = vmatprep.subr.mxu0 0.0
    %740 = vmatpush1.msra.mxu0 0.0
    %741 = vmatprep.subr.mxu0 0.0
    %742 = vmatpush1.msra.mxu0 0.0
    %743 = vmatprep.subr.mxu0 0.0
    %744 = vmatpush1.msra.mxu0 0.0
    %745 = vmatprep.subr.mxu0 0.0
    %746 = vmatpush1.msra.mxu0 0.0
    %747 = vmatprep.subr.mxu0 0.0
    %748 = vmatpush1.msra.mxu0 0.0
    %749 = vmatprep.subr.mxu0 0.0
    %750 = vmatpush1.msra.mxu0 0.0
    %751 = vmatprep.subr.mxu0 0.0
    %752 = vmatpush1.msra.mxu0 0.0
    %753 = vmatprep.subr.mxu0 0.0
    %754 = vmatpush1.msra.mxu0 0.0
    %755 = vmatprep.subr.mxu0 0.0
    %756 = vmatpush1.msra.mxu0 0.0
    %757 = vmatprep.subr.mxu0 0.0
    %758 = vmatpush1.msra.mxu0 0.0
    %759 = vmatprep.subr.mxu0 0.0
    %760 = vmatpush1.msra.mxu0 0.0
    %761 = vmatprep.subr.mxu0 0.0
    %762 = vmatpush1.msra.mxu0 0.0
    %763 = vmatprep.subr.mxu0 0.0
    %764 = vmatpush1.msra.mxu0 0.0
    %765 = vmatprep.subr.mxu0 0.0
    %766 = vmatpush1.msra.mxu0 0.0
    %767 = vmatprep.subr.mxu0 0.0
    %768 = vmatpush1.msra.mxu0 0.0
    %769 = vmatprep.subr.mxu0 0.0
    %770 = vmatpush1.msra.mxu0 0.0
    %771 = vmatprep.subr.mxu0 0.0
    %772 = vmatpush1.msra.mxu0 0.0
    %773 = vmatprep.mubr.f32.mxu0 0.0
    %774 = vmatmul.mubr.f32.gmra.mrb[0].mxu0 %v707
    %v775 = vpop.f32.mrb[0].mxu0
    %v776 = vadd.f32 0.0, %v775
    %v777 = vpop.f32.mrb[0].mxu0
    %778 = vdwg.mxu0
    %v780 = vrot.slane %v776, 3
    %v782 = vadd.f32 %v178, %v780
    %v783 = vxor.u32 %v782, 2147483648
    %v784 = vmul.f32 %v783, 1.442695
    %v785 = vpow.pop %v784
    %v786 = vadd.f32 %v785, 1.0
    %v787 = vrcp.pop %v786
    %v788 = vmul.f32 1.0, %v787
    %789 = vrot.lane.b32.xlu0 %v780, 64
    %v790 = vpop.permute.xlu0 %789
    %v792 = vmul.f32 %v788, %v790
    %794 = vrot.lane.b32.xlu0 %v792, 64
    %v795 = vpop.permute.xlu0 %794
    %v797 = vadd.f32 %v178, %v795
    %v798 = vtanh.pop %v797
    %v799 = vsub.f32 1.0, %v788
    %801 = vrot.lane.b32.xlu0 %v798, 96
    %v802 = vpop.permute.xlu0 %801
    %v804 = vmul.f32 %v799, %v802
    %v805 = vrot.slane %v702, 7
    %v807 = vmul.f32 %v788, %v805
    %v808 = vadd.f32 %v804, %v807
    %v810 = vrot.slane %v808, 5
    %811 = vrot.lane.b32.xlu0 %v810, 96
    %v812 = vpop.permute.xlu0 %811
    %v813 = vsel %vm107, %v812, 0
    %815 = vmatprep.subr.mxu0 0.0
    %816 = vmatpush1.msra.mxu0 %v63
    %817 = vmatprep.subr.mxu0 0.0
    %818 = vmatpush1.msra.mxu0 %v64
    %819 = vmatprep.subr.mxu0 0.0
    %820 = vmatpush1.msra.mxu0 %v65
    %821 = vmatprep.subr.mxu0 0.0
    %822 = vmatpush1.msra.mxu0 %v66
    %823 = vmatprep.subr.mxu0 0.0
    %824 = vmatpush1.msra.mxu0 0.0
    %825 = vmatprep.subr.mxu0 0.0
    %826 = vmatpush1.msra.mxu0 0.0
    %827 = vmatprep.subr.mxu0 0.0
    %828 = vmatpush1.msra.mxu0 0.0
    %829 = vmatprep.subr.mxu0 0.0
    %830 = vmatpush1.msra.mxu0 0.0
    %831 = vmatprep.subr.mxu0 0.0
    %832 = vmatpush1.msra.mxu0 0.0
    %833 = vmatprep.subr.mxu0 0.0
    %834 = vmatpush1.msra.mxu0 0.0
    %835 = vmatprep.subr.mxu0 0.0
    %836 = vmatpush1.msra.mxu0 0.0
    %837 = vmatprep.subr.mxu0 0.0
    %838 = vmatpush1.msra.mxu0 0.0
    %839 = vmatprep.subr.mxu0 0.0
    %840 = vmatpush1.msra.mxu0 0.0
    %841 = vmatprep.subr.mxu0 0.0
    %842 = vmatpush1.msra.mxu0 0.0
    %843 = vmatprep.subr.mxu0 0.0
    %844 = vmatpush1.msra.mxu0 0.0
    %845 = vmatprep.subr.mxu0 0.0
    %846 = vmatpush1.msra.mxu0 0.0
    %847 = vmatprep.subr.mxu0 0.0
    %848 = vmatpush1.msra.mxu0 0.0
    %849 = vmatprep.subr.mxu0 0.0
    %850 = vmatpush1.msra.mxu0 0.0
    %851 = vmatprep.subr.mxu0 0.0
    %852 = vmatpush1.msra.mxu0 0.0
    %853 = vmatprep.subr.mxu0 0.0
    %854 = vmatpush1.msra.mxu0 0.0
    %855 = vmatprep.subr.mxu0 0.0
    %856 = vmatpush1.msra.mxu0 0.0
    %857 = vmatprep.subr.mxu0 0.0
    %858 = vmatpush1.msra.mxu0 0.0
    %859 = vmatprep.subr.mxu0 0.0
    %860 = vmatpush1.msra.mxu0 0.0
    %861 = vmatprep.subr.mxu0 0.0
    %862 = vmatpush1.msra.mxu0 0.0
    %863 = vmatprep.subr.mxu0 0.0
    %864 = vmatpush1.msra.mxu0 0.0
    %865 = vmatprep.subr.mxu0 0.0
    %866 = vmatpush1.msra.mxu0 0.0
    %867 = vmatprep.subr.mxu0 0.0
    %868 = vmatpush1.msra.mxu0 0.0
    %869 = vmatprep.subr.mxu0 0.0
    %870 = vmatpush1.msra.mxu0 0.0
    %871 = vmatprep.subr.mxu0 0.0
    %872 = vmatpush1.msra.mxu0 0.0
    %873 = vmatprep.subr.mxu0 0.0
    %874 = vmatpush1.msra.mxu0 0.0
    %875 = vmatprep.subr.mxu0 0.0
    %876 = vmatpush1.msra.mxu0 0.0
    %877 = vmatprep.subr.mxu0 0.0
    %878 = vmatpush1.msra.mxu0 0.0
    %879 = vmatprep.mubr.f32.mxu0 0.0
    %880 = vmatmul.mubr.f32.gmra.mrb[0].mxu0 %v813
    %v881 = vpop.f32.mrb[0].mxu0
    %v882 = vadd.f32 0.0, %v881
    %v883 = vpop.f32.mrb[0].mxu0
    %884 = vdwg.mxu0
    %v886 = vrot.slane %v882, 2
    %v888 = vadd.f32 %v178, %v886
    %v889 = vxor.u32 %v888, 2147483648
    %v890 = vmul.f32 %v889, 1.442695
    %v891 = vpow.pop %v890
    %v892 = vadd.f32 %v891, 1.0
    %v893 = vrcp.pop %v892
    %v894 = vmul.f32 1.0, %v893
    %895 = vrot.lane.b32.xlu0 %v886, 64
    %v896 = vpop.permute.xlu0 %895
    %v898 = vmul.f32 %v894, %v896
    %900 = vrot.lane.b32.xlu0 %v898, 64
    %v901 = vpop.permute.xlu0 %900
    %v903 = vadd.f32 %v178, %v901
    %v904 = vtanh.pop %v903
    %v905 = vsub.f32 1.0, %v894
    %907 = vrot.lane.b32.xlu0 %v904, 96
    %v908 = vpop.permute.xlu0 %907
    %v910 = vmul.f32 %v905, %v908
    %v911 = vrot.slane %v808, 7
    %v913 = vmul.f32 %v894, %v911
    %v914 = vadd.f32 %v910, %v913
    %v916 = vrot.slane %v914, 6
    %917 = vrot.lane.b32.xlu0 %v916, 96
    %v918 = vpop.permute.xlu0 %917
    %v919 = vsel %vm107, %v918, 0
    %921 = vmatprep.subr.mxu0 0.0
    %922 = vmatpush1.msra.mxu0 %v63
    %923 = vmatprep.subr.mxu0 0.0
    %924 = vmatpush1.msra.mxu0 %v64
    %925 = vmatprep.subr.mxu0 0.0
    %926 = vmatpush1.msra.mxu0 %v65
    %927 = vmatprep.subr.mxu0 0.0
    %928 = vmatpush1.msra.mxu0 %v66
    %929 = vmatprep.subr.mxu0 0.0
    %930 = vmatpush1.msra.mxu0 0.0
    %931 = vmatprep.subr.mxu0 0.0
    %932 = vmatpush1.msra.mxu0 0.0
    %933 = vmatprep.subr.mxu0 0.0
    %934 = vmatpush1.msra.mxu0 0.0
    %935 = vmatprep.subr.mxu0 0.0
    %936 = vmatpush1.msra.mxu0 0.0
    %937 = vmatprep.subr.mxu0 0.0
    %938 = vmatpush1.msra.mxu0 0.0
    %939 = vmatprep.subr.mxu0 0.0
    %940 = vmatpush1.msra.mxu0 0.0
    %941 = vmatprep.subr.mxu0 0.0
    %942 = vmatpush1.msra.mxu0 0.0
    %943 = vmatprep.subr.mxu0 0.0
    %944 = vmatpush1.msra.mxu0 0.0
    %945 = vmatprep.subr.mxu0 0.0
    %946 = vmatpush1.msra.mxu0 0.0
    %947 = vmatprep.subr.mxu0 0.0
    %948 = vmatpush1.msra.mxu0 0.0
    %949 = vmatprep.subr.mxu0 0.0
    %950 = vmatpush1.msra.mxu0 0.0
    %951 = vmatprep.subr.mxu0 0.0
    %952 = vmatpush1.msra.mxu0 0.0
    %953 = vmatprep.subr.mxu0 0.0
    %954 = vmatpush1.msra.mxu0 0.0
    %955 = vmatprep.subr.mxu0 0.0
    %956 = vmatpush1.msra.mxu0 0.0
    %957 = vmatprep.subr.mxu0 0.0
    %958 = vmatpush1.msra.mxu0 0.0
    %959 = vmatprep.subr.mxu0 0.0
    %960 = vmatpush1.msra.mxu0 0.0
    %961 = vmatprep.subr.mxu0 0.0
    %962 = vmatpush1.msra.mxu0 0.0
    %963 = vmatprep.subr.mxu0 0.0
    %964 = vmatpush1.msra.mxu0 0.0
    %965 = vmatprep.subr.mxu0 0.0
    %966 = vmatpush1.msra.mxu0 0.0
    %967 = vmatprep.subr.mxu0 0.0
    %968 = vmatpush1.msra.mxu0 0.0
    %969 = vmatprep.subr.mxu0 0.0
    %970 = vmatpush1.msra.mxu0 0.0
    %971 = vmatprep.subr.mxu0 0.0
    %972 = vmatpush1.msra.mxu0 0.0
    %973 = vmatprep.subr.mxu0 0.0
    %974 = vmatpush1.msra.mxu0 0.0
    %975 = vmatprep.subr.mxu0 0.0
    %976 = vmatpush1.msra.mxu0 0.0
    %977 = vmatprep.subr.mxu0 0.0
    %978 = vmatpush1.msra.mxu0 0.0
    %979 = vmatprep.subr.mxu0 0.0
    %980 = vmatpush1.msra.mxu0 0.0
    %981 = vmatprep.subr.mxu0 0.0
    %982 = vmatpush1.msra.mxu0 0.0
    %983 = vmatprep.subr.mxu0 0.0
    %984 = vmatpush1.msra.mxu0 0.0
    %985 = vmatprep.mubr.f32.mxu0 0.0
    %986 = vmatmul.mubr.f32.gmra.mrb[0].mxu0 %v919
    %v987 = vpop.f32.mrb[0].mxu0
    %v988 = vadd.f32 0.0, %v987
    %v989 = vpop.f32.mrb[0].mxu0
    %990 = vdwg.mxu0
    %v992 = vrot.slane %v988, 1
    %v994 = vadd.f32 %v178, %v992
    %v995 = vxor.u32 %v994, 2147483648
    %v996 = vmul.f32 %v995, 1.442695
    %v997 = vpow.pop %v996
    %v998 = vadd.f32 %v997, 1.0
    %v999 = vrcp.pop %v998
    %v1000 = vmul.f32 1.0, %v999
    %1001 = vrot.lane.b32.xlu0 %v992, 64
    %v1002 = vpop.permute.xlu0 %1001
    %v1004 = vmul.f32 %v1000, %v1002
    %1006 = vrot.lane.b32.xlu0 %v1004, 64
    %v1007 = vpop.permute.xlu0 %1006
    %v1009 = vadd.f32 %v178, %v1007
    %v1010 = vtanh.pop %v1009
    %v1011 = vsub.f32 1.0, %v1000
    %1013 = vrot.lane.b32.xlu0 %v1010, 96
    %v1014 = vpop.permute.xlu0 %1013
    %v1016 = vmul.f32 %v1011, %v1014
    %v1017 = vrot.slane %v914, 7
    %v1019 = vmul.f32 %v1000, %v1017
    %v1020 = vadd.f32 %v1016, %v1019
    %vm1021 = vcmask 1040384
    %v1022 = vsel %vm1021, %v279, %v384
    %vm1023 = vcmask 1041408
    %v1024 = vsel %vm1023, %v1022, %v490
    %vm1025 = vcmask 1042432
    %v1026 = vsel %vm1025, %v1024, %v596
    %vm1027 = vcmask 1043456
    %v1028 = vsel %vm1027, %v1026, %v702
    %vm1029 = vcmask 1044480
    %v1030 = vsel %vm1029, %v1028, %v808
    %vm1031 = vcmask 1045504
    %v1032 = vsel %vm1031, %v1030, %v914
    %vm1033 = vcmask 1046528
    %v1034 = vsel %vm1033, %v1032, %v1020
    %v1035 = vld [vmem:[#allocation2 + $0x8] sm:$0x3]
    %v1036 = vlaneseq
    %v1037 = vshrl.u32 %v1036, 7
    %v1038 = vsub.s32 7, %v1037
    %v1039 = vrot.slane %v1020, %v1038
    %1041 = vrot.lane.b32.xlu0 %v1039, 96
    %v1042 = vpop.permute.xlu0 %1041
    %1044 = vrot.lane.b32.xlu0 %v1034, 96
    %v1045 = vpop.permute.xlu0 %1044
    %v1046 = vsel %vm107, %v1042, 0
    %v1048 = vsel %vm107, %v1045, 0
    %1050 = vmatprep.subr.mxu0 0.0
    %1051 = vmatpush1.xpose.msra.mxu0 %v1048
    %1052 = vmatprep.subr.mxu0 0.0
    %1053 = vmatpush1.xpose.msra.mxu0 0.0
    %1054 = vmatprep.subr.mxu0 0.0
    %1055 = vmatpush1.xpose.msra.mxu0 0.0
    %1056 = vmatprep.subr.mxu0 0.0
    %1057 = vmatpush1.xpose.msra.mxu0 0.0
    %1058 = vmatprep.subr.mxu0 0.0
    %1059 = vmatpush1.xpose.msra.mxu0 0.0
    %1060 = vmatprep.subr.mxu0 0.0
    %1061 = vmatpush1.xpose.msra.mxu0 0.0
    %1062 = vmatprep.subr.mxu0 0.0
    %1063 = vmatpush1.xpose.msra.mxu0 0.0
    %1064 = vmatprep.subr.mxu0 0.0
    %1065 = vmatpush1.xpose.msra.mxu0 0.0
    %1066 = vmatprep.subr.mxu0 0.0
    %1067 = vmatpush1.xpose.msra.mxu0 0.0
    %1068 = vmatprep.subr.mxu0 0.0
    %1069 = vmatpush1.xpose.msra.mxu0 0.0
    %1070 = vmatprep.subr.mxu0 0.0
    %1071 = vmatpush1.xpose.msra.mxu0 0.0
    %1072 = vmatprep.subr.mxu0 0.0
    %1073 = vmatpush1.xpose.msra.mxu0 0.0
    %1074 = vmatprep.subr.mxu0 0.0
    %1075 = vmatpush1.xpose.msra.mxu0 0.0
    %1076 = vmatprep.subr.mxu0 0.0
    %1077 = vmatpush1.xpose.msra.mxu0 0.0
    %1078 = vmatprep.subr.mxu0 0.0
    %1079 = vmatpush1.xpose.msra.mxu0 0.0
    %1080 = vmatprep.subr.mxu0 0.0
    %1081 = vmatpush1.xpose.msra.mxu0 0.0
    %1082 = vmatprep.subr.mxu0 0.0
    %1083 = vmatpush1.xpose.msra.mxu0 0.0
    %1084 = vmatprep.subr.mxu0 0.0
    %1085 = vmatpush1.xpose.msra.mxu0 0.0
    %1086 = vmatprep.subr.mxu0 0.0
    %1087 = vmatpush1.xpose.msra.mxu0 0.0
    %1088 = vmatprep.subr.mxu0 0.0
    %1089 = vmatpush1.xpose.msra.mxu0 0.0
    %1090 = vmatprep.subr.mxu0 0.0
    %1091 = vmatpush1.xpose.msra.mxu0 0.0
    %1092 = vmatprep.subr.mxu0 0.0
    %1093 = vmatpush1.xpose.msra.mxu0 0.0
    %1094 = vmatprep.subr.mxu0 0.0
    %1095 = vmatpush1.xpose.msra.mxu0 0.0
    %1096 = vmatprep.subr.mxu0 0.0
    %1097 = vmatpush1.xpose.msra.mxu0 0.0
    %1098 = vmatprep.subr.mxu0 0.0
    %1099 = vmatpush1.xpose.msra.mxu0 0.0
    %1100 = vmatprep.subr.mxu0 0.0
    %1101 = vmatpush1.xpose.msra.mxu0 0.0
    %1102 = vmatprep.subr.mxu0 0.0
    %1103 = vmatpush1.xpose.msra.mxu0 0.0
    %1104 = vmatprep.subr.mxu0 0.0
    %1105 = vmatpush1.xpose.msra.mxu0 0.0
    %1106 = vmatprep.subr.mxu0 0.0
    %1107 = vmatpush1.xpose.msra.mxu0 0.0
    %1108 = vmatprep.subr.mxu0 0.0
    %1109 = vmatpush1.xpose.msra.mxu0 0.0
    %1110 = vmatprep.subr.mxu0 0.0
    %1111 = vmatpush1.xpose.msra.mxu0 0.0
    %1112 = vmatprep.subr.mxu0 0.0
    %1113 = vmatpush1.xpose.msra.mxu0 0.0
    %1114 = vmatprep.mubr.f32.mxu0 0.0
    %1115 = vmatmul.mubr.f32.gmra.mrb[0].mxu0 %v1046
    %v1116 = vpop.f32.mrb[0].mxu0
    %v1117 = vadd.f32 0.0, %v1116
    %v1118 = vpop.f32.mrb[0].mxu0
    %1119 = vdwg.mxu0
    %vm1120 = vcmask 58368
    %v1121 = vsel %vm1120, %v1117, -inf
    %1122 = vmax.xlane.f32.xlu0 %v1121
    %v1123 = vpop.xlane.xlu0 %1122
    %v1124 = vsub.f32 %v1117, %v1123
    %v1125 = vmul.f32 %v1124, 1.442695
    %v1126 = vpow.pop %v1125
    %v1127 = vsel %vm1120, %v1126, 0.0
    %1128 = vadd.xlane.f32.xlu0 %v1127
    %v1129 = vpop.xlane.xlu0 %1128
    %v1130 = vrcp.pop %v1129
    %v1131 = vmul.f32 %v1126, %v1130
    %vm1133 = vcmask 64512
    %v1135 = vsel %vm1133, %v1131, 0
    %1137 = vmatprep.subr.mxu0 0.0
    %1138 = vmatpush1.msra.mxu0 %v1045
    %1139 = vmatprep.subr.mxu0 0.0
    %1140 = vmatpush1.msra.mxu0 0.0
    %1141 = vmatprep.subr.mxu0 0.0
    %1142 = vmatpush1.msra.mxu0 0.0
    %1143 = vmatprep.subr.mxu0 0.0
    %1144 = vmatpush1.msra.mxu0 0.0
    %1145 = vmatprep.subr.mxu0 0.0
    %1146 = vmatpush1.msra.mxu0 0.0
    %1147 = vmatprep.subr.mxu0 0.0
    %1148 = vmatpush1.msra.mxu0 0.0
    %1149 = vmatprep.subr.mxu0 0.0
    %1150 = vmatpush1.msra.mxu0 0.0
    %1151 = vmatprep.subr.mxu0 0.0
    %1152 = vmatpush1.msra.mxu0 0.0
    %1153 = vmatprep.subr.mxu0 0.0
    %1154 = vmatpush1.msra.mxu0 0.0
    %1155 = vmatprep.subr.mxu0 0.0
    %1156 = vmatpush1.msra.mxu0 0.0
    %1157 = vmatprep.subr.mxu0 0.0
    %1158 = vmatpush1.msra.mxu0 0.0
    %1159 = vmatprep.subr.mxu0 0.0
    %1160 = vmatpush1.msra.mxu0 0.0
    %1161 = vmatprep.subr.mxu0 0.0
    %1162 = vmatpush1.msra.mxu0 0.0
    %1163 = vmatprep.subr.mxu0 0.0
    %1164 = vmatpush1.msra.mxu0 0.0
    %1165 = vmatprep.subr.mxu0 0.0
    %1166 = vmatpush1.msra.mxu0 0.0
    %1167 = vmatprep.subr.mxu0 0.0
    %1168 = vmatpush1.msra.mxu0 0.0
    %1169 = vmatprep.subr.mxu0 0.0
    %1170 = vmatpush1.msra.mxu0 0.0
    %1171 = vmatprep.subr.mxu0 0.0
    %1172 = vmatpush1.msra.mxu0 0.0
    %1173 = vmatprep.subr.mxu0 0.0
    %1174 = vmatpush1.msra.mxu0 0.0
    %1175 = vmatprep.subr.mxu0 0.0
    %1176 = vmatpush1.msra.mxu0 0.0
    %1177 = vmatprep.subr.mxu0 0.0
    %1178 = vmatpush1.msra.mxu0 0.0
    %1179 = vmatprep.subr.mxu0 0.0
    %1180 = vmatpush1.msra.mxu0 0.0
    %1181 = vmatprep.subr.mxu0 0.0
    %1182 = vmatpush1.msra.mxu0 0.0
    %1183 = vmatprep.subr.mxu0 0.0
    %1184 = vmatpush1.msra.mxu0 0.0
    %1185 = vmatprep.subr.mxu0 0.0
    %1186 = vmatpush1.msra.mxu0 0.0
    %1187 = vmatprep.subr.mxu0 0.0
    %1188 = vmatpush1.msra.mxu0 0.0
    %1189 = vmatprep.subr.mxu0 0.0
    %1190 = vmatpush1.msra.mxu0 0.0
    %1191 = vmatprep.subr.mxu0 0.0
    %1192 = vmatpush1.msra.mxu0 0.0
    %1193 = vmatprep.subr.mxu0 0.0
    %1194 = vmatpush1.msra.mxu0 0.0
    %1195 = vmatprep.subr.mxu0 0.0
    %1196 = vmatpush1.msra.mxu0 0.0
    %1197 = vmatprep.subr.mxu0 0.0
    %1198 = vmatpush1.msra.mxu0 0.0
    %1199 = vmatprep.subr.mxu0 0.0
    %1200 = vmatpush1.msra.mxu0 0.0
    %1201 = vmatprep.mubr.f32.mxu0 0.0
    %1202 = vmatmul.mubr.f32.gmra.mrb[0].mxu0 %v1135
    %v1203 = vpop.f32.mrb[0].mxu0
    %v1204 = vadd.f32 0.0, %v1203
    %v1205 = vpop.f32.mrb[0].mxu0
    %1206 = vdwg.mxu0
    %1208 = vrot.lane.b32.xlu0 %v1204, 32
    %v1209 = vpop.permute.xlu0 %1208
    %v1211 = vsel %vm107, %v1035, %v1209
    %v1212 = vlaneseq
    %v1213 = vshrl.u32 %v1212, 7
    %v1214 = vsub.s32 0, %v1213
    %v1215 = vrot.slane %v80, %v1214
    %vm1216 = vcmask 523264
    %v1218 = vsel %vm1216, %v1211, 0
    %1220 = vmatprep.subr.mxu0 0.0
    %1221 = vmatpush1.msra.mxu0 %v68
    %1222 = vmatprep.subr.mxu0 0.0
    %1223 = vmatpush1.msra.mxu0 %v69
    %1224 = vmatprep.subr.mxu0 0.0
    %1225 = vmatpush1.msra.mxu0 %v70
    %1226 = vmatprep.subr.mxu0 0.0
    %1227 = vmatpush1.msra.mxu0 %v71
    %1228 = vmatprep.subr.mxu0 0.0
    %1229 = vmatpush1.msra.mxu0 %v72
    %1230 = vmatprep.subr.mxu0 0.0
    %1231 = vmatpush1.msra.mxu0 %v73
    %1232 = vmatprep.subr.mxu0 0.0
    %1233 = vmatpush1.msra.mxu0 %v74
    %1234 = vmatprep.subr.mxu0 0.0
    %1235 = vmatpush1.msra.mxu0 %v75
    %1236 = vmatprep.subr.mxu0 0.0
    %1237 = vmatpush1.msra.mxu0 0.0
    %1238 = vmatprep.subr.mxu0 0.0
    %1239 = vmatpush1.msra.mxu0 0.0
    %1240 = vmatprep.subr.mxu0 0.0
    %1241 = vmatpush1.msra.mxu0 0.0
    %1242 = vmatprep.subr.mxu0 0.0
    %1243 = vmatpush1.msra.mxu0 0.0
    %1244 = vmatprep.subr.mxu0 0.0
    %1245 = vmatpush1.msra.mxu0 0.0
    %1246 = vmatprep.subr.mxu0 0.0
    %1247 = vmatpush1.msra.mxu0 0.0
    %1248 = vmatprep.subr.mxu0 0.0
    %1249 = vmatpush1.msra.mxu0 0.0
    %1250 = vmatprep.subr.mxu0 0.0
    %1251 = vmatpush1.msra.mxu0 0.0
    %1252 = vmatprep.subr.mxu0 0.0
    %1253 = vmatpush1.msra.mxu0 0.0
    %1254 = vmatprep.subr.mxu0 0.0
    %1255 = vmatpush1.msra.mxu0 0.0
    %1256 = vmatprep.subr.mxu0 0.0
    %1257 = vmatpush1.msra.mxu0 0.0
    %1258 = vmatprep.subr.mxu0 0.0
    %1259 = vmatpush1.msra.mxu0 0.0
    %1260 = vmatprep.subr.mxu0 0.0
    %1261 = vmatpush1.msra.mxu0 0.0
    %1262 = vmatprep.subr.mxu0 0.0
    %1263 = vmatpush1.msra.mxu0 0.0
    %1264 = vmatprep.subr.mxu0 0.0
    %1265 = vmatpush1.msra.mxu0 0.0
    %1266 = vmatprep.subr.mxu0 0.0
    %1267 = vmatpush1.msra.mxu0 0.0
    %1268 = vmatprep.subr.mxu0 0.0
    %1269 = vmatpush1.msra.mxu0 0.0
    %1270 = vmatprep.subr.mxu0 0.0
    %1271 = vmatpush1.msra.mxu0 0.0
    %1272 = vmatprep.subr.mxu0 0.0
    %1273 = vmatpush1.msra.mxu0 0.0
    %1274 = vmatprep.subr.mxu0 0.0
    %1275 = vmatpush1.msra.mxu0 0.0
    %1276 = vmatprep.subr.mxu0 0.0
    %1277 = vmatpush1.msra.mxu0 0.0
    %1278 = vmatprep.subr.mxu0 0.0
    %1279 = vmatpush1.msra.mxu0 0.0
    %1280 = vmatprep.subr.mxu0 0.0
    %1281 = vmatpush1.msra.mxu0 0.0
    %1282 = vmatprep.subr.mxu0 0.0
    %1283 = vmatpush1.msra.mxu0 0.0
    %1284 = vmatprep.mubr.f32.mxu0 0.0
    %1285 = vmatmul.mubr.f32.gmra.mrb[0].mxu0 %v1218
    %v1286 = vpop.f32.mrb[0].mxu0
    %v1287 = vadd.f32 %v1215, %v1286
    %v1288 = vpop.f32.mrb[0].mxu0
    %1289 = vdwg.mxu0
    %1290 = vmatprep.subr.mxu0 0.0
    %1291 = vmatpush1.msra.mxu0 %v76
    %1292 = vmatprep.subr.mxu0 0.0
    %1293 = vmatpush1.msra.mxu0 %v77
    %1294 = vmatprep.subr.mxu0 0.0
    %1295 = vmatpush1.msra.mxu0 %v78
    %1296 = vmatprep.subr.mxu0 0.0
    %1297 = vmatpush1.msra.mxu0 %v79
    %1298 = vmatprep.subr.mxu0 0.0
    %1299 = vmatpush1.msra.mxu0 0.0
    %1300 = vmatprep.subr.mxu0 0.0
    %1301 = vmatpush1.msra.mxu0 0.0
    %1302 = vmatprep.subr.mxu0 0.0
    %1303 = vmatpush1.msra.mxu0 0.0
    %1304 = vmatprep.subr.mxu0 0.0
    %1305 = vmatpush1.msra.mxu0 0.0
    %1306 = vmatprep.subr.mxu0 0.0
    %1307 = vmatpush1.msra.mxu0 0.0
    %1308 = vmatprep.subr.mxu0 0.0
    %1309 = vmatpush1.msra.mxu0 0.0
    %1310 = vmatprep.subr.mxu0 0.0
    %1311 = vmatpush1.msra.mxu0 0.0
    %1312 = vmatprep.subr.mxu0 0.0
    %1313 = vmatpush1.msra.mxu0 0.0
    %1314 = vmatprep.subr.mxu0 0.0
    %1315 = vmatpush1.msra.mxu0 0.0
    %1316 = vmatprep.subr.mxu0 0.0
    %1317 = vmatpush1.msra.mxu0 0.0
    %1318 = vmatprep.subr.mxu0 0.0
    %1319 = vmatpush1.msra.mxu0 0.0
    %1320 = vmatprep.subr.mxu0 0.0
    %1321 = vmatpush1.msra.mxu0 0.0
    %1322 = vmatprep.subr.mxu0 0.0
    %1323 = vmatpush1.msra.mxu0 0.0
    %1324 = vmatprep.subr.mxu0 0.0
    %1325 = vmatpush1.msra.mxu0 0.0
    %1326 = vmatprep.subr.mxu0 0.0
    %1327 = vmatpush1.msra.mxu0 0.0
    %1328 = vmatprep.subr.mxu0 0.0
    %1329 = vmatpush1.msra.mxu0 0.0
    %1330 = vmatprep.subr.mxu0 0.0
    %1331 = vmatpush1.msra.mxu0 0.0
    %1332 = vmatprep.subr.mxu0 0.0
    %1333 = vmatpush1.msra.mxu0 0.0
    %1334 = vmatprep.subr.mxu0 0.0
    %1335 = vmatpush1.msra.mxu0 0.0
    %1336 = vmatprep.subr.mxu0 0.0
    %1337 = vmatpush1.msra.mxu0 0.0
    %1338 = vmatprep.subr.mxu0 0.0
    %1339 = vmatpush1.msra.mxu0 0.0
    %1340 = vmatprep.subr.mxu0 0.0
    %1341 = vmatpush1.msra.mxu0 0.0
    %1342 = vmatprep.subr.mxu0 0.0
    %1343 = vmatpush1.msra.mxu0 0.0
    %1344 = vmatprep.subr.mxu0 0.0
    %1345 = vmatpush1.msra.mxu0 0.0
    %1346 = vmatprep.subr.mxu0 0.0
    %1347 = vmatpush1.msra.mxu0 0.0
    %1348 = vmatprep.subr.mxu0 0.0
    %1349 = vmatpush1.msra.mxu0 0.0
    %1350 = vmatprep.subr.mxu0 0.0
    %1351 = vmatpush1.msra.mxu0 0.0
    %1352 = vmatprep.subr.mxu0 0.0
    %1353 = vmatpush1.msra.mxu0 0.0
    %1354 = vmatprep.mubr.f32.mxu0 0.0
    %1355 = vmatmul.mubr.f32.gmra.mrb[0].mxu0 %v1046
    %v1356 = vpop.f32.mrb[0].mxu0
    %v1357 = vadd.f32 0.0, %v1356
    %v1358 = vpop.f32.mrb[0].mxu0
    %1359 = vdwg.mxu0
    %v1360 = vadd.f32 %v1287, %v1357
    %v1361 = vxor.u32 %v1360, 2147483648
    %v1362 = vmul.f32 %v1361, 1.442695
    %v1363 = vpow.pop %v1362
    %v1364 = vadd.f32 %v1363, 1.0
    %v1365 = vrcp.pop %v1364
    %v1366 = vmul.f32 1.0, %v1365
    %1368 = vrot.lane.b32.xlu0 %v1357, 64
    %v1369 = vpop.permute.xlu0 %1368
    %v1371 = vmul.f32 %v1366, %v1369
    %1373 = vrot.lane.b32.xlu0 %v1371, 64
    %v1374 = vpop.permute.xlu0 %1373
    %v1376 = vadd.f32 %v1287, %v1374
    %v1377 = vtanh.pop %v1376
    %v1378 = vsub.f32 1.0, %v1366
    %1380 = vrot.lane.b32.xlu0 %v1377, 96
    %v1381 = vpop.permute.xlu0 %1380
    %v1383 = vmul.f32 %v1378, %v1381
    %v1384 = vmul.f32 %v1366, %v1039
    %v1385 = vadd.f32 %v1383, %v1384
    %v1386 = vlaneseq
    %v1387 = vshrl.u32 %v1386, 7
    %v1388 = vsub.s32 0, %v1387
    %v1389 = vrot.slane %v101, %v1388
    %1391 = vrot.lane.b32.xlu0 %v1385, 96
    %v1392 = vpop.permute.xlu0 %1391
    %v1393 = vsel %vm107, %v1392, 0
    %1395 = vmatprep.subr.mxu0 0.0
    %1396 = vmatpush1.msra.mxu0 %v97
    %1397 = vmatprep.subr.mxu0 0.0
    %1398 = vmatpush1.msra.mxu0 %v98
    %1399 = vmatprep.subr.mxu0 0.0
    %1400 = vmatpush1.msra.mxu0 %v99
    %1401 = vmatprep.subr.mxu0 0.0
    %1402 = vmatpush1.msra.mxu0 %v100
    %1403 = vmatprep.subr.mxu0 0.0
    %1404 = vmatpush1.msra.mxu0 0.0
    %1405 = vmatprep.subr.mxu0 0.0
    %1406 = vmatpush1.msra.mxu0 0.0
    %1407 = vmatprep.subr.mxu0 0.0
    %1408 = vmatpush1.msra.mxu0 0.0
    %1409 = vmatprep.subr.mxu0 0.0
    %1410 = vmatpush1.msra.mxu0 0.0
    %1411 = vmatprep.subr.mxu0 0.0
    %1412 = vmatpush1.msra.mxu0 0.0
    %1413 = vmatprep.subr.mxu0 0.0
    %1414 = vmatpush1.msra.mxu0 0.0
    %1415 = vmatprep.subr.mxu0 0.0
    %1416 = vmatpush1.msra.mxu0 0.0
    %1417 = vmatprep.subr.mxu0 0.0
    %1418 = vmatpush1.msra.mxu0 0.0
    %1419 = vmatprep.subr.mxu0 0.0
    %1420 = vmatpush1.msra.mxu0 0.0
    %1421 = vmatprep.subr.mxu0 0.0
    %1422 = vmatpush1.msra.mxu0 0.0
    %1423 = vmatprep.subr.mxu0 0.0
    %1424 = vmatpush1.msra.mxu0 0.0
    %1425 = vmatprep.subr.mxu0 0.0
    %1426 = vmatpush1.msra.mxu0 0.0
    %1427 = vmatprep.subr.mxu0 0.0
    %1428 = vmatpush1.msra.mxu0 0.0
    %1429 = vmatprep.subr.mxu0 0.0
    %1430 = vmatpush1.msra.mxu0 0.0
    %1431 = vmatprep.subr.mxu0 0.0
    %1432 = vmatpush1.msra.mxu0 0.0
    %1433 = vmatprep.subr.mxu0 0.0
    %1434 = vmatpush1.msra.mxu0 0.0
    %1435 = vmatprep.subr.mxu0 0.0
    %1436 = vmatpush1.msra.mxu0 0.0
    %1437 = vmatprep.subr.mxu0 0.0
    %1438 = vmatpush1.msra.mxu0 0.0
    %1439 = vmatprep.subr.mxu0 0.0
    %1440 = vmatpush1.msra.mxu0 0.0
    %1441 = vmatprep.subr.mxu0 0.0
    %1442 = vmatpush1.msra.mxu0 0.0
    %1443 = vmatprep.subr.mxu0 0.0
    %1444 = vmatpush1.msra.mxu0 0.0
    %1445 = vmatprep.subr.mxu0 0.0
    %1446 = vmatpush1.msra.mxu0 0.0
    %1447 = vmatprep.subr.mxu0 0.0
    %1448 = vmatpush1.msra.mxu0 0.0
    %1449 = vmatprep.subr.mxu0 0.0
    %1450 = vmatpush1.msra.mxu0 0.0
    %1451 = vmatprep.subr.mxu0 0.0
    %1452 = vmatpush1.msra.mxu0 0.0
    %1453 = vmatprep.subr.mxu0 0.0
    %1454 = vmatpush1.msra.mxu0 0.0
    %1455 = vmatprep.subr.mxu0 0.0
    %1456 = vmatpush1.msra.mxu0 0.0
    %1457 = vmatprep.subr.mxu0 0.0
    %1458 = vmatpush1.msra.mxu0 0.0
    %1459 = vmatprep.mubr.f32.mxu0 0.0
    %1460 = vmatmul.mubr.f32.gmra.mrb[0].mxu0 %v1393
    %v1461 = vpop.f32.mrb[0].mxu0
    %v1462 = vadd.f32 %v1389, %v1461
    %v1463 = vpop.f32.mrb[0].mxu0
    %1464 = vdwg.mxu0
    %v1465 = vsel %vm1023, %v1462, -inf
    %1466 = vmax.xlane.f32.xlu0 %v1465
    %v1467 = vpop.xlane.xlu0 %1466
    %v1468 = vsub.f32 %v1462, %v1467
    %v1469 = vmul.f32 %v1468, 1.442695
    %v1470 = vpow.pop %v1469
    %v1471 = vsel %vm1023, %v1470, 0.0
    %1472 = vadd.xlane.f32.xlu0 %v1471
    %v1473 = vpop.xlane.xlu0 %1472
    %v1474 = vlog2.pop %v1473
    %v1475 = vmul.f32 %v1474, 0.6931472
    %v1476 = vadd.f32 %v1475, %v1467
    %v1477 = vsub.f32 %v1462, %v1476
    %v1478 = vsel %vm1023, %v1477, -inf
    %1479 = vmax.xlane.f32.xlu0 %v1478
    %v1480 = vpop.xlane.xlu0 %1479
    %vm1481 = vcmp.eq.f32.partialorder %v1477, %v1480
    %v1482 = vsel %vm1481, %v58, 128.0
    %v1483 = vsel %vm1023, %v1482, inf
    %1484 = vmin.xlane.f32.xlu0 %v1483
    %v1485 = vpop.xlane.xlu0 %1484
    %vm1486 = vcmp.eq.f32.partialorder %v58, %v1485
    %v1487 = vsel %vm1486, -inf, %v1477
    %v1488 = vsel %vm1023, %v1487, -inf
    %1489 = vmax.xlane.f32.xlu0 %v1488
    %v1490 = vpop.xlane.xlu0 %1489
    %vm1491 = vcmp.eq.f32.partialorder %v1487, %v1490
    %v1492 = vsel %vm1491, %v58, 128.0
    %v1493 = vsel %vm1023, %v1492, inf
    %1494 = vmin.xlane.f32.xlu0 %v1493
    %v1495 = vpop.xlane.xlu0 %1494
    %v1497 = vrot.slane %v1495, 7
    %v1499 = vsel %vm1021, %v1485, %v1497
    %v1501 = vrot.slane %v1490, 7
    %v1503 = vsel %vm1021, %v1480, %v1501
    %vm1504 = vcmp.eq.f32.partialorder %v58, 1.0
    %1506 = vset.pattern.permute.xlu0 0
    %1507 = vperm.xlu0 %1506, %v1499
    %v1508 = vpop.permute.xlu0 %1507
    %v1510 = vsel %vm1504, %v1508, 0.0
    %v1511 = vmul.f32 %v1503, 1.442695
    %v1512 = vpow.pop %v1511
    %v1513 = vlaneseq
    %v1514 = vshrl.u32 %v1513, 7
    %v1515 = vsub.s32 1, %v1514
    %v1516 = vrot.slane %v1385, %v1515
    %1518 = vset.pattern.permute.xlu0 1
    %1519 = vperm.xlu0 %1518, %v1510
    %v1520 = vpop.permute.xlu0 %1519
    %vm1522 = vcmp.eq.f32.partialorder %v58, %v1520
    %v1523 = vsel %vm1522, 1, 0
    %v1524 = vcvt.s32.f32 %v1523
    %1525 = vmatprep.subr.mxu0 0.0
    %1526 = vmatpush1.msra.mxu0 %v81
    %1527 = vmatprep.subr.mxu0 0.0
    %1528 = vmatpush1.msra.mxu0 %v82
    %1529 = vmatprep.subr.mxu0 0.0
    %1530 = vmatpush1.msra.mxu0 %v83
    %1531 = vmatprep.subr.mxu0 0.0
    %1532 = vmatpush1.msra.mxu0 %v84
    %1533 = vmatprep.subr.mxu0 0.0
    %1534 = vmatpush1.msra.mxu0 %v85
    %1535 = vmatprep.subr.mxu0 0.0
    %1536 = vmatpush1.msra.mxu0 %v86
    %1537 = vmatprep.subr.mxu0 0.0
    %1538 = vmatpush1.msra.mxu0 %v87
    %1539 = vmatprep.subr.mxu0 0.0
    %1540 = vmatpush1.msra.mxu0 %v88
    %1541 = vmatprep.subr.mxu0 0.0
    %1542 = vmatpush1.msra.mxu0 %v89
    %1543 = vmatprep.subr.mxu0 0.0
    %1544 = vmatpush1.msra.mxu0 %v90
    %1545 = vmatprep.subr.mxu0 0.0
    %1546 = vmatpush1.msra.mxu0 %v91
    %1547 = vmatprep.subr.mxu0 0.0
    %1548 = vmatpush1.msra.mxu0 %v92
    %1549 = vmatprep.subr.mxu0 0.0
    %1550 = vmatpush1.msra.mxu0 %v93
    %1551 = vmatprep.subr.mxu0 0.0
    %1552 = vmatpush1.msra.mxu0 %v94
    %1553 = vmatprep.subr.mxu0 0.0
    %1554 = vmatpush1.msra.mxu0 %v95
    %1555 = vmatprep.subr.mxu0 0.0
    %1556 = vmatpush1.msra.mxu0 %v96
    %1557 = vmatprep.subr.mxu0 0.0
    %1558 = vmatpush1.msra.mxu0 0.0
    %1559 = vmatprep.subr.mxu0 0.0
    %1560 = vmatpush1.msra.mxu0 0.0
    %1561 = vmatprep.subr.mxu0 0.0
    %1562 = vmatpush1.msra.mxu0 0.0
    %1563 = vmatprep.subr.mxu0 0.0
    %1564 = vmatpush1.msra.mxu0 0.0
    %1565 = vmatprep.subr.mxu0 0.0
    %1566 = vmatpush1.msra.mxu0 0.0
    %1567 = vmatprep.subr.mxu0 0.0
    %1568 = vmatpush1.msra.mxu0 0.0
    %1569 = vmatprep.subr.mxu0 0.0
    %1570 = vmatpush1.msra.mxu0 0.0
    %1571 = vmatprep.subr.mxu0 0.0
    %1572 = vmatpush1.msra.mxu0 0.0
    %1573 = vmatprep.subr.mxu0 0.0
    %1574 = vmatpush1.msra.mxu0 0.0
    %1575 = vmatprep.subr.mxu0 0.0
    %1576 = vmatpush1.msra.mxu0 0.0
    %1577 = vmatprep.subr.mxu0 0.0
    %1578 = vmatpush1.msra.mxu0 0.0
    %1579 = vmatprep.subr.mxu0 0.0
    %1580 = vmatpush1.msra.mxu0 0.0
    %1581 = vmatprep.subr.mxu0 0.0
    %1582 = vmatpush1.msra.mxu0 0.0
    %1583 = vmatprep.subr.mxu0 0.0
    %1584 = vmatpush1.msra.mxu0 0.0
    %1585 = vmatprep.subr.mxu0 0.0
    %1586 = vmatpush1.msra.mxu0 0.0
    %1587 = vmatprep.subr.mxu0 0.0
    %1588 = vmatpush1.msra.mxu0 0.0
    %1589 = vmatprep.mubr.f32.mxu0 0.0
    %1590 = vmatmul.mubr.f32.gmra.mrb[0].mxu0 %v1524
    %v1591 = vpop.f32.mrb[0].mxu0
    %v1592 = vadd.f32 0.0, %v1591
    %v1593 = vpop.f32.mrb[0].mxu0
    %1594 = vdwg.mxu0
    %1596 = vrot.lane.b32.xlu0 %v1516, 96
    %v1597 = vpop.permute.xlu0 %1596
    %v1598 = vsel %vm107, %v1597, 0
    %1600 = vmatprep.subr.mxu0 0.0
    %1601 = vmatpush1.xpose.msra.mxu0 %v1048
    %1602 = vmatprep.subr.mxu0 0.0
    %1603 = vmatpush1.xpose.msra.mxu0 0.0
    %1604 = vmatprep.subr.mxu0 0.0
    %1605 = vmatpush1.xpose.msra.mxu0 0.0
    %1606 = vmatprep.subr.mxu0 0.0
    %1607 = vmatpush1.xpose.msra.mxu0 0.0
    %1608 = vmatprep.subr.mxu0 0.0
    %1609 = vmatpush1.xpose.msra.mxu0 0.0
    %1610 = vmatprep.subr.mxu0 0.0
    %1611 = vmatpush1.xpose.msra.mxu0 0.0
    %1612 = vmatprep.subr.mxu0 0.0
    %1613 = vmatpush1.xpose.msra.mxu0 0.0
    %1614 = vmatprep.subr.mxu0 0.0
    %1615 = vmatpush1.xpose.msra.mxu0 0.0
    %1616 = vmatprep.subr.mxu0 0.0
    %1617 = vmatpush1.xpose.msra.mxu0 0.0
    %1618 = vmatprep.subr.mxu0 0.0
    %1619 = vmatpush1.xpose.msra.mxu0 0.0
    %1620 = vmatprep.subr.mxu0 0.0
    %1621 = vmatpush1.xpose.msra.mxu0 0.0
    %1622 = vmatprep.subr.mxu0 0.0
    %1623 = vmatpush1.xpose.msra.mxu0 0.0
    %1624 = vmatprep.subr.mxu0 0.0
    %1625 = vmatpush1.xpose.msra.mxu0 0.0
    %1626 = vmatprep.subr.mxu0 0.0
    %1627 = vmatpush1.xpose.msra.mxu0 0.0
    %1628 = vmatprep.subr.mxu0 0.0
    %1629 = vmatpush1.xpose.msra.mxu0 0.0
    %1630 = vmatprep.subr.mxu0 0.0
    %1631 = vmatpush1.xpose.msra.mxu0 0.0
    %1632 = vmatprep.subr.mxu0 0.0
    %1633 = vmatpush1.xpose.msra.mxu0 0.0
    %1634 = vmatprep.subr.mxu0 0.0
    %1635 = vmatpush1.xpose.msra.mxu0 0.0
    %1636 = vmatprep.subr.mxu0 0.0
    %1637 = vmatpush1.xpose.msra.mxu0 0.0
    %1638 = vmatprep.subr.mxu0 0.0
    %1639 = vmatpush1.xpose.msra.mxu0 0.0
    %1640 = vmatprep.subr.mxu0 0.0
    %1641 = vmatpush1.xpose.msra.mxu0 0.0
    %1642 = vmatprep.subr.mxu0 0.0
    %1643 = vmatpush1.xpose.msra.mxu0 0.0
    %1644 = vmatprep.subr.mxu0 0.0
    %1645 = vmatpush1.xpose.msra.mxu0 0.0
    %1646 = vmatprep.subr.mxu0 0.0
    %1647 = vmatpush1.xpose.msra.mxu0 0.0
    %1648 = vmatprep.subr.mxu0 0.0
    %1649 = vmatpush1.xpose.msra.mxu0 0.0
    %1650 = vmatprep.subr.mxu0 0.0
    %1651 = vmatpush1.xpose.msra.mxu0 0.0
    %1652 = vmatprep.subr.mxu0 0.0
    %1653 = vmatpush1.xpose.msra.mxu0 0.0
    %1654 = vmatprep.subr.mxu0 0.0
    %1655 = vmatpush1.xpose.msra.mxu0 0.0
    %1656 = vmatprep.subr.mxu0 0.0
    %1657 = vmatpush1.xpose.msra.mxu0 0.0
    %1658 = vmatprep.subr.mxu0 0.0
    %1659 = vmatpush1.xpose.msra.mxu0 0.0
    %1660 = vmatprep.subr.mxu0 0.0
    %1661 = vmatpush1.xpose.msra.mxu0 0.0
    %1662 = vmatprep.subr.mxu0 0.0
    %1663 = vmatpush1.xpose.msra.mxu0 0.0
    %1664 = vmatprep.mubr.f32.mxu0 0.0
    %1665 = vmatmul.mubr.f32.gmra.mrb[0].mxu0 %v1598
    %v1666 = vpop.f32.mrb[0].mxu0
    %v1667 = vadd.f32 0.0, %v1666
    %v1668 = vpop.f32.mrb[0].mxu0
    %1669 = vdwg.mxu0
    %v1670 = vsel %vm1120, %v1667, -inf
    %1671 = vmax.xlane.f32.xlu0 %v1670
    %v1672 = vpop.xlane.xlu0 %1671
    %v1673 = vsub.f32 %v1667, %v1672
    %v1674 = vmul.f32 %v1673, 1.442695
    %v1675 = vpow.pop %v1674
    %v1676 = vsel %vm1120, %v1675, 0.0
    %1677 = vadd.xlane.f32.xlu0 %v1676
    %v1678 = vpop.xlane.xlu0 %1677
    %v1679 = vrcp.pop %v1678
    %v1680 = vmul.f32 %v1675, %v1679
    %v1682 = vsel %vm1133, %v1680, 0
    %1684 = vmatprep.subr.mxu0 0.0
    %1685 = vmatpush1.msra.mxu0 %v1045
    %1686 = vmatprep.subr.mxu0 0.0
    %1687 = vmatpush1.msra.mxu0 0.0
    %1688 = vmatprep.subr.mxu0 0.0
    %1689 = vmatpush1.msra.mxu0 0.0
    %1690 = vmatprep.subr.mxu0 0.0
    %1691 = vmatpush1.msra.mxu0 0.0
    %1692 = vmatprep.subr.mxu0 0.0
    %1693 = vmatpush1.msra.mxu0 0.0
    %1694 = vmatprep.subr.mxu0 0.0
    %1695 = vmatpush1.msra.mxu0 0.0
    %1696 = vmatprep.subr.mxu0 0.0
    %1697 = vmatpush1.msra.mxu0 0.0
    %1698 = vmatprep.subr.mxu0 0.0
    %1699 = vmatpush1.msra.mxu0 0.0
    %1700 = vmatprep.subr.mxu0 0.0
    %1701 = vmatpush1.msra.mxu0 0.0
    %1702 = vmatprep.subr.mxu0 0.0
    %1703 = vmatpush1.msra.mxu0 0.0
    %1704 = vmatprep.subr.mxu0 0.0
    %1705 = vmatpush1.msra.mxu0 0.0
    %1706 = vmatprep.subr.mxu0 0.0
    %1707 = vmatpush1.msra.mxu0 0.0
    %1708 = vmatprep.subr.mxu0 0.0
    %1709 = vmatpush1.msra.mxu0 0.0
    %1710 = vmatprep.subr.mxu0 0.0
    %1711 = vmatpush1.msra.mxu0 0.0
    %1712 = vmatprep.subr.mxu0 0.0
    %1713 = vmatpush1.msra.mxu0 0.0
    %1714 = vmatprep.subr.mxu0 0.0
    %1715 = vmatpush1.msra.mxu0 0.0
    %1716 = vmatprep.subr.mxu0 0.0
    %1717 = vmatpush1.msra.mxu0 0.0
    %1718 = vmatprep.subr.mxu0 0.0
    %1719 = vmatpush1.msra.mxu0 0.0
    %1720 = vmatprep.subr.mxu0 0.0
    %1721 = vmatpush1.msra.mxu0 0.0
    %1722 = vmatprep.subr.mxu0 0.0
    %1723 = vmatpush1.msra.mxu0 0.0
    %1724 = vmatprep.subr.mxu0 0.0
    %1725 = vmatpush1.msra.mxu0 0.0
    %1726 = vmatprep.subr.mxu0 0.0
    %1727 = vmatpush1.msra.mxu0 0.0
    %1728 = vmatprep.subr.mxu0 0.0
    %1729 = vmatpush1.msra.mxu0 0.0
    %1730 = vmatprep.subr.mxu0 0.0
    %1731 = vmatpush1.msra.mxu0 0.0
    %1732 = vmatprep.subr.mxu0 0.0
    %1733 = vmatpush1.msra.mxu0 0.0
    %1734 = vmatprep.subr.mxu0 0.0
    %1735 = vmatpush1.msra.mxu0 0.0
    %1736 = vmatprep.subr.mxu0 0.0
    %1737 = vmatpush1.msra.mxu0 0.0
    %1738 = vmatprep.subr.mxu0 0.0
    %1739 = vmatpush1.msra.mxu0 0.0
    %1740 = vmatprep.subr.mxu0 0.0
    %1741 = vmatpush1.msra.mxu0 0.0
    %1742 = vmatprep.subr.mxu0 0.0
    %1743 = vmatpush1.msra.mxu0 0.0
    %1744 = vmatprep.subr.mxu0 0.0
    %1745 = vmatpush1.msra.mxu0 0.0
    %1746 = vmatprep.subr.mxu0 0.0
    %1747 = vmatpush1.msra.mxu0 0.0
    %1748 = vmatprep.mubr.f32.mxu0 0.0
    %1749 = vmatmul.mubr.f32.gmra.mrb[0].mxu0 %v1682
    %v1750 = vpop.f32.mrb[0].mxu0
    %v1751 = vadd.f32 0.0, %v1750
    %v1752 = vpop.f32.mrb[0].mxu0
    %1753 = vdwg.mxu0
    %1755 = vrot.lane.b32.xlu0 %v1751, 32
    %v1756 = vpop.permute.xlu0 %1755
    %v1758 = vsel %vm107, %v1592, %v1756
    %v1760 = vsel %vm1216, %v1758, 0
    %1762 = vmatprep.subr.mxu0 0.0
    %1763 = vmatpush1.msra.mxu0 %v68
    %1764 = vmatprep.subr.mxu0 0.0
    %1765 = vmatpush1.msra.mxu0 %v69
    %1766 = vmatprep.subr.mxu0 0.0
    %1767 = vmatpush1.msra.mxu0 %v70
    %1768 = vmatprep.subr.mxu0 0.0
    %1769 = vmatpush1.msra.mxu0 %v71
    %1770 = vmatprep.subr.mxu0 0.0
    %1771 = vmatpush1.msra.mxu0 %v72
    %1772 = vmatprep.subr.mxu0 0.0
    %1773 = vmatpush1.msra.mxu0 %v73
    %1774 = vmatprep.subr.mxu0 0.0
    %1775 = vmatpush1.msra.mxu0 %v74
    %1776 = vmatprep.subr.mxu0 0.0
    %1777 = vmatpush1.msra.mxu0 %v75
    %1778 = vmatprep.subr.mxu0 0.0
    %1779 = vmatpush1.msra.mxu0 0.0
    %1780 = vmatprep.subr.mxu0 0.0
    %1781 = vmatpush1.msra.mxu0 0.0
    %1782 = vmatprep.subr.mxu0 0.0
    %1783 = vmatpush1.msra.mxu0 0.0
    %1784 = vmatprep.subr.mxu0 0.0
    %1785 = vmatpush1.msra.mxu0 0.0
    %1786 = vmatprep.subr.mxu0 0.0
    %1787 = vmatpush1.msra.mxu0 0.0
    %1788 = vmatprep.subr.mxu0 0.0
    %1789 = vmatpush1.msra.mxu0 0.0
    %1790 = vmatprep.subr.mxu0 0.0
    %1791 = vmatpush1.msra.mxu0 0.0
    %1792 = vmatprep.subr.mxu0 0.0
    %1793 = vmatpush1.msra.mxu0 0.0
    %1794 = vmatprep.subr.mxu0 0.0
    %1795 = vmatpush1.msra.mxu0 0.0
    %1796 = vmatprep.subr.mxu0 0.0
    %1797 = vmatpush1.msra.mxu0 0.0
    %1798 = vmatprep.subr.mxu0 0.0
    %1799 = vmatpush1.msra.mxu0 0.0
    %1800 = vmatprep.subr.mxu0 0.0
    %1801 = vmatpush1.msra.mxu0 0.0
    %1802 = vmatprep.subr.mxu0 0.0
    %1803 = vmatpush1.msra.mxu0 0.0
    %1804 = vmatprep.subr.mxu0 0.0
    %1805 = vmatpush1.msra.mxu0 0.0
    %1806 = vmatprep.subr.mxu0 0.0
    %1807 = vmatpush1.msra.mxu0 0.0
    %1808 = vmatprep.subr.mxu0 0.0
    %1809 = vmatpush1.msra.mxu0 0.0
    %1810 = vmatprep.subr.mxu0 0.0
    %1811 = vmatpush1.msra.mxu0 0.0
    %1812 = vmatprep.subr.mxu0 0.0
    %1813 = vmatpush1.msra.mxu0 0.0
    %1814 = vmatprep.subr.mxu0 0.0
    %1815 = vmatpush1.msra.mxu0 0.0
    %1816 = vmatprep.subr.mxu0 0.0
    %1817 = vmatpush1.msra.mxu0 0.0
    %1818 = vmatprep.subr.mxu0 0.0
    %1819 = vmatpush1.msra.mxu0 0.0
    %1820 = vmatprep.subr.mxu0 0.0
    %1821 = vmatpush1.msra.mxu0 0.0
    %1822 = vmatprep.subr.mxu0 0.0
    %1823 = vmatpush1.msra.mxu0 0.0
    %1824 = vmatprep.subr.mxu0 0.0
    %1825 = vmatpush1.msra.mxu0 0.0
    %1826 = vmatprep.mubr.f32.mxu0 0.0
    %1827 = vmatmul.mubr.f32.gmra.mrb[0].mxu0 %v1760
    %v1828 = vpop.f32.mrb[0].mxu0
    %v1829 = vadd.f32 %v1215, %v1828
    %v1830 = vpop.f32.mrb[0].mxu0
    %1831 = vdwg.mxu0
    %1832 = vmatprep.subr.mxu0 0.0
    %1833 = vmatpush1.msra.mxu0 %v76
    %1834 = vmatprep.subr.mxu0 0.0
    %1835 = vmatpush1.msra.mxu0 %v77
    %1836 = vmatprep.subr.mxu0 0.0
    %1837 = vmatpush1.msra.mxu0 %v78
    %1838 = vmatprep.subr.mxu0 0.0
    %1839 = vmatpush1.msra.mxu0 %v79
    %1840 = vmatprep.subr.mxu0 0.0
    %1841 = vmatpush1.msra.mxu0 0.0
    %1842 = vmatprep.subr.mxu0 0.0
    %1843 = vmatpush1.msra.mxu0 0.0
    %1844 = vmatprep.subr.mxu0 0.0
    %1845 = vmatpush1.msra.mxu0 0.0
    %1846 = vmatprep.subr.mxu0 0.0
    %1847 = vmatpush1.msra.mxu0 0.0
    %1848 = vmatprep.subr.mxu0 0.0
    %1849 = vmatpush1.msra.mxu0 0.0
    %1850 = vmatprep.subr.mxu0 0.0
    %1851 = vmatpush1.msra.mxu0 0.0
    %1852 = vmatprep.subr.mxu0 0.0
    %1853 = vmatpush1.msra.mxu0 0.0
    %1854 = vmatprep.subr.mxu0 0.0
    %1855 = vmatpush1.msra.mxu0 0.0
    %1856 = vmatprep.subr.mxu0 0.0
    %1857 = vmatpush1.msra.mxu0 0.0
    %1858 = vmatprep.subr.mxu0 0.0
    %1859 = vmatpush1.msra.mxu0 0.0
    %1860 = vmatprep.subr.mxu0 0.0
    %1861 = vmatpush1.msra.mxu0 0.0
    %1862 = vmatprep.subr.mxu0 0.0
    %1863 = vmatpush1.msra.mxu0 0.0
    %1864 = vmatprep.subr.mxu0 0.0
    %1865 = vmatpush1.msra.mxu0 0.0
    %1866 = vmatprep.subr.mxu0 0.0
    %1867 = vmatpush1.msra.mxu0 0.0
    %1868 = vmatprep.subr.mxu0 0.0
    %1869 = vmatpush1.msra.mxu0 0.0
    %1870 = vmatprep.subr.mxu0 0.0
    %1871 = vmatpush1.msra.mxu0 0.0
    %1872 = vmatprep.subr.mxu0 0.0
    %1873 = vmatpush1.msra.mxu0 0.0
    %1874 = vmatprep.subr.mxu0 0.0
    %1875 = vmatpush1.msra.mxu0 0.0
    %1876 = vmatprep.subr.mxu0 0.0
    %1877 = vmatpush1.msra.mxu0 0.0
    %1878 = vmatprep.subr.mxu0 0.0
    %1879 = vmatpush1.msra.mxu0 0.0
    %1880 = vmatprep.subr.mxu0 0.0
    %1881 = vmatpush1.msra.mxu0 0.0
    %1882 = vmatprep.subr.mxu0 0.0
    %1883 = vmatpush1.msra.mxu0 0.0
    %1884 = vmatprep.subr.mxu0 0.0
    %1885 = vmatpush1.msra.mxu0 0.0
    %1886 = vmatprep.subr.mxu0 0.0
    %1887 = vmatpush1.msra.mxu0 0.0
    %1888 = vmatprep.subr.mxu0 0.0
    %1889 = vmatpush1.msra.mxu0 0.0
    %1890 = vmatprep.subr.mxu0 0.0
    %1891 = vmatpush1.msra.mxu0 0.0
    %1892 = vmatprep.subr.mxu0 0.0
    %1893 = vmatpush1.msra.mxu0 0.0
    %1894 = vmatprep.subr.mxu0 0.0
    %1895 = vmatpush1.msra.mxu0 0.0
    %1896 = vmatprep.mubr.f32.mxu0 0.0
    %1897 = vmatmul.mubr.f32.gmra.mrb[0].mxu0 %v1598
    %v1898 = vpop.f32.mrb[0].mxu0
    %v1899 = vadd.f32 0.0, %v1898
    %v1900 = vpop.f32.mrb[0].mxu0
    %1901 = vdwg.mxu0
    %v1902 = vadd.f32 %v1829, %v1899
    %v1903 = vxor.u32 %v1902, 2147483648
    %v1904 = vmul.f32 %v1903, 1.442695
    %v1905 = vpow.pop %v1904
    %v1906 = vadd.f32 %v1905, 1.0
    %v1907 = vrcp.pop %v1906
    %v1908 = vmul.f32 1.0, %v1907
    %1910 = vrot.lane.b32.xlu0 %v1899, 64
    %v1911 = vpop.permute.xlu0 %1910
    %v1913 = vmul.f32 %v1908, %v1911
    %1915 = vrot.lane.b32.xlu0 %v1913, 64
    %v1916 = vpop.permute.xlu0 %1915
    %v1918 = vadd.f32 %v1829, %v1916
    %v1919 = vtanh.pop %v1918
    %v1920 = vsub.f32 1.0, %v1908
    %1922 = vrot.lane.b32.xlu0 %v1919, 96
    %v1923 = vpop.permute.xlu0 %1922
    %v1925 = vmul.f32 %v1920, %v1923
    %v1926 = vmul.f32 %v1908, %v1516
    %v1927 = vadd.f32 %v1925, %v1926
    %1929 = vrot.lane.b32.xlu0 %v1927, 96
    %v1930 = vpop.permute.xlu0 %1929
    %v1931 = vsel %vm107, %v1930, 0
    %1933 = vmatprep.subr.mxu0 0.0
    %1934 = vmatpush1.msra.mxu0 %v97
    %1935 = vmatprep.subr.mxu0 0.0
    %1936 = vmatpush1.msra.mxu0 %v98
    %1937 = vmatprep.subr.mxu0 0.0
    %1938 = vmatpush1.msra.mxu0 %v99
    %1939 = vmatprep.subr.mxu0 0.0
    %1940 = vmatpush1.msra.mxu0 %v100
    %1941 = vmatprep.subr.mxu0 0.0
    %1942 = vmatpush1.msra.mxu0 0.0
    %1943 = vmatprep.subr.mxu0 0.0
    %1944 = vmatpush1.msra.mxu0 0.0
    %1945 = vmatprep.subr.mxu0 0.0
    %1946 = vmatpush1.msra.mxu0 0.0
    %1947 = vmatprep.subr.mxu0 0.0
    %1948 = vmatpush1.msra.mxu0 0.0
    %1949 = vmatprep.subr.mxu0 0.0
    %1950 = vmatpush1.msra.mxu0 0.0
    %1951 = vmatprep.subr.mxu0 0.0
    %1952 = vmatpush1.msra.mxu0 0.0
    %1953 = vmatprep.subr.mxu0 0.0
    %1954 = vmatpush1.msra.mxu0 0.0
    %1955 = vmatprep.subr.mxu0 0.0
    %1956 = vmatpush1.msra.mxu0 0.0
    %1957 = vmatprep.subr.mxu0 0.0
    %1958 = vmatpush1.msra.mxu0 0.0
    %1959 = vmatprep.subr.mxu0 0.0
    %1960 = vmatpush1.msra.mxu0 0.0
    %1961 = vmatprep.subr.mxu0 0.0
    %1962 = vmatpush1.msra.mxu0 0.0
    %1963 = vmatprep.subr.mxu0 0.0
    %1964 = vmatpush1.msra.mxu0 0.0
    %1965 = vmatprep.subr.mxu0 0.0
    %1966 = vmatpush1.msra.mxu0 0.0
    %1967 = vmatprep.subr.mxu0 0.0
    %1968 = vmatpush1.msra.mxu0 0.0
    %1969 = vmatprep.subr.mxu0 0.0
    %1970 = vmatpush1.msra.mxu0 0.0
    %1971 = vmatprep.subr.mxu0 0.0
    %1972 = vmatpush1.msra.mxu0 0.0
    %1973 = vmatprep.subr.mxu0 0.0
    %1974 = vmatpush1.msra.mxu0 0.0
    %1975 = vmatprep.subr.mxu0 0.0
    %1976 = vmatpush1.msra.mxu0 0.0
    %1977 = vmatprep.subr.mxu0 0.0
    %1978 = vmatpush1.msra.mxu0 0.0
    %1979 = vmatprep.subr.mxu0 0.0
    %1980 = vmatpush1.msra.mxu0 0.0
    %1981 = vmatprep.subr.mxu0 0.0
    %1982 = vmatpush1.msra.mxu0 0.0
    %1983 = vmatprep.subr.mxu0 0.0
    %1984 = vmatpush1.msra.mxu0 0.0
    %1985 = vmatprep.subr.mxu0 0.0
    %1986 = vmatpush1.msra.mxu0 0.0
    %1987 = vmatprep.subr.mxu0 0.0
    %1988 = vmatpush1.msra.mxu0 0.0
    %1989 = vmatprep.subr.mxu0 0.0
    %1990 = vmatpush1.msra.mxu0 0.0
    %1991 = vmatprep.subr.mxu0 0.0
    %1992 = vmatpush1.msra.mxu0 0.0
    %1993 = vmatprep.subr.mxu0 0.0
    %1994 = vmatpush1.msra.mxu0 0.0
    %1995 = vmatprep.subr.mxu0 0.0
    %1996 = vmatpush1.msra.mxu0 0.0
    %1997 = vmatprep.mubr.f32.mxu0 0.0
    %1998 = vmatmul.mubr.f32.gmra.mrb[0].mxu0 %v1931
    %v1999 = vpop.f32.mrb[0].mxu0
    %v2000 = vadd.f32 %v1389, %v1999
    %v2001 = vpop.f32.mrb[0].mxu0
    %2002 = vdwg.mxu0
    %v2003 = vsel %vm1023, %v2000, -inf
    %2004 = vmax.xlane.f32.xlu0 %v2003
    %v2005 = vpop.xlane.xlu0 %2004
    %v2006 = vsub.f32 %v2000, %v2005
    %v2007 = vmul.f32 %v2006, 1.442695
    %v2008 = vpow.pop %v2007
    %v2009 = vsel %vm1023, %v2008, 0.0
    %2010 = vadd.xlane.f32.xlu0 %v2009
    %v2011 = vpop.xlane.xlu0 %2010
    %v2012 = vlog2.pop %v2011
    %v2013 = vmul.f32 %v2012, 0.6931472
    %v2014 = vadd.f32 %v2013, %v2005
    %v2015 = vsub.f32 %v2000, %v2014
    %v2016 = vsel %vm1023, %v2015, -inf
    %2017 = vmax.xlane.f32.xlu0 %v2016
    %v2018 = vpop.xlane.xlu0 %2017
    %vm2019 = vcmp.eq.f32.partialorder %v2015, %v2018
    %v2020 = vsel %vm2019, %v58, 128.0
    %v2021 = vsel %vm1023, %v2020, inf
    %2022 = vmin.xlane.f32.xlu0 %v2021
    %v2023 = vpop.xlane.xlu0 %2022
    %vm2024 = vcmp.eq.f32.partialorder %v58, %v2023
    %v2025 = vsel %vm2024, -inf, %v2015
    %v2026 = vsel %vm1023, %v2025, -inf
    %2027 = vmax.xlane.f32.xlu0 %v2026
    %v2028 = vpop.xlane.xlu0 %2027
    %vm2029 = vcmp.eq.f32.partialorder %v2025, %v2028
    %v2030 = vsel %vm2029, %v58, 128.0
    %v2031 = vsel %vm1023, %v2030, inf
    %2032 = vmin.xlane.f32.xlu0 %v2031
    %v2033 = vpop.xlane.xlu0 %2032
    %vm2034 = vcmask 7168
    %v2035 = vsel %vm2034, %v2018, %v2028
    %v2036 = vsel %vm2034, %v2023, %v2033
    %v2037 = vmul.f32 %v2035, 1.442695
    %v2038 = vpow.pop %v2037
    %2040 = vset.pattern.permute.xlu0 0
    %2041 = vperm.xlu0 %2040, %v1512
    %v2042 = vpop.permute.xlu0 %2041
    %v2044 = vmul.f32 %v2038, %v2042
    %v2046 = vrot.slane %v2044, 1
    %2047 = vrot.lane.b32.xlu0 %v2046, 2
    %v2048 = vpop.permute.xlu0 %2047
    %vm2050 = vcmask 15360
    %v2051 = vsel %vm2050, %v2044, %v2048
    %v2053 = vrot.slane %v2036, 1
    %2054 = vrot.lane.b32.xlu0 %v2053, 2
    %v2055 = vpop.permute.xlu0 %2054
    %v2057 = vsel %vm2050, %v2036, %v2055
    %vm2058 = vcmask 24576
    %v2059 = vsel %vm2058, %v2051, -inf
    %2060 = vmax.xlane.f32.xlu0 %v2059
    %v2061 = vpop.xlane.xlu0 %2060
    %vm2062 = vcmp.eq.f32.partialorder %v2051, %v2061
    %v2063 = vsel %vm2062, %v58, 4.0
    %v2064 = vsel %vm2058, %v2063, inf
    %2065 = vmin.xlane.f32.xlu0 %v2064
    %v2066 = vpop.xlane.xlu0 %2065
    %vm2067 = vcmp.eq.f32.partialorder %v58, %v2066
    %v2068 = vsel %vm2067, 1, 0
    %v2069 = vcvt.s32.f32 %v2068
    %v2070 = vmul.f32 %v2066, 0.5
    %v2071 = vfloor.f32 %v2070
    %vm2072 = vcmp.eq.f32.partialorder %v58, %v2071
    %v2073 = vsel %vm2072, 1, 0
    %v2074 = vcvt.s32.f32 %v2073
    %v2075 = vmul.f32 %v2069, %v2057
    %v2076 = vsel %vm2058, %v2075, 0.0
    %2077 = vadd.xlane.f32.xlu0 %v2076
    %v2078 = vpop.xlane.xlu0 %2077
    %vm2079 = vcmp.gt.f32.partialorder %v2069, 0.0
    %v2080 = vsel %vm2079, -inf, %v2051
    %v2081 = vsel %vm2058, %v2080, -inf
    %2082 = vmax.xlane.f32.xlu0 %v2081
    %v2083 = vpop.xlane.xlu0 %2082
    %vm2084 = vcmp.eq.f32.partialorder %v2080, %v2083
    %v2085 = vsel %vm2084, %v58, 4.0
    %v2086 = vsel %vm2058, %v2085, inf
    %2087 = vmin.xlane.f32.xlu0 %v2086
    %v2088 = vpop.xlane.xlu0 %2087
    %vm2089 = vcmp.eq.f32.partialorder %v58, %v2088
    %v2090 = vsel %vm2089, 1, 0
    %v2091 = vcvt.s32.f32 %v2090
    %v2092 = vmul.f32 %v2088, 0.5
    %v2093 = vfloor.f32 %v2092
    %vm2094 = vcmp.eq.f32.partialorder %v58, %v2093
    %v2095 = vsel %vm2094, 1, 0
    %v2096 = vcvt.s32.f32 %v2095
    %v2097 = vmul.f32 %v2091, %v2057
    %v2098 = vsel %vm2058, %v2097, 0.0
    %2099 = vadd.xlane.f32.xlu0 %v2098
    %v2100 = vpop.xlane.xlu0 %2099
    %v2102 = vrot.slane %v2096, 7
    %v2104 = vsel %vm1021, %v2074, %v2102
    %v2106 = vrot.slane %v2083, 7
    %v2108 = vsel %vm1021, %v2061, %v2106
    %v2110 = vrot.slane %v2100, 7
    %v2112 = vsel %vm1021, %v2078, %v2110
    %2114 = vset.pattern.permute.xlu0 0
    %2115 = vperm.xlu0 %2114, %v2104
    %v2116 = vpop.permute.xlu0 %2115
    %v2118 = vlaneseq
    %v2119 = vshrl.u32 %v2118, 7
    %v2120 = vsub.s32 0, %v2119
    %v2121 = vrot.slane %v1510, %v2120
    %v2122 = vmul.f32 %v2116, %v2121
    %v2123 = vlaneseq
    %v2124 = vshrl.u32 %v2123, 7
    %v2125 = vsub.s32 0, %v2124
    %v2126 = vrot.slane %v1927, %v2125
    %v2127 = vmul.f32 %v2116, %v2126
    %2128 = vset.pattern.permute.xlu0 1
    %2129 = vperm.xlu0 %2128, %v2104
    %v2130 = vpop.permute.xlu0 %2129
    %v2132 = vlaneseq
    %v2133 = vshrl.u32 %v2132, 7
    %v2134 = vsub.s32 1, %v2133
    %v2135 = vrot.slane %v1510, %v2134
    %v2136 = vmul.f32 %v2130, %v2135
    %v2137 = vadd.f32 %v2122, %v2136
    %v2138 = vlaneseq
    %v2139 = vshrl.u32 %v2138, 7
    %v2140 = vsub.s32 1, %v2139
    %v2141 = vrot.slane %v1927, %v2140
    %v2142 = vmul.f32 %v2130, %v2141
    %v2143 = vadd.f32 %v2127, %v2142
    %vm2144 = vcmp.eq.f32.partialorder %v58, 2.0
    %2146 = vset.pattern.permute.xlu0 0
    %2147 = vperm.xlu0 %2146, %v2112
    %v2148 = vpop.permute.xlu0 %2147
    %v2150 = vsel %vm2144, %v2148, %v2137
    %2152 = vset.pattern.permute.xlu0 2
    %2153 = vperm.xlu0 %2152, %v2150
    %v2154 = vpop.permute.xlu0 %2153
    %vm2156 = vcmp.eq.f32.partialorder %v58, %v2154
    %v2157 = vsel %vm2156, 1, 0
    %v2158 = vcvt.s32.f32 %v2157
    %2159 = vmatprep.subr.mxu0 0.0
    %2160 = vmatpush1.msra.mxu0 %v81
    %2161 = vmatprep.subr.mxu0 0.0
    %2162 = vmatpush1.msra.mxu0 %v82
    %2163 = vmatprep.subr.mxu0 0.0
    %2164 = vmatpush1.msra.mxu0 %v83
    %2165 = vmatprep.subr.mxu0 0.0
    %2166 = vmatpush1.msra.mxu0 %v84
    %2167 = vmatprep.subr.mxu0 0.0
    %2168 = vmatpush1.msra.mxu0 %v85
    %2169 = vmatprep.subr.mxu0 0.0
    %2170 = vmatpush1.msra.mxu0 %v86
    %2171 = vmatprep.subr.mxu0 0.0
    %2172 = vmatpush1.msra.mxu0 %v87
    %2173 = vmatprep.subr.mxu0 0.0
    %2174 = vmatpush1.msra.mxu0 %v88
    %2175 = vmatprep.subr.mxu0 0.0
    %2176 = vmatpush1.msra.mxu0 %v89
    %2177 = vmatprep.subr.mxu0 0.0
    %2178 = vmatpush1.msra.mxu0 %v90
    %2179 = vmatprep.subr.mxu0 0.0
    %2180 = vmatpush1.msra.mxu0 %v91
    %2181 = vmatprep.subr.mxu0 0.0
    %2182 = vmatpush1.msra.mxu0 %v92
    %2183 = vmatprep.subr.mxu0 0.0
    %2184 = vmatpush1.msra.mxu0 %v93
    %2185 = vmatprep.subr.mxu0 0.0
    %2186 = vmatpush1.msra.mxu0 %v94
    %2187 = vmatprep.subr.mxu0 0.0
    %2188 = vmatpush1.msra.mxu0 %v95
    %2189 = vmatprep.subr.mxu0 0.0
    %2190 = vmatpush1.msra.mxu0 %v96
    %2191 = vmatprep.subr.mxu0 0.0
    %2192 = vmatpush1.msra.mxu0 0.0
    %2193 = vmatprep.subr.mxu0 0.0
    %2194 = vmatpush1.msra.mxu0 0.0
    %2195 = vmatprep.subr.mxu0 0.0
    %2196 = vmatpush1.msra.mxu0 0.0
    %2197 = vmatprep.subr.mxu0 0.0
    %2198 = vmatpush1.msra.mxu0 0.0
    %2199 = vmatprep.subr.mxu0 0.0
    %2200 = vmatpush1.msra.mxu0 0.0
    %2201 = vmatprep.subr.mxu0 0.0
    %2202 = vmatpush1.msra.mxu0 0.0
    %2203 = vmatprep.subr.mxu0 0.0
    %2204 = vmatpush1.msra.mxu0 0.0
    %2205 = vmatprep.subr.mxu0 0.0
    %2206 = vmatpush1.msra.mxu0 0.0
    %2207 = vmatprep.subr.mxu0 0.0
    %2208 = vmatpush1.msra.mxu0 0.0
    %2209 = vmatprep.subr.mxu0 0.0
    %2210 = vmatpush1.msra.mxu0 0.0
    %2211 = vmatprep.subr.mxu0 0.0
    %2212 = vmatpush1.msra.mxu0 0.0
    %2213 = vmatprep.subr.mxu0 0.0
    %2214 = vmatpush1.msra.mxu0 0.0
    %2215 = vmatprep.subr.mxu0 0.0
    %2216 = vmatpush1.msra.mxu0 0.0
    %2217 = vmatprep.subr.mxu0 0.0
    %2218 = vmatpush1.msra.mxu0 0.0
    %2219 = vmatprep.subr.mxu0 0.0
    %2220 = vmatpush1.msra.mxu0 0.0
    %2221 = vmatprep.subr.mxu0 0.0
    %2222 = vmatpush1.msra.mxu0 0.0
    %2223 = vmatprep.mubr.f32.mxu0 0.0
    %2224 = vmatmul.mubr.f32.gmra.mrb[0].mxu0 %v2158
    %v2225 = vpop.f32.mrb[0].mxu0
    %v2226 = vadd.f32 0.0, %v2225
    %v2227 = vpop.f32.mrb[0].mxu0
    %2228 = vdwg.mxu0
    %2230 = vrot.lane.b32.xlu0 %v2143, 96
    %v2231 = vpop.permute.xlu0 %2230
    %v2232 = vsel %vm107, %v2231, 0
    %2234 = vmatprep.subr.mxu0 0.0
    %2235 = vmatpush1.xpose.msra.mxu0 %v1048
    %2236 = vmatprep.subr.mxu0 0.0
    %2237 = vmatpush1.xpose.msra.mxu0 0.0
    %2238 = vmatprep.subr.mxu0 0.0
    %2239 = vmatpush1.xpose.msra.mxu0 0.0
    %2240 = vmatprep.subr.mxu0 0.0
    %2241 = vmatpush1.xpose.msra.mxu0 0.0
    %2242 = vmatprep.subr.mxu0 0.0
    %2243 = vmatpush1.xpose.msra.mxu0 0.0
    %2244 = vmatprep.subr.mxu0 0.0
    %2245 = vmatpush1.xpose.msra.mxu0 0.0
    %2246 = vmatprep.subr.mxu0 0.0
    %2247 = vmatpush1.xpose.msra.mxu0 0.0
    %2248 = vmatprep.subr.mxu0 0.0
    %2249 = vmatpush1.xpose.msra.mxu0 0.0
    %2250 = vmatprep.subr.mxu0 0.0
    %2251 = vmatpush1.xpose.msra.mxu0 0.0
    %2252 = vmatprep.subr.mxu0 0.0
    %2253 = vmatpush1.xpose.msra.mxu0 0.0
    %2254 = vmatprep.subr.mxu0 0.0
    %2255 = vmatpush1.xpose.msra.mxu0 0.0
    %2256 = vmatprep.subr.mxu0 0.0
    %2257 = vmatpush1.xpose.msra.mxu0 0.0
    %2258 = vmatprep.subr.mxu0 0.0
    %2259 = vmatpush1.xpose.msra.mxu0 0.0
    %2260 = vmatprep.subr.mxu0 0.0
    %2261 = vmatpush1.xpose.msra.mxu0 0.0
    %2262 = vmatprep.subr.mxu0 0.0
    %2263 = vmatpush1.xpose.msra.mxu0 0.0
    %2264 = vmatprep.subr.mxu0 0.0
    %2265 = vmatpush1.xpose.msra.mxu0 0.0
    %2266 = vmatprep.subr.mxu0 0.0
    %2267 = vmatpush1.xpose.msra.mxu0 0.0
    %2268 = vmatprep.subr.mxu0 0.0
    %2269 = vmatpush1.xpose.msra.mxu0 0.0
    %2270 = vmatprep.subr.mxu0 0.0
    %2271 = vmatpush1.xpose.msra.mxu0 0.0
    %2272 = vmatprep.subr.mxu0 0.0
    %2273 = vmatpush1.xpose.msra.mxu0 0.0
    %2274 = vmatprep.subr.mxu0 0.0
    %2275 = vmatpush1.xpose.msra.mxu0 0.0
    %2276 = vmatprep.subr.mxu0 0.0
    %2277 = vmatpush1.xpose.msra.mxu0 0.0
    %2278 = vmatprep.subr.mxu0 0.0
    %2279 = vmatpush1.xpose.msra.mxu0 0.0
    %2280 = vmatprep.subr.mxu0 0.0
    %2281 = vmatpush1.xpose.msra.mxu0 0.0
    %2282 = vmatprep.subr.mxu0 0.0
    %2283 = vmatpush1.xpose.msra.mxu0 0.0
    %2284 = vmatprep.subr.mxu0 0.0
    %2285 = vmatpush1.xpose.msra.mxu0 0.0
    %2286 = vmatprep.subr.mxu0 0.0
    %2287 = vmatpush1.xpose.msra.mxu0 0.0
    %2288 = vmatprep.subr.mxu0 0.0
    %2289 = vmatpush1.xpose.msra.mxu0 0.0
    %2290 = vmatprep.subr.mxu0 0.0
    %2291 = vmatpush1.xpose.msra.mxu0 0.0
    %2292 = vmatprep.subr.mxu0 0.0
    %2293 = vmatpush1.xpose.msra.mxu0 0.0
    %2294 = vmatprep.subr.mxu0 0.0
    %2295 = vmatpush1.xpose.msra.mxu0 0.0
    %2296 = vmatprep.subr.mxu0 0.0
    %2297 = vmatpush1.xpose.msra.mxu0 0.0
    %2298 = vmatprep.mubr.f32.mxu0 0.0
    %2299 = vmatmul.mubr.f32.gmra.mrb[0].mxu0 %v2232
    %v2300 = vpop.f32.mrb[0].mxu0
    %v2301 = vadd.f32 0.0, %v2300
    %v2302 = vpop.f32.mrb[0].mxu0
    %2303 = vdwg.mxu0
    %v2304 = vsel %vm1120, %v2301, -inf
    %2305 = vmax.xlane.f32.xlu0 %v2304
    %v2306 = vpop.xlane.xlu0 %2305
    %v2307 = vsub.f32 %v2301, %v2306
    %v2308 = vmul.f32 %v2307, 1.442695
    %v2309 = vpow.pop %v2308
    %v2310 = vsel %vm1120, %v2309, 0.0
    %2311 = vadd.xlane.f32.xlu0 %v2310
    %v2312 = vpop.xlane.xlu0 %2311
    %v2313 = vrcp.pop %v2312
    %v2314 = vmul.f32 %v2309, %v2313
    %v2316 = vsel %vm1133, %v2314, 0
    %2318 = vmatprep.subr.mxu0 0.0
    %2319 = vmatpush1.msra.mxu0 %v1045
    %2320 = vmatprep.subr.mxu0 0.0
    %2321 = vmatpush1.msra.mxu0 0.0
    %2322 = vmatprep.subr.mxu0 0.0
    %2323 = vmatpush1.msra.mxu0 0.0
    %2324 = vmatprep.subr.mxu0 0.0
    %2325 = vmatpush1.msra.mxu0 0.0
    %2326 = vmatprep.subr.mxu0 0.0
    %2327 = vmatpush1.msra.mxu0 0.0
    %2328 = vmatprep.subr.mxu0 0.0
    %2329 = vmatpush1.msra.mxu0 0.0
    %2330 = vmatprep.subr.mxu0 0.0
    %2331 = vmatpush1.msra.mxu0 0.0
    %2332 = vmatprep.subr.mxu0 0.0
    %2333 = vmatpush1.msra.mxu0 0.0
    %2334 = vmatprep.subr.mxu0 0.0
    %2335 = vmatpush1.msra.mxu0 0.0
    %2336 = vmatprep.subr.mxu0 0.0
    %2337 = vmatpush1.msra.mxu0 0.0
    %2338 = vmatprep.subr.mxu0 0.0
    %2339 = vmatpush1.msra.mxu0 0.0
    %2340 = vmatprep.subr.mxu0 0.0
    %2341 = vmatpush1.msra.mxu0 0.0
    %2342 = vmatprep.subr.mxu0 0.0
    %2343 = vmatpush1.msra.mxu0 0.0
    %2344 = vmatprep.subr.mxu0 0.0
    %2345 = vmatpush1.msra.mxu0 0.0
    %2346 = vmatprep.subr.mxu0 0.0
    %2347 = vmatpush1.msra.mxu0 0.0
    %2348 = vmatprep.subr.mxu0 0.0
    %2349 = vmatpush1.msra.mxu0 0.0
    %2350 = vmatprep.subr.mxu0 0.0
    %2351 = vmatpush1.msra.mxu0 0.0
    %2352 = vmatprep.subr.mxu0 0.0
    %2353 = vmatpush1.msra.mxu0 0.0
    %2354 = vmatprep.subr.mxu0 0.0
    %2355 = vmatpush1.msra.mxu0 0.0
    %2356 = vmatprep.subr.mxu0 0.0
    %2357 = vmatpush1.msra.mxu0 0.0
    %2358 = vmatprep.subr.mxu0 0.0
    %2359 = vmatpush1.msra.mxu0 0.0
    %2360 = vmatprep.subr.mxu0 0.0
    %2361 = vmatpush1.msra.mxu0 0.0
    %2362 = vmatprep.subr.mxu0 0.0
    %2363 = vmatpush1.msra.mxu0 0.0
    %2364 = vmatprep.subr.mxu0 0.0
    %2365 = vmatpush1.msra.mxu0 0.0
    %2366 = vmatprep.subr.mxu0 0.0
    %2367 = vmatpush1.msra.mxu0 0.0
    %2368 = vmatprep.subr.mxu0 0.0
    %2369 = vmatpush1.msra.mxu0 0.0
    %2370 = vmatprep.subr.mxu0 0.0
    %2371 = vmatpush1.msra.mxu0 0.0
    %2372 = vmatprep.subr.mxu0 0.0
    %2373 = vmatpush1.msra.mxu0 0.0
    %2374 = vmatprep.subr.mxu0 0.0
    %2375 = vmatpush1.msra.mxu0 0.0
    %2376 = vmatprep.subr.mxu0 0.0
    %2377 = vmatpush1.msra.mxu0 0.0
    %2378 = vmatprep.subr.mxu0 0.0
    %2379 = vmatpush1.msra.mxu0 0.0
    %2380 = vmatprep.subr.mxu0 0.0
    %2381 = vmatpush1.msra.mxu0 0.0
    %2382 = vmatprep.mubr.f32.mxu0 0.0
    %2383 = vmatmul.mubr.f32.gmra.mrb[0].mxu0 %v2316
    %v2384 = vpop.f32.mrb[0].mxu0
    %v2385 = vadd.f32 0.0, %v2384
    %v2386 = vpop.f32.mrb[0].mxu0
    %2387 = vdwg.mxu0
    %2389 = vrot.lane.b32.xlu0 %v2385, 32
    %v2390 = vpop.permute.xlu0 %2389
    %v2392 = vsel %vm107, %v2226, %v2390
    %v2394 = vsel %vm1216, %v2392, 0
    %2396 = vmatprep.subr.mxu0 0.0
    %2397 = vmatpush1.msra.mxu0 %v68
    %2398 = vmatprep.subr.mxu0 0.0
    %2399 = vmatpush1.msra.mxu0 %v69
    %2400 = vmatprep.subr.mxu0 0.0
    %2401 = vmatpush1.msra.mxu0 %v70
    %2402 = vmatprep.subr.mxu0 0.0
    %2403 = vmatpush1.msra.mxu0 %v71
    %2404 = vmatprep.subr.mxu0 0.0
    %2405 = vmatpush1.msra.mxu0 %v72
    %2406 = vmatprep.subr.mxu0 0.0
    %2407 = vmatpush1.msra.mxu0 %v73
    %2408 = vmatprep.subr.mxu0 0.0
    %2409 = vmatpush1.msra.mxu0 %v74
    %2410 = vmatprep.subr.mxu0 0.0
    %2411 = vmatpush1.msra.mxu0 %v75
    %2412 = vmatprep.subr.mxu0 0.0
    %2413 = vmatpush1.msra.mxu0 0.0
    %2414 = vmatprep.subr.mxu0 0.0
    %2415 = vmatpush1.msra.mxu0 0.0
    %2416 = vmatprep.subr.mxu0 0.0
    %2417 = vmatpush1.msra.mxu0 0.0
    %2418 = vmatprep.subr.mxu0 0.0
    %2419 = vmatpush1.msra.mxu0 0.0
    %2420 = vmatprep.subr.mxu0 0.0
    %2421 = vmatpush1.msra.mxu0 0.0
    %2422 = vmatprep.subr.mxu0 0.0
    %2423 = vmatpush1.msra.mxu0 0.0
    %2424 = vmatprep.subr.mxu0 0.0
    %2425 = vmatpush1.msra.mxu0 0.0
    %2426 = vmatprep.subr.mxu0 0.0
    %2427 = vmatpush1.msra.mxu0 0.0
    %2428 = vmatprep.subr.mxu0 0.0
    %2429 = vmatpush1.msra.mxu0 0.0
    %2430 = vmatprep.subr.mxu0 0.0
    %2431 = vmatpush1.msra.mxu0 0.0
    %2432 = vmatprep.subr.mxu0 0.0
    %2433 = vmatpush1.msra.mxu0 0.0
    %2434 = vmatprep.subr.mxu0 0.0
    %2435 = vmatpush1.msra.mxu0 0.0
    %2436 = vmatprep.subr.mxu0 0.0
    %2437 = vmatpush1.msra.mxu0 0.0
    %2438 = vmatprep.subr.mxu0 0.0
    %2439 = vmatpush1.msra.mxu0 0.0
    %2440 = vmatprep.subr.mxu0 0.0
    %2441 = vmatpush1.msra.mxu0 0.0
    %2442 = vmatprep.subr.mxu0 0.0
    %2443 = vmatpush1.msra.mxu0 0.0
    %2444 = vmatprep.subr.mxu0 0.0
    %2445 = vmatpush1.msra.mxu0 0.0
    %2446 = vmatprep.subr.mxu0 0.0
    %2447 = vmatpush1.msra.mxu0 0.0
    %2448 = vmatprep.subr.mxu0 0.0
    %2449 = vmatpush1.msra.mxu0 0.0
    %2450 = vmatprep.subr.mxu0 0.0
    %2451 = vmatpush1.msra.mxu0 0.0
    %2452 = vmatprep.subr.mxu0 0.0
    %2453 = vmatpush1.msra.mxu0 0.0
    %2454 = vmatprep.subr.mxu0 0.0
    %2455 = vmatpush1.msra.mxu0 0.0
    %2456 = vmatprep.subr.mxu0 0.0
    %2457 = vmatpush1.msra.mxu0 0.0
    %2458 = vmatprep.subr.mxu0 0.0
    %2459 = vmatpush1.msra.mxu0 0.0
    %2460 = vmatprep.mubr.f32.mxu0 0.0
    %2461 = vmatmul.mubr.f32.gmra.mrb[0].mxu0 %v2394
    %v2462 = vpop.f32.mrb[0].mxu0
    %v2463 = vadd.f32 %v1215, %v2462
    %v2464 = vpop.f32.mrb[0].mxu0
    %2465 = vdwg.mxu0
    %2466 = vmatprep.subr.mxu0 0.0
    %2467 = vmatpush1.msra.mxu0 %v76
    %2468 = vmatprep.subr.mxu0 0.0
    %2469 = vmatpush1.msra.mxu0 %v77
    %2470 = vmatprep.subr.mxu0 0.0
    %2471 = vmatpush1.msra.mxu0 %v78
    %2472 = vmatprep.subr.mxu0 0.0
    %2473 = vmatpush1.msra.mxu0 %v79
    %2474 = vmatprep.subr.mxu0 0.0
    %2475 = vmatpush1.msra.mxu0 0.0
    %2476 = vmatprep.subr.mxu0 0.0
    %2477 = vmatpush1.msra.mxu0 0.0
    %2478 = vmatprep.subr.mxu0 0.0
    %2479 = vmatpush1.msra.mxu0 0.0
    %2480 = vmatprep.subr.mxu0 0.0
    %2481 = vmatpush1.msra.mxu0 0.0
    %2482 = vmatprep.subr.mxu0 0.0
    %2483 = vmatpush1.msra.mxu0 0.0
    %2484 = vmatprep.subr.mxu0 0.0
    %2485 = vmatpush1.msra.mxu0 0.0
    %2486 = vmatprep.subr.mxu0 0.0
    %2487 = vmatpush1.msra.mxu0 0.0
    %2488 = vmatprep.subr.mxu0 0.0
    %2489 = vmatpush1.msra.mxu0 0.0
    %2490 = vmatprep.subr.mxu0 0.0
    %2491 = vmatpush1.msra.mxu0 0.0
    %2492 = vmatprep.subr.mxu0 0.0
    %2493 = vmatpush1.msra.mxu0 0.0
    %2494 = vmatprep.subr.mxu0 0.0
    %2495 = vmatpush1.msra.mxu0 0.0
    %2496 = vmatprep.subr.mxu0 0.0
    %2497 = vmatpush1.msra.mxu0 0.0
    %2498 = vmatprep.subr.mxu0 0.0
    %2499 = vmatpush1.msra.mxu0 0.0
    %2500 = vmatprep.subr.mxu0 0.0
    %2501 = vmatpush1.msra.mxu0 0.0
    %2502 = vmatprep.subr.mxu0 0.0
    %2503 = vmatpush1.msra.mxu0 0.0
    %2504 = vmatprep.subr.mxu0 0.0
    %2505 = vmatpush1.msra.mxu0 0.0
    %2506 = vmatprep.subr.mxu0 0.0
    %2507 = vmatpush1.msra.mxu0 0.0
    %2508 = vmatprep.subr.mxu0 0.0
    %2509 = vmatpush1.msra.mxu0 0.0
    %2510 = vmatprep.subr.mxu0 0.0
    %2511 = vmatpush1.msra.mxu0 0.0
    %2512 = vmatprep.subr.mxu0 0.0
    %2513 = vmatpush1.msra.mxu0 0.0
    %2514 = vmatprep.subr.mxu0 0.0
    %2515 = vmatpush1.msra.mxu0 0.0
    %2516 = vmatprep.subr.mxu0 0.0
    %2517 = vmatpush1.msra.mxu0 0.0
    %2518 = vmatprep.subr.mxu0 0.0
    %2519 = vmatpush1.msra.mxu0 0.0
    %2520 = vmatprep.subr.mxu0 0.0
    %2521 = vmatpush1.msra.mxu0 0.0
    %2522 = vmatprep.subr.mxu0 0.0
    %2523 = vmatpush1.msra.mxu0 0.0
    %2524 = vmatprep.subr.mxu0 0.0
    %2525 = vmatpush1.msra.mxu0 0.0
    %2526 = vmatprep.subr.mxu0 0.0
    %2527 = vmatpush1.msra.mxu0 0.0
    %2528 = vmatprep.subr.mxu0 0.0
    %2529 = vmatpush1.msra.mxu0 0.0
    %2530 = vmatprep.mubr.f32.mxu0 0.0
    %2531 = vmatmul.mubr.f32.gmra.mrb[0].mxu0 %v2232
    %v2532 = vpop.f32.mrb[0].mxu0
    %v2533 = vadd.f32 0.0, %v2532
    %v2534 = vpop.f32.mrb[0].mxu0
    %2535 = vdwg.mxu0
    %v2536 = vadd.f32 %v2463, %v2533
    %v2537 = vxor.u32 %v2536, 2147483648
    %v2538 = vmul.f32 %v2537, 1.442695
    %v2539 = vpow.pop %v2538
    %v2540 = vadd.f32 %v2539, 1.0
    %v2541 = vrcp.pop %v2540
    %v2542 = vmul.f32 1.0, %v2541
    %2544 = vrot.lane.b32.xlu0 %v2533, 64
    %v2545 = vpop.permute.xlu0 %2544
    %v2547 = vmul.f32 %v2542, %v2545
    %2549 = vrot.lane.b32.xlu0 %v2547, 64
    %v2550 = vpop.permute.xlu0 %2549
    %v2552 = vadd.f32 %v2463, %v2550
    %v2553 = vtanh.pop %v2552
    %v2554 = vsub.f32 1.0, %v2542
    %2556 = vrot.lane.b32.xlu0 %v2553, 96
    %v2557 = vpop.permute.xlu0 %2556
    %v2559 = vmul.f32 %v2554, %v2557
    %v2560 = vmul.f32 %v2542, %v2143
    %v2561 = vadd.f32 %v2559, %v2560
    %2563 = vrot.lane.b32.xlu0 %v2561, 96
    %v2564 = vpop.permute.xlu0 %2563
    %v2565 = vsel %vm107, %v2564, 0
    %2567 = vmatprep.subr.mxu0 0.0
    %2568 = vmatpush1.msra.mxu0 %v97
    %2569 = vmatprep.subr.mxu0 0.0
    %2570 = vmatpush1.msra.mxu0 %v98
    %2571 = vmatprep.subr.mxu0 0.0
    %2572 = vmatpush1.msra.mxu0 %v99
    %2573 = vmatprep.subr.mxu0 0.0
    %2574 = vmatpush1.msra.mxu0 %v100
    %2575 = vmatprep.subr.mxu0 0.0
    %2576 = vmatpush1.msra.mxu0 0.0
    %2577 = vmatprep.subr.mxu0 0.0
    %2578 = vmatpush1.msra.mxu0 0.0
    %2579 = vmatprep.subr.mxu0 0.0
    %2580 = vmatpush1.msra.mxu0 0.0
    %2581 = vmatprep.subr.mxu0 0.0
    %2582 = vmatpush1.msra.mxu0 0.0
    %2583 = vmatprep.subr.mxu0 0.0
    %2584 = vmatpush1.msra.mxu0 0.0
    %2585 = vmatprep.subr.mxu0 0.0
    %2586 = vmatpush1.msra.mxu0 0.0
    %2587 = vmatprep.subr.mxu0 0.0
    %2588 = vmatpush1.msra.mxu0 0.0
    %2589 = vmatprep.subr.mxu0 0.0
    %2590 = vmatpush1.msra.mxu0 0.0
    %2591 = vmatprep.subr.mxu0 0.0
    %2592 = vmatpush1.msra.mxu0 0.0
    %2593 = vmatprep.subr.mxu0 0.0
    %2594 = vmatpush1.msra.mxu0 0.0
    %2595 = vmatprep.subr.mxu0 0.0
    %2596 = vmatpush1.msra.mxu0 0.0
    %2597 = vmatprep.subr.mxu0 0.0
    %2598 = vmatpush1.msra.mxu0 0.0
    %2599 = vmatprep.subr.mxu0 0.0
    %2600 = vmatpush1.msra.mxu0 0.0
    %2601 = vmatprep.subr.mxu0 0.0
    %2602 = vmatpush1.msra.mxu0 0.0
    %2603 = vmatprep.subr.mxu0 0.0
    %2604 = vmatpush1.msra.mxu0 0.0
    %2605 = vmatprep.subr.mxu0 0.0
    %2606 = vmatpush1.msra.mxu0 0.0
    %2607 = vmatprep.subr.mxu0 0.0
    %2608 = vmatpush1.msra.mxu0 0.0
    %2609 = vmatprep.subr.mxu0 0.0
    %2610 = vmatpush1.msra.mxu0 0.0
    %2611 = vmatprep.subr.mxu0 0.0
    %2612 = vmatpush1.msra.mxu0 0.0
    %2613 = vmatprep.subr.mxu0 0.0
    %2614 = vmatpush1.msra.mxu0 0.0
    %2615 = vmatprep.subr.mxu0 0.0
    %2616 = vmatpush1.msra.mxu0 0.0
    %2617 = vmatprep.subr.mxu0 0.0
    %2618 = vmatpush1.msra.mxu0 0.0
    %2619 = vmatprep.subr.mxu0 0.0
    %2620 = vmatpush1.msra.mxu0 0.0
    %2621 = vmatprep.subr.mxu0 0.0
    %2622 = vmatpush1.msra.mxu0 0.0
    %2623 = vmatprep.subr.mxu0 0.0
    %2624 = vmatpush1.msra.mxu0 0.0
    %2625 = vmatprep.subr.mxu0 0.0
    %2626 = vmatpush1.msra.mxu0 0.0
    %2627 = vmatprep.subr.mxu0 0.0
    %2628 = vmatpush1.msra.mxu0 0.0
    %2629 = vmatprep.subr.mxu0 0.0
    %2630 = vmatpush1.msra.mxu0 0.0
    %2631 = vmatprep.mubr.f32.mxu0 0.0
    %2632 = vmatmul.mubr.f32.gmra.mrb[0].mxu0 %v2565
    %v2633 = vpop.f32.mrb[0].mxu0
    %v2634 = vadd.f32 %v1389, %v2633
    %v2635 = vpop.f32.mrb[0].mxu0
    %2636 = vdwg.mxu0
    %v2637 = vsel %vm1023, %v2634, -inf
    %2638 = vmax.xlane.f32.xlu0 %v2637
    %v2639 = vpop.xlane.xlu0 %2638
    %v2640 = vsub.f32 %v2634, %v2639
    %v2641 = vmul.f32 %v2640, 1.442695
    %v2642 = vpow.pop %v2641
    %v2643 = vsel %vm1023, %v2642, 0.0
    %2644 = vadd.xlane.f32.xlu0 %v2643
    %v2645 = vpop.xlane.xlu0 %2644
    %v2646 = vlog2.pop %v2645
    %v2647 = vmul.f32 %v2646, 0.6931472
    %v2648 = vadd.f32 %v2647, %v2639
    %v2649 = vsub.f32 %v2634, %v2648
    %v2650 = vsel %vm1023, %v2649, -inf
    %2651 = vmax.xlane.f32.xlu0 %v2650
    %v2652 = vpop.xlane.xlu0 %2651
    %vm2653 = vcmp.eq.f32.partialorder %v2649, %v2652
    %v2654 = vsel %vm2653, %v58, 128.0
    %v2655 = vsel %vm1023, %v2654, inf
    %2656 = vmin.xlane.f32.xlu0 %v2655
    %v2657 = vpop.xlane.xlu0 %2656
    %vm2658 = vcmp.eq.f32.partialorder %v58, %v2657
    %v2659 = vsel %vm2658, -inf, %v2649
    %v2660 = vsel %vm1023, %v2659, -inf
    %2661 = vmax.xlane.f32.xlu0 %v2660
    %v2662 = vpop.xlane.xlu0 %2661
    %vm2663 = vcmp.eq.f32.partialorder %v2659, %v2662
    %v2664 = vsel %vm2663, %v58, 128.0
    %v2665 = vsel %vm1023, %v2664, inf
    %2666 = vmin.xlane.f32.xlu0 %v2665
    %v2667 = vpop.xlane.xlu0 %2666
    %v2668 = vsel %vm2034, %v2652, %v2662
    %v2669 = vsel %vm2034, %v2657, %v2667
    %v2670 = vmul.f32 %v2668, 1.442695
    %v2671 = vpow.pop %v2670
    %2673 = vset.pattern.permute.xlu0 0
    %2674 = vperm.xlu0 %2673, %v2108
    %v2675 = vpop.permute.xlu0 %2674
    %v2677 = vmul.f32 %v2671, %v2675
    %v2679 = vrot.slane %v2677, 1
    %2680 = vrot.lane.b32.xlu0 %v2679, 2
    %v2681 = vpop.permute.xlu0 %2680
    %v2683 = vsel %vm2050, %v2677, %v2681
    %v2685 = vrot.slane %v2669, 1
    %2686 = vrot.lane.b32.xlu0 %v2685, 2
    %v2687 = vpop.permute.xlu0 %2686
    %v2689 = vsel %vm2050, %v2669, %v2687
    %v2690 = vsel %vm2058, %v2683, -inf
    %2691 = vmax.xlane.f32.xlu0 %v2690
    %v2692 = vpop.xlane.xlu0 %2691
    %vm2693 = vcmp.eq.f32.partialorder %v2683, %v2692
    %v2694 = vsel %vm2693, %v58, 4.0
    %v2695 = vsel %vm2058, %v2694, inf
    %2696 = vmin.xlane.f32.xlu0 %v2695
    %v2697 = vpop.xlane.xlu0 %2696
    %vm2698 = vcmp.eq.f32.partialorder %v58, %v2697
    %v2699 = vsel %vm2698, 1, 0
    %v2700 = vcvt.s32.f32 %v2699
    %v2701 = vmul.f32 %v2697, 0.5
    %v2702 = vfloor.f32 %v2701
    %vm2703 = vcmp.eq.f32.partialorder %v58, %v2702
    %v2704 = vsel %vm2703, 1, 0
    %v2705 = vcvt.s32.f32 %v2704
    %v2706 = vmul.f32 %v2700, %v2689
    %v2707 = vsel %vm2058, %v2706, 0.0
    %2708 = vadd.xlane.f32.xlu0 %v2707
    %v2709 = vpop.xlane.xlu0 %2708
    %vm2710 = vcmp.gt.f32.partialorder %v2700, 0.0
    %v2711 = vsel %vm2710, -inf, %v2683
    %v2712 = vsel %vm2058, %v2711, -inf
    %2713 = vmax.xlane.f32.xlu0 %v2712
    %v2714 = vpop.xlane.xlu0 %2713
    %vm2715 = vcmp.eq.f32.partialorder %v2711, %v2714
    %v2716 = vsel %vm2715, %v58, 4.0
    %v2717 = vsel %vm2058, %v2716, inf
    %2718 = vmin.xlane.f32.xlu0 %v2717
    %v2719 = vpop.xlane.xlu0 %2718
    %vm2720 = vcmp.eq.f32.partialorder %v58, %v2719
    %v2721 = vsel %vm2720, 1, 0
    %v2722 = vcvt.s32.f32 %v2721
    %v2723 = vmul.f32 %v2719, 0.5
    %v2724 = vfloor.f32 %v2723
    %vm2725 = vcmp.eq.f32.partialorder %v58, %v2724
    %v2726 = vsel %vm2725, 1, 0
    %v2727 = vcvt.s32.f32 %v2726
    %v2728 = vmul.f32 %v2722, %v2689
    %v2729 = vsel %vm2058, %v2728, 0.0
    %2730 = vadd.xlane.f32.xlu0 %v2729
    %v2731 = vpop.xlane.xlu0 %2730
    %v2733 = vrot.slane %v2727, 7
    %v2735 = vsel %vm1021, %v2705, %v2733
    %v2737 = vrot.slane %v2714, 7
    %v2739 = vsel %vm1021, %v2692, %v2737
    %v2741 = vrot.slane %v2731, 7
    %v2743 = vsel %vm1021, %v2709, %v2741
    %2745 = vset.pattern.permute.xlu0 0
    %2746 = vperm.xlu0 %2745, %v2735
    %v2747 = vpop.permute.xlu0 %2746
    %v2749 = vlaneseq
    %v2750 = vshrl.u32 %v2749, 7
    %v2751 = vsub.s32 0, %v2750
    %v2752 = vrot.slane %v2150, %v2751
    %v2753 = vmul.f32 %v2747, %v2752
    %v2754 = vlaneseq
    %v2755 = vshrl.u32 %v2754, 7
    %v2756 = vsub.s32 0, %v2755
    %v2757 = vrot.slane %v2561, %v2756
    %v2758 = vmul.f32 %v2747, %v2757
    %2759 = vset.pattern.permute.xlu0 1
    %2760 = vperm.xlu0 %2759, %v2735
    %v2761 = vpop.permute.xlu0 %2760
    %v2763 = vlaneseq
    %v2764 = vshrl.u32 %v2763, 7
    %v2765 = vsub.s32 1, %v2764
    %v2766 = vrot.slane %v2150, %v2765
    %v2767 = vmul.f32 %v2761, %v2766
    %v2768 = vadd.f32 %v2753, %v2767
    %v2769 = vlaneseq
    %v2770 = vshrl.u32 %v2769, 7
    %v2771 = vsub.s32 1, %v2770
    %v2772 = vrot.slane %v2561, %v2771
    %v2773 = vmul.f32 %v2761, %v2772
    %v2774 = vadd.f32 %v2758, %v2773
    %vm2775 = vcmp.eq.f32.partialorder %v58, 3.0
    %2777 = vset.pattern.permute.xlu0 0
    %2778 = vperm.xlu0 %2777, %v2743
    %v2779 = vpop.permute.xlu0 %2778
    %v2781 = vsel %vm2775, %v2779, %v2768
    %2783 = vset.pattern.permute.xlu0 3
    %2784 = vperm.xlu0 %2783, %v2781
    %v2785 = vpop.permute.xlu0 %2784
    %vm2787 = vcmp.eq.f32.partialorder %v58, %v2785
    %v2788 = vsel %vm2787, 1, 0
    %v2789 = vcvt.s32.f32 %v2788
    %2790 = vmatprep.subr.mxu0 0.0
    %2791 = vmatpush1.msra.mxu0 %v81
    %2792 = vmatprep.subr.mxu0 0.0
    %2793 = vmatpush1.msra.mxu0 %v82
    %2794 = vmatprep.subr.mxu0 0.0
    %2795 = vmatpush1.msra.mxu0 %v83
    %2796 = vmatprep.subr.mxu0 0.0
    %2797 = vmatpush1.msra.mxu0 %v84
    %2798 = vmatprep.subr.mxu0 0.0
    %2799 = vmatpush1.msra.mxu0 %v85
    %2800 = vmatprep.subr.mxu0 0.0
    %2801 = vmatpush1.msra.mxu0 %v86
    %2802 = vmatprep.subr.mxu0 0.0
    %2803 = vmatpush1.msra.mxu0 %v87
    %2804 = vmatprep.subr.mxu0 0.0
    %2805 = vmatpush1.msra.mxu0 %v88
    %2806 = vmatprep.subr.mxu0 0.0
    %2807 = vmatpush1.msra.mxu0 %v89
    %2808 = vmatprep.subr.mxu0 0.0
    %2809 = vmatpush1.msra.mxu0 %v90
    %2810 = vmatprep.subr.mxu0 0.0
    %2811 = vmatpush1.msra.mxu0 %v91
    %2812 = vmatprep.subr.mxu0 0.0
    %2813 = vmatpush1.msra.mxu0 %v92
    %2814 = vmatprep.subr.mxu0 0.0
    %2815 = vmatpush1.msra.mxu0 %v93
    %2816 = vmatprep.subr.mxu0 0.0
    %2817 = vmatpush1.msra.mxu0 %v94
    %2818 = vmatprep.subr.mxu0 0.0
    %2819 = vmatpush1.msra.mxu0 %v95
    %2820 = vmatprep.subr.mxu0 0.0
    %2821 = vmatpush1.msra.mxu0 %v96
    %2822 = vmatprep.subr.mxu0 0.0
    %2823 = vmatpush1.msra.mxu0 0.0
    %2824 = vmatprep.subr.mxu0 0.0
    %2825 = vmatpush1.msra.mxu0 0.0
    %2826 = vmatprep.subr.mxu0 0.0
    %2827 = vmatpush1.msra.mxu0 0.0
    %2828 = vmatprep.subr.mxu0 0.0
    %2829 = vmatpush1.msra.mxu0 0.0
    %2830 = vmatprep.subr.mxu0 0.0
    %2831 = vmatpush1.msra.mxu0 0.0
    %2832 = vmatprep.subr.mxu0 0.0
    %2833 = vmatpush1.msra.mxu0 0.0
    %2834 = vmatprep.subr.mxu0 0.0
    %2835 = vmatpush1.msra.mxu0 0.0
    %2836 = vmatprep.subr.mxu0 0.0
    %2837 = vmatpush1.msra.mxu0 0.0
    %2838 = vmatprep.subr.mxu0 0.0
    %2839 = vmatpush1.msra.mxu0 0.0
    %2840 = vmatprep.subr.mxu0 0.0
    %2841 = vmatpush1.msra.mxu0 0.0
    %2842 = vmatprep.subr.mxu0 0.0
    %2843 = vmatpush1.msra.mxu0 0.0
    %2844 = vmatprep.subr.mxu0 0.0
    %2845 = vmatpush1.msra.mxu0 0.0
    %2846 = vmatprep.subr.mxu0 0.0
    %2847 = vmatpush1.msra.mxu0 0.0
    %2848 = vmatprep.subr.mxu0 0.0
    %2849 = vmatpush1.msra.mxu0 0.0
    %2850 = vmatprep.subr.mxu0 0.0
    %2851 = vmatpush1.msra.mxu0 0.0
    %2852 = vmatprep.subr.mxu0 0.0
    %2853 = vmatpush1.msra.mxu0 0.0
    %2854 = vmatprep.mubr.f32.mxu0 0.0
    %2855 = vmatmul.mubr.f32.gmra.mrb[0].mxu0 %v2789
    %v2856 = vpop.f32.mrb[0].mxu0
    %v2857 = vadd.f32 0.0, %v2856
    %v2858 = vpop.f32.mrb[0].mxu0
    %2859 = vdwg.mxu0
    %2861 = vrot.lane.b32.xlu0 %v2774, 96
    %v2862 = vpop.permute.xlu0 %2861
    %v2863 = vsel %vm107, %v2862, 0
    %2865 = vmatprep.subr.mxu0 0.0
    %2866 = vmatpush1.xpose.msra.mxu0 %v1048
    %2867 = vmatprep.subr.mxu0 0.0
    %2868 = vmatpush1.xpose.msra.mxu0 0.0
    %2869 = vmatprep.subr.mxu0 0.0
    %2870 = vmatpush1.xpose.msra.mxu0 0.0
    %2871 = vmatprep.subr.mxu0 0.0
    %2872 = vmatpush1.xpose.msra.mxu0 0.0
    %2873 = vmatprep.subr.mxu0 0.0
    %2874 = vmatpush1.xpose.msra.mxu0 0.0
    %2875 = vmatprep.subr.mxu0 0.0
    %2876 = vmatpush1.xpose.msra.mxu0 0.0
    %2877 = vmatprep.subr.mxu0 0.0
    %2878 = vmatpush1.xpose.msra.mxu0 0.0
    %2879 = vmatprep.subr.mxu0 0.0
    %2880 = vmatpush1.xpose.msra.mxu0 0.0
    %2881 = vmatprep.subr.mxu0 0.0
    %2882 = vmatpush1.xpose.msra.mxu0 0.0
    %2883 = vmatprep.subr.mxu0 0.0
    %2884 = vmatpush1.xpose.msra.mxu0 0.0
    %2885 = vmatprep.subr.mxu0 0.0
    %2886 = vmatpush1.xpose.msra.mxu0 0.0
    %2887 = vmatprep.subr.mxu0 0.0
    %2888 = vmatpush1.xpose.msra.mxu0 0.0
    %2889 = vmatprep.subr.mxu0 0.0
    %2890 = vmatpush1.xpose.msra.mxu0 0.0
    %2891 = vmatprep.subr.mxu0 0.0
    %2892 = vmatpush1.xpose.msra.mxu0 0.0
    %2893 = vmatprep.subr.mxu0 0.0
    %2894 = vmatpush1.xpose.msra.mxu0 0.0
    %2895 = vmatprep.subr.mxu0 0.0
    %2896 = vmatpush1.xpose.msra.mxu0 0.0
    %2897 = vmatprep.subr.mxu0 0.0
    %2898 = vmatpush1.xpose.msra.mxu0 0.0
    %2899 = vmatprep.subr.mxu0 0.0
    %2900 = vmatpush1.xpose.msra.mxu0 0.0
    %2901 = vmatprep.subr.mxu0 0.0
    %2902 = vmatpush1.xpose.msra.mxu0 0.0
    %2903 = vmatprep.subr.mxu0 0.0
    %2904 = vmatpush1.xpose.msra.mxu0 0.0
    %2905 = vmatprep.subr.mxu0 0.0
    %2906 = vmatpush1.xpose.msra.mxu0 0.0
    %2907 = vmatprep.subr.mxu0 0.0
    %2908 = vmatpush1.xpose.msra.mxu0 0.0
    %2909 = vmatprep.subr.mxu0 0.0
    %2910 = vmatpush1.xpose.msra.mxu0 0.0
    %2911 = vmatprep.subr.mxu0 0.0
    %2912 = vmatpush1.xpose.msra.mxu0 0.0
    %2913 = vmatprep.subr.mxu0 0.0
    %2914 = vmatpush1.xpose.msra.mxu0 0.0
    %2915 = vmatprep.subr.mxu0 0.0
    %2916 = vmatpush1.xpose.msra.mxu0 0.0
    %2917 = vmatprep.subr.mxu0 0.0
    %2918 = vmatpush1.xpose.msra.mxu0 0.0
    %2919 = vmatprep.subr.mxu0 0.0
    %2920 = vmatpush1.xpose.msra.mxu0 0.0
    %2921 = vmatprep.subr.mxu0 0.0
    %2922 = vmatpush1.xpose.msra.mxu0 0.0
    %2923 = vmatprep.subr.mxu0 0.0
    %2924 = vmatpush1.xpose.msra.mxu0 0.0
    %2925 = vmatprep.subr.mxu0 0.0
    %2926 = vmatpush1.xpose.msra.mxu0 0.0
    %2927 = vmatprep.subr.mxu0 0.0
    %2928 = vmatpush1.xpose.msra.mxu0 0.0
    %2929 = vmatprep.mubr.f32.mxu0 0.0
    %2930 = vmatmul.mubr.f32.gmra.mrb[0].mxu0 %v2863
    %v2931 = vpop.f32.mrb[0].mxu0
    %v2932 = vadd.f32 0.0, %v2931
    %v2933 = vpop.f32.mrb[0].mxu0
    %2934 = vdwg.mxu0
    %v2935 = vsel %vm1120, %v2932, -inf
    %2936 = vmax.xlane.f32.xlu0 %v2935
    %v2937 = vpop.xlane.xlu0 %2936
    %v2938 = vsub.f32 %v2932, %v2937
    %v2939 = vmul.f32 %v2938, 1.442695
    %v2940 = vpow.pop %v2939
    %v2941 = vsel %vm1120, %v2940, 0.0
    %2942 = vadd.xlane.f32.xlu0 %v2941
    %v2943 = vpop.xlane.xlu0 %2942
    %v2944 = vrcp.pop %v2943
    %v2945 = vmul.f32 %v2940, %v2944
    %v2947 = vsel %vm1133, %v2945, 0
    %2949 = vmatprep.subr.mxu0 0.0
    %2950 = vmatpush1.msra.mxu0 %v1045
    %2951 = vmatprep.subr.mxu0 0.0
    %2952 = vmatpush1.msra.mxu0 0.0
    %2953 = vmatprep.subr.mxu0 0.0
    %2954 = vmatpush1.msra.mxu0 0.0
    %2955 = vmatprep.subr.mxu0 0.0
    %2956 = vmatpush1.msra.mxu0 0.0
    %2957 = vmatprep.subr.mxu0 0.0
    %2958 = vmatpush1.msra.mxu0 0.0
    %2959 = vmatprep.subr.mxu0 0.0
    %2960 = vmatpush1.msra.mxu0 0.0
    %2961 = vmatprep.subr.mxu0 0.0
    %2962 = vmatpush1.msra.mxu0 0.0
    %2963 = vmatprep.subr.mxu0 0.0
    %2964 = vmatpush1.msra.mxu0 0.0
    %2965 = vmatprep.subr.mxu0 0.0
    %2966 = vmatpush1.msra.mxu0 0.0
    %2967 = vmatprep.subr.mxu0 0.0
    %2968 = vmatpush1.msra.mxu0 0.0
    %2969 = vmatprep.subr.mxu0 0.0
    %2970 = vmatpush1.msra.mxu0 0.0
    %2971 = vmatprep.subr.mxu0 0.0
    %2972 = vmatpush1.msra.mxu0 0.0
    %2973 = vmatprep.subr.mxu0 0.0
    %2974 = vmatpush1.msra.mxu0 0.0
    %2975 = vmatprep.subr.mxu0 0.0
    %2976 = vmatpush1.msra.mxu0 0.0
    %2977 = vmatprep.subr.mxu0 0.0
    %2978 = vmatpush1.msra.mxu0 0.0
    %2979 = vmatprep.subr.mxu0 0.0
    %2980 = vmatpush1.msra.mxu0 0.0
    %2981 = vmatprep.subr.mxu0 0.0
    %2982 = vmatpush1.msra.mxu0 0.0
    %2983 = vmatprep.subr.mxu0 0.0
    %2984 = vmatpush1.msra.mxu0 0.0
    %2985 = vmatprep.subr.mxu0 0.0
    %2986 = vmatpush1.msra.mxu0 0.0
    %2987 = vmatprep.subr.mxu0 0.0
    %2988 = vmatpush1.msra.mxu0 0.0
    %2989 = vmatprep.subr.mxu0 0.0
    %2990 = vmatpush1.msra.mxu0 0.0
    %2991 = vmatprep.subr.mxu0 0.0
    %2992 = vmatpush1.msra.mxu0 0.0
    %2993 = vmatprep.subr.mxu0 0.0
    %2994 = vmatpush1.msra.mxu0 0.0
    %2995 = vmatprep.subr.mxu0 0.0
    %2996 = vmatpush1.msra.mxu0 0.0
    %2997 = vmatprep.subr.mxu0 0.0
    %2998 = vmatpush1.msra.mxu0 0.0
    %2999 = vmatprep.subr.mxu0 0.0
    %3000 = vmatpush1.msra.mxu0 0.0
    %3001 = vmatprep.subr.mxu0 0.0
    %3002 = vmatpush1.msra.mxu0 0.0
    %3003 = vmatprep.subr.mxu0 0.0
    %3004 = vmatpush1.msra.mxu0 0.0
    %3005 = vmatprep.subr.mxu0 0.0
    %3006 = vmatpush1.msra.mxu0 0.0
    %3007 = vmatprep.subr.mxu0 0.0
    %3008 = vmatpush1.msra.mxu0 0.0
    %3009 = vmatprep.subr.mxu0 0.0
    %3010 = vmatpush1.msra.mxu0 0.0
    %3011 = vmatprep.subr.mxu0 0.0
    %3012 = vmatpush1.msra.mxu0 0.0
    %3013 = vmatprep.mubr.f32.mxu0 0.0
    %3014 = vmatmul.mubr.f32.gmra.mrb[0].mxu0 %v2947
    %v3015 = vpop.f32.mrb[0].mxu0
    %v3016 = vadd.f32 0.0, %v3015
    %v3017 = vpop.f32.mrb[0].mxu0
    %3018 = vdwg.mxu0
    %3020 = vrot.lane.b32.xlu0 %v3016, 32
    %v3021 = vpop.permute.xlu0 %3020
    %v3023 = vsel %vm107, %v2857, %v3021
    %v3025 = vsel %vm1216, %v3023, 0
    %3027 = vmatprep.subr.mxu0 0.0
    %3028 = vmatpush1.msra.mxu0 %v68
    %3029 = vmatprep.subr.mxu0 0.0
    %3030 = vmatpush1.msra.mxu0 %v69
    %3031 = vmatprep.subr.mxu0 0.0
    %3032 = vmatpush1.msra.mxu0 %v70
    %3033 = vmatprep.subr.mxu0 0.0
    %3034 = vmatpush1.msra.mxu0 %v71
    %3035 = vmatprep.subr.mxu0 0.0
    %3036 = vmatpush1.msra.mxu0 %v72
    %3037 = vmatprep.subr.mxu0 0.0
    %3038 = vmatpush1.msra.mxu0 %v73
    %3039 = vmatprep.subr.mxu0 0.0
    %3040 = vmatpush1.msra.mxu0 %v74
    %3041 = vmatprep.subr.mxu0 0.0
    %3042 = vmatpush1.msra.mxu0 %v75
    %3043 = vmatprep.subr.mxu0 0.0
    %3044 = vmatpush1.msra.mxu0 0.0
    %3045 = vmatprep.subr.mxu0 0.0
    %3046 = vmatpush1.msra.mxu0 0.0
    %3047 = vmatprep.subr.mxu0 0.0
    %3048 = vmatpush1.msra.mxu0 0.0
    %3049 = vmatprep.subr.mxu0 0.0
    %3050 = vmatpush1.msra.mxu0 0.0
    %3051 = vmatprep.subr.mxu0 0.0
    %3052 = vmatpush1.msra.mxu0 0.0
    %3053 = vmatprep.subr.mxu0 0.0
    %3054 = vmatpush1.msra.mxu0 0.0
    %3055 = vmatprep.subr.mxu0 0.0
    %3056 = vmatpush1.msra.mxu0 0.0
    %3057 = vmatprep.subr.mxu0 0.0
    %3058 = vmatpush1.msra.mxu0 0.0
    %3059 = vmatprep.subr.mxu0 0.0
    %3060 = vmatpush1.msra.mxu0 0.0
    %3061 = vmatprep.subr.mxu0 0.0
    %3062 = vmatpush1.msra.mxu0 0.0
    %3063 = vmatprep.subr.mxu0 0.0
    %3064 = vmatpush1.msra.mxu0 0.0
    %3065 = vmatprep.subr.mxu0 0.0
    %3066 = vmatpush1.msra.mxu0 0.0
    %3067 = vmatprep.subr.mxu0 0.0
    %3068 = vmatpush1.msra.mxu0 0.0
    %3069 = vmatprep.subr.mxu0 0.0
    %3070 = vmatpush1.msra.mxu0 0.0
    %3071 = vmatprep.subr.mxu0 0.0
    %3072 = vmatpush1.msra.mxu0 0.0
    %3073 = vmatprep.subr.mxu0 0.0
    %3074 = vmatpush1.msra.mxu0 0.0
    %3075 = vmatprep.subr.mxu0 0.0
    %3076 = vmatpush1.msra.mxu0 0.0
    %3077 = vmatprep.subr.mxu0 0.0
    %3078 = vmatpush1.msra.mxu0 0.0
    %3079 = vmatprep.subr.mxu0 0.0
    %3080 = vmatpush1.msra.mxu0 0.0
    %3081 = vmatprep.subr.mxu0 0.0
    %3082 = vmatpush1.msra.mxu0 0.0
    %3083 = vmatprep.subr.mxu0 0.0
    %3084 = vmatpush1.msra.mxu0 0.0
    %3085 = vmatprep.subr.mxu0 0.0
    %3086 = vmatpush1.msra.mxu0 0.0
    %3087 = vmatprep.subr.mxu0 0.0
    %3088 = vmatpush1.msra.mxu0 0.0
    %3089 = vmatprep.subr.mxu0 0.0
    %3090 = vmatpush1.msra.mxu0 0.0
    %3091 = vmatprep.mubr.f32.mxu0 0.0
    %3092 = vmatmul.mubr.f32.gmra.mrb[0].mxu0 %v3025
    %v3093 = vpop.f32.mrb[0].mxu0
    %v3094 = vadd.f32 %v1215, %v3093
    %v3095 = vpop.f32.mrb[0].mxu0
    %3096 = vdwg.mxu0
    %3097 = vmatprep.subr.mxu0 0.0
    %3098 = vmatpush1.msra.mxu0 %v76
    %3099 = vmatprep.subr.mxu0 0.0
    %3100 = vmatpush1.msra.mxu0 %v77
    %3101 = vmatprep.subr.mxu0 0.0
    %3102 = vmatpush1.msra.mxu0 %v78
    %3103 = vmatprep.subr.mxu0 0.0
    %3104 = vmatpush1.msra.mxu0 %v79
    %3105 = vmatprep.subr.mxu0 0.0
    %3106 = vmatpush1.msra.mxu0 0.0
    %3107 = vmatprep.subr.mxu0 0.0
    %3108 = vmatpush1.msra.mxu0 0.0
    %3109 = vmatprep.subr.mxu0 0.0
    %3110 = vmatpush1.msra.mxu0 0.0
    %3111 = vmatprep.subr.mxu0 0.0
    %3112 = vmatpush1.msra.mxu0 0.0
    %3113 = vmatprep.subr.mxu0 0.0
    %3114 = vmatpush1.msra.mxu0 0.0
    %3115 = vmatprep.subr.mxu0 0.0
    %3116 = vmatpush1.msra.mxu0 0.0
    %3117 = vmatprep.subr.mxu0 0.0
    %3118 = vmatpush1.msra.mxu0 0.0
    %3119 = vmatprep.subr.mxu0 0.0
    %3120 = vmatpush1.msra.mxu0 0.0
    %3121 = vmatprep.subr.mxu0 0.0
    %3122 = vmatpush1.msra.mxu0 0.0
    %3123 = vmatprep.subr.mxu0 0.0
    %3124 = vmatpush1.msra.mxu0 0.0
    %3125 = vmatprep.subr.mxu0 0.0
    %3126 = vmatpush1.msra.mxu0 0.0
    %3127 = vmatprep.subr.mxu0 0.0
    %3128 = vmatpush1.msra.mxu0 0.0
    %3129 = vmatprep.subr.mxu0 0.0
    %3130 = vmatpush1.msra.mxu0 0.0
    %3131 = vmatprep.subr.mxu0 0.0
    %3132 = vmatpush1.msra.mxu0 0.0
    %3133 = vmatprep.subr.mxu0 0.0
    %3134 = vmatpush1.msra.mxu0 0.0
    %3135 = vmatprep.subr.mxu0 0.0
    %3136 = vmatpush1.msra.mxu0 0.0
    %3137 = vmatprep.subr.mxu0 0.0
    %3138 = vmatpush1.msra.mxu0 0.0
    %3139 = vmatprep.subr.mxu0 0.0
    %3140 = vmatpush1.msra.mxu0 0.0
    %3141 = vmatprep.subr.mxu0 0.0
    %3142 = vmatpush1.msra.mxu0 0.0
    %3143 = vmatprep.subr.mxu0 0.0
    %3144 = vmatpush1.msra.mxu0 0.0
    %3145 = vmatprep.subr.mxu0 0.0
    %3146 = vmatpush1.msra.mxu0 0.0
    %3147 = vmatprep.subr.mxu0 0.0
    %3148 = vmatpush1.msra.mxu0 0.0
    %3149 = vmatprep.subr.mxu0 0.0
    %3150 = vmatpush1.msra.mxu0 0.0
    %3151 = vmatprep.subr.mxu0 0.0
    %3152 = vmatpush1.msra.mxu0 0.0
    %3153 = vmatprep.subr.mxu0 0.0
    %3154 = vmatpush1.msra.mxu0 0.0
    %3155 = vmatprep.subr.mxu0 0.0
    %3156 = vmatpush1.msra.mxu0 0.0
    %3157 = vmatprep.subr.mxu0 0.0
    %3158 = vmatpush1.msra.mxu0 0.0
    %3159 = vmatprep.subr.mxu0 0.0
    %3160 = vmatpush1.msra.mxu0 0.0
    %3161 = vmatprep.mubr.f32.mxu0 0.0
    %3162 = vmatmul.mubr.f32.gmra.mrb[0].mxu0 %v2863
    %v3163 = vpop.f32.mrb[0].mxu0
    %v3164 = vadd.f32 0.0, %v3163
    %v3165 = vpop.f32.mrb[0].mxu0
    %3166 = vdwg.mxu0
    %v3167 = vadd.f32 %v3094, %v3164
    %v3168 = vxor.u32 %v3167, 2147483648
    %v3169 = vmul.f32 %v3168, 1.442695
    %v3170 = vpow.pop %v3169
    %v3171 = vadd.f32 %v3170, 1.0
    %v3172 = vrcp.pop %v3171
    %v3173 = vmul.f32 1.0, %v3172
    %3175 = vrot.lane.b32.xlu0 %v3164, 64
    %v3176 = vpop.permute.xlu0 %3175
    %v3178 = vmul.f32 %v3173, %v3176
    %3180 = vrot.lane.b32.xlu0 %v3178, 64
    %v3181 = vpop.permute.xlu0 %3180
    %v3183 = vadd.f32 %v3094, %v3181
    %v3184 = vtanh.pop %v3183
    %v3185 = vsub.f32 1.0, %v3173
    %3187 = vrot.lane.b32.xlu0 %v3184, 96
    %v3188 = vpop.permute.xlu0 %3187
    %v3190 = vmul.f32 %v3185, %v3188
    %v3191 = vmul.f32 %v3173, %v2774
    %v3192 = vadd.f32 %v3190, %v3191
    %3194 = vrot.lane.b32.xlu0 %v3192, 96
    %v3195 = vpop.permute.xlu0 %3194
    %v3196 = vsel %vm107, %v3195, 0
    %3198 = vmatprep.subr.mxu0 0.0
    %3199 = vmatpush1.msra.mxu0 %v97
    %3200 = vmatprep.subr.mxu0 0.0
    %3201 = vmatpush1.msra.mxu0 %v98
    %3202 = vmatprep.subr.mxu0 0.0
    %3203 = vmatpush1.msra.mxu0 %v99
    %3204 = vmatprep.subr.mxu0 0.0
    %3205 = vmatpush1.msra.mxu0 %v100
    %3206 = vmatprep.subr.mxu0 0.0
    %3207 = vmatpush1.msra.mxu0 0.0
    %3208 = vmatprep.subr.mxu0 0.0
    %3209 = vmatpush1.msra.mxu0 0.0
    %3210 = vmatprep.subr.mxu0 0.0
    %3211 = vmatpush1.msra.mxu0 0.0
    %3212 = vmatprep.subr.mxu0 0.0
    %3213 = vmatpush1.msra.mxu0 0.0
    %3214 = vmatprep.subr.mxu0 0.0
    %3215 = vmatpush1.msra.mxu0 0.0
    %3216 = vmatprep.subr.mxu0 0.0
    %3217 = vmatpush1.msra.mxu0 0.0
    %3218 = vmatprep.subr.mxu0 0.0
    %3219 = vmatpush1.msra.mxu0 0.0
    %3220 = vmatprep.subr.mxu0 0.0
    %3221 = vmatpush1.msra.mxu0 0.0
    %3222 = vmatprep.subr.mxu0 0.0
    %3223 = vmatpush1.msra.mxu0 0.0
    %3224 = vmatprep.subr.mxu0 0.0
    %3225 = vmatpush1.msra.mxu0 0.0
    %3226 = vmatprep.subr.mxu0 0.0
    %3227 = vmatpush1.msra.mxu0 0.0
    %3228 = vmatprep.subr.mxu0 0.0
    %3229 = vmatpush1.msra.mxu0 0.0
    %3230 = vmatprep.subr.mxu0 0.0
    %3231 = vmatpush1.msra.mxu0 0.0
    %3232 = vmatprep.subr.mxu0 0.0
    %3233 = vmatpush1.msra.mxu0 0.0
    %3234 = vmatprep.subr.mxu0 0.0
    %3235 = vmatpush1.msra.mxu0 0.0
    %3236 = vmatprep.subr.mxu0 0.0
    %3237 = vmatpush1.msra.mxu0 0.0
    %3238 = vmatprep.subr.mxu0 0.0
    %3239 = vmatpush1.msra.mxu0 0.0
    %3240 = vmatprep.subr.mxu0 0.0
    %3241 = vmatpush1.msra.mxu0 0.0
    %3242 = vmatprep.subr.mxu0 0.0
    %3243 = vmatpush1.msra.mxu0 0.0
    %3244 = vmatprep.subr.mxu0 0.0
    %3245 = vmatpush1.msra.mxu0 0.0
    %3246 = vmatprep.subr.mxu0 0.0
    %3247 = vmatpush1.msra.mxu0 0.0
    %3248 = vmatprep.subr.mxu0 0.0
    %3249 = vmatpush1.msra.mxu0 0.0
    %3250 = vmatprep.subr.mxu0 0.0
    %3251 = vmatpush1.msra.mxu0 0.0
    %3252 = vmatprep.subr.mxu0 0.0
    %3253 = vmatpush1.msra.mxu0 0.0
    %3254 = vmatprep.subr.mxu0 0.0
    %3255 = vmatpush1.msra.mxu0 0.0
    %3256 = vmatprep.subr.mxu0 0.0
    %3257 = vmatpush1.msra.mxu0 0.0
    %3258 = vmatprep.subr.mxu0 0.0
    %3259 = vmatpush1.msra.mxu0 0.0
    %3260 = vmatprep.subr.mxu0 0.0
    %3261 = vmatpush1.msra.mxu0 0.0
    %3262 = vmatprep.mubr.f32.mxu0 0.0
    %3263 = vmatmul.mubr.f32.gmra.mrb[0].mxu0 %v3196
    %v3264 = vpop.f32.mrb[0].mxu0
    %v3265 = vadd.f32 %v1389, %v3264
    %v3266 = vpop.f32.mrb[0].mxu0
    %3267 = vdwg.mxu0
    %v3268 = vsel %vm1023, %v3265, -inf
    %3269 = vmax.xlane.f32.xlu0 %v3268
    %v3270 = vpop.xlane.xlu0 %3269
    %v3271 = vsub.f32 %v3265, %v3270
    %v3272 = vmul.f32 %v3271, 1.442695
    %v3273 = vpow.pop %v3272
    %v3274 = vsel %vm1023, %v3273, 0.0
    %3275 = vadd.xlane.f32.xlu0 %v3274
    %v3276 = vpop.xlane.xlu0 %3275
    %v3277 = vlog2.pop %v3276
    %v3278 = vmul.f32 %v3277, 0.6931472
    %v3279 = vadd.f32 %v3278, %v3270
    %v3280 = vsub.f32 %v3265, %v3279
    %v3281 = vsel %vm1023, %v3280, -inf
    %3282 = vmax.xlane.f32.xlu0 %v3281
    %v3283 = vpop.xlane.xlu0 %3282
    %vm3284 = vcmp.eq.f32.partialorder %v3280, %v3283
    %v3285 = vsel %vm3284, %v58, 128.0
    %v3286 = vsel %vm1023, %v3285, inf
    %3287 = vmin.xlane.f32.xlu0 %v3286
    %v3288 = vpop.xlane.xlu0 %3287
    %vm3289 = vcmp.eq.f32.partialorder %v58, %v3288
    %v3290 = vsel %vm3289, -inf, %v3280
    %v3291 = vsel %vm1023, %v3290, -inf
    %3292 = vmax.xlane.f32.xlu0 %v3291
    %v3293 = vpop.xlane.xlu0 %3292
    %vm3294 = vcmp.eq.f32.partialorder %v3290, %v3293
    %v3295 = vsel %vm3294, %v58, 128.0
    %v3296 = vsel %vm1023, %v3295, inf
    %3297 = vmin.xlane.f32.xlu0 %v3296
    %v3298 = vpop.xlane.xlu0 %3297
    %v3299 = vsel %vm2034, %v3283, %v3293
    %v3300 = vmul.f32 %v3299, 1.442695
    %v3301 = vpow.pop %v3300
    %3303 = vset.pattern.permute.xlu0 0
    %3304 = vperm.xlu0 %3303, %v2739
    %v3305 = vpop.permute.xlu0 %3304
    %v3307 = vmul.f32 %v3301, %v3305
    %v3309 = vrot.slane %v3307, 1
    %3310 = vrot.lane.b32.xlu0 %v3309, 2
    %v3311 = vpop.permute.xlu0 %3310
    %v3313 = vsel %vm2050, %v3307, %v3311
    %v3315 = vrot.slane %v3298, 7
    %v3317 = vsel %vm1021, %v3288, %v3315
    %vm3318 = vcmp.eq.f32.partialorder %v58, 4.0
    %3320 = vset.pattern.permute.xlu0 0
    %3321 = vperm.xlu0 %3320, %v3317
    %v3322 = vpop.permute.xlu0 %3321
    %v3324 = vlaneseq
    %v3325 = vshrl.u32 %v3324, 7
    %v3326 = vsub.s32 0, %v3325
    %v3327 = vrot.slane %v2781, %v3326
    %v3328 = vsel %vm3318, %v3322, %v3327
    %v3329 = vsel %vm2058, %v3313, -inf
    %3330 = vmax.xlane.f32.xlu0 %v3329
    %v3331 = vpop.xlane.xlu0 %3330
    %vm3332 = vcmp.eq.f32.partialorder %v3313, %v3331
    %v3333 = vsel %vm3332, %v58, 4.0
    %v3334 = vsel %vm2058, %v3333, inf
    %3335 = vmin.xlane.f32.xlu0 %v3334
    %v3336 = vpop.xlane.xlu0 %3335
    %vm3337 = vcmp.eq.f32.partialorder %v58, %v3336
    %v3338 = vsel %vm3337, 1, 0
    %v3339 = vcvt.s32.f32 %v3338
    %vm3340 = vcmp.gt.f32.partialorder %v3339, 0.0
    %v3341 = vsel %vm3340, -inf, %v3313
    %v3342 = vsel %vm2058, %v3341, -inf
    %3343 = vmax.xlane.f32.xlu0 %v3342
    %v3344 = vpop.xlane.xlu0 %3343
    %v3346 = vrot.slane %v3344, 7
    %v3348 = vsel %vm1021, %v3331, %v3346
    %v3350 = vrot.slane %v3348, 7
    %vm3352 = vcmp.gt.f32.partialorder %v3348, %v3350
    %v3353 = vsel %vm3352, 1, 0
    %3354 = vset.pattern.permute.xlu0 0
    %3355 = vperm.xlu0 %3354, %v3353
    %v3356 = vpop.permute.xlu0 %3355
    %vm3357 = vcmp.eq.s32.totalorder %v3356, 1
    %v3359 = vrot.slane %v3328, 7
    %v3361 = vsel %vm3357, %v3328, %v3359
    %3362 = vst [vmem:[#allocation8 - $0x1] sm:$0x2] %v3361
    // Predicated region
    $region26: #{tpu_custom_call.1} parent=1 // pred_check
      _
    $region27: #{tpu_custom_call.1} parent=1 // pred_check_branch
      %3364 = sbr.rel (0) target = $region29
    $region28: #{tpu_custom_call.1} parent=1 // pred_region
      %s3366 = ssub.s32 16, 16
      %3367 = vsyncadd [#allocation4], %s3366
      %s3369 = sshll.u32 [#allocation8], 4
      %s3370 = int_to_ptr.vmem [resolvable:$true] %s3369
      %3372 = dma.vmem_to_hbm [thread:$0]  %s3370, 16, %s3, [#allocation4]
    $region29: #{tpu_custom_call.1} parent=1 // pred_fallthru
      _
    // Predicated region
    $region30: #{tpu_custom_call.1} parent=1 // pred_check
      _
    $region31: #{tpu_custom_call.1} parent=1 // pred_check_branch
      %3374 = sbr.rel (0) target = $region33
    $region32: #{tpu_custom_call.1} parent=1 // pred_region
      %3375 = dma.done [#allocation4], 16
    $region33: #{tpu_custom_call.1} parent=1 // pred_fallthru
      _
    %3376 = vsyncpa [#allocation3], 1
    %3377 = vsyncpa [#allocation6], 1
    %3378 = vsyncpa [#allocation4], 1

</llo_original>
